<compile_context>
chip_gen: v6e
topology: v6e:2x2x1
jax: 0.10.0
libtpu: 0.0.40
codegen_flags: <defaults>
</compile_context>

<pallas_src>
import functools

import jax
import jax.numpy as jnp
from jax.experimental import pallas as pl
from jax.experimental.pallas import tpu as pltpu


def _round_up(a, b):
    return ((a + b - 1) // b) * b


def _num_tensorcores():
    # v7x has 2 TensorCores per chip (the "parallel" grid axis shards across
    # them); v5e / v6e have 1, so an eigenvector split is pure overhead there.
    try:
        kind = jax.devices()[0].device_kind.lower()
    except Exception:
        return 1
    return 2 if "v7" in kind else 1


def _vmem_limit_bytes():
    # Raise the scoped-VMEM budget above the conservative default
    # (16 MiB v5e / 32 MiB v6e+v7x) while leaving headroom below physical.
    cap = 128 * 1024 * 1024
    try:
        cap = int(pltpu.get_tpu_info().vmem_capacity_bytes)
    except Exception:
        pass
    return min(int(cap * 0.85), 100 * 1024 * 1024)


def _pick_kb(kpc, h, target_lanes=256):
    # Largest divisor of kpc whose stacked hidden width kb*h stays <= ~256
    # lanes (full MXU column width on v6e/v7x, 2x128 on v5e).
    best = 1
    for kb in range(1, kpc + 1):
        if kpc % kb == 0 and kb * h <= max(target_lanes, h):
            best = kb
    return best


# --------------- Kernel A: fused encoder + masked pool (+ rho) ---------------

def _enc_pool_kernel(kpc, kb, fuse_rho, n_ref, x_ref, ahat_ref,
                     w0_ref, b0_ref, w1_ref, b1_ref, w2a_ref, b2a_ref,
                     w2b_ref, b2b_ref, *rest):
    if fuse_rho:
        wr1_ref, br1_ref, wr2_ref, br2_ref, o_ref, acc_ref, c2_ref = rest
    else:
        o_ref, acc_ref, c2_ref = rest

    s = pl.program_id(0)
    kk = pl.program_id(1)
    n = ahat_ref.shape[0]
    kbh = w1_ref.shape[0]                      # kb * hidden
    h = kbh // kb

    # bf16 storage of (A + I) is exact for small integer degrees; convert once
    # per grid step and keep every MXU matmul in f32 for the 1e-4 tolerance.
    ah = ahat_ref[...].astype(jnp.float32)

    @pl.when(kk == 0)
    def _():
        acc_ref[...] = jnp.zeros_like(acc_ref)
        # x-independent affine constant shared by the +x / -x branches
        # (pre-ReLU layer-2 activation of a zero input), already tiled over kb.
        h0c = jnp.broadcast_to(b0_ref[...], (n, kbh))
        h1c = jnp.dot(jnp.dot(ah, h0c, preferred_element_type=jnp.float32),
                      w1_ref[...], preferred_element_type=jnp.float32) + b1_ref[...]
        c2_ref[...] = (jnp.dot(jnp.dot(ah, h1c, preferred_element_type=jnp.float32),
                               w2a_ref[...], preferred_element_type=jnp.float32)
                       + b2a_ref[...])

    # Sign-odd (linear) part of the GIN stack for kb eigenvectors at once.
    xb = x_ref[0]                                            # (n, kb*cin)
    t0 = jnp.dot(jnp.dot(ah, xb, preferred_element_type=jnp.float32),
                 w0_ref[...], preferred_element_type=jnp.float32)
    t1 = jnp.dot(jnp.dot(ah, t0, preferred_element_type=jnp.float32),
                 w1_ref[...], preferred_element_type=jnp.float32)
    t2 = jnp.dot(jnp.dot(ah, t1, preferred_element_type=jnp.float32),
                 w2a_ref[...], preferred_element_type=jnp.float32)

    c2 = c2_ref[...]
    # enc(x)+enc(-x) = (ReLU(c2+t2)+ReLU(c2-t2)) @ W2b_stacked + 2*b2b
    u = jnp.maximum(c2 + t2, 0.0) + jnp.maximum(c2 - t2, 0.0)

    # Per-eigenvector mask (k < n_nodes), expanded to h lanes per eigenvector
    # without integer division: lane l belongs to eigenvector floor(l/h), and
    # floor(l/h) < (n_nodes - k_base)  <=>  l < (n_nodes - k_base) * h.
    k_base = s * kpc + kk * kb
    lane = jax.lax.broadcasted_iota(jnp.int32, (n, kbh), 1)
    keep = (lane < (n_ref[...] - k_base) * h).astype(jnp.float32)
    cnt = jnp.clip(n_ref[...] - k_base, 0, kb).astype(jnp.float32)

    acc_ref[...] += (jnp.dot(u * keep, w2b_ref[...], preferred_element_type=jnp.float32)
                     + (2.0 * cnt) * b2b_ref[...])

    @pl.when(kk == pl.num_programs(1) - 1)
    def _():
        pooled = acc_ref[...]
        if fuse_rho:
            hid = jnp.maximum(
                jnp.dot(pooled, wr1_ref[...], preferred_element_type=jnp.float32)
                + br1_ref[...], 0.0)
            o_ref[0] = (jnp.dot(hid, wr2_ref[...], preferred_element_type=jnp.float32)
                        + br2_ref[...])
        else:
            o_ref[0] = pooled


# ------------- Kernel B: rho MLP (only used on the S >= 2 path) -------------

def _rho_kernel(x_ref, w1_ref, b1_ref, w2_ref, b2_ref, o_ref):
    hid = jnp.maximum(
        jnp.dot(x_ref[...], w1_ref[...], preferred_element_type=jnp.float32)
        + b1_ref[...], 0.0)
    o_ref[...] = (jnp.dot(hid, w2_ref[...], preferred_element_type=jnp.float32)
                  + b2_ref[...]).astype(o_ref.dtype)


def rho_mlp(x, w1, b1, w2, b2, tm=512):
    M, C = x.shape
    H = w1.shape[1]
    D = w2.shape[1]
    tm_eff = min(tm, _round_up(M, 8))
    return pl.pallas_call(
        _rho_kernel,
        out_shape=jax.ShapeDtypeStruct((M, D), jnp.float32),
        grid=(pl.cdiv(M, tm_eff),),            # masked tail tile, no jnp.pad copy
        in_specs=[
            pl.BlockSpec((tm_eff, C), lambda i: (i, 0)),
            pl.BlockSpec((C, H), lambda i: (0, 0)),
            pl.BlockSpec((1, H), lambda i: (0, 0)),
            pl.BlockSpec((H, D), lambda i: (0, 0)),
            pl.BlockSpec((1, D), lambda i: (0, 0)),
        ],
        out_specs=pl.BlockSpec((tm_eff, D), lambda i: (i, 0)),
        compiler_params=pltpu.CompilerParams(dimension_semantics=("parallel",)),
    )(x, w1, b1, w2, b2)


# -------------------------- model forward (wrapper) --------------------------

def masked_gin_deepsigns_forward(x, ahat, n_nodes, p, force_s=None):
    """x: [N, K, Cin] f32; ahat = A + I (dense [N, N]); n_nodes: [N, 1] int32."""
    N, K, Cin = x.shape
    H = p["W0"].shape[1]
    Cout = p["W2b"].shape[1]
    dim_pe = p["Wr2"].shape[1]

    S = _num_tensorcores() if force_s is None else int(force_s)
    if S < 1 or K % S != 0:
        S = 1
    KPC = K // S
    KB = _pick_kb(KPC, H)
    KSTEPS = KPC // KB
    G = S * KSTEPS
    fuse_rho = (S == 1)          # rho fits in the epilogue when there is one slice

    # ---- lane-stacked (block-diagonal) weights: rhs width KB*H per matmul ----
    eye = jnp.eye(KB, dtype=jnp.float32)
    w0bd = jnp.kron(eye, p["W0"])                      # (KB*Cin, KB*H)
    w1bd = jnp.kron(eye, p["W1"])                      # (KB*H,  KB*H)
    w2abd = jnp.kron(eye, p["W2a"])                    # (KB*H,  KB*H)
    b0t = jnp.tile(p["b0"][None, :], (1, KB))
    b1t = jnp.tile(p["b1"][None, :], (1, KB))
    b2at = jnp.tile(p["b2a"][None, :], (1, KB))

    # ---- lane-dense outputs: pad Cout and dim_pe up to multiples of 128 ----
    Cp = _round_up(Cout, 128)
    Dp = _round_up(dim_pe, 128)
    w2bs = jnp.pad(jnp.tile(p["W2b"], (KB, 1)), ((0, 0), (0, Cp - Cout)))   # (KB*H, Cp)
    b2bp = jnp.pad(p["b2b"], (0, Cp - Cout))[None, :]                       # (1, Cp)
    wr1p = jnp.pad(p["Wr1"], ((0, Cp - Cout), (0, 0)))                      # (Cp, H)
    br1 = p["br1"][None, :]
    wr2p = jnp.pad(p["Wr2"], ((0, 0), (0, Dp - dim_pe)))                    # (H, Dp)
    br2p = jnp.pad(p["br2"], (0, Dp - dim_pe))[None, :]                     # (1, Dp)

    # Groups of KB eigenvectors, stacked along the lane axis.
    if G == 1:
        xg = x.reshape(1, N, K * Cin)                  # free reshape, no copy
    else:
        # TODO(synk): drop this transpose (one extra HBM pass over x) by slicing
        # KB*Cin lanes in-kernel from the native (N, K*Cin) layout once dynamic
        # minor-dim slicing is robust on all generations.
        xg = x.reshape(N, G, KB * Cin).transpose(1, 0, 2)

    ahat_bf16 = ahat.astype(jnp.bfloat16)              # exact for integer degrees < 256
    out_ch = Dp if fuse_rho else Cp

    # TODO(synk): for very large N on v7x (64 MiB VMEM), row-tile the (N, N)
    # aggregation (ahat block (TN, N) + matching row tiles for t/c2/output)
    # instead of holding the full dense matrix resident.
    def _run(single_buffer):
        cmap = lambda s_, kk_: (0, 0)

        def cspec(arr):
            if single_buffer:
                return pl.BlockSpec(arr.shape, cmap, pipeline_mode=pl.Buffered(1))
            return pl.BlockSpec(arr.shape, cmap)

        in_specs = [
            cspec(n_nodes),                                            # n_nodes
            pl.BlockSpec((1, N, KB * Cin),
                         lambda s_, kk_: (s_ * KSTEPS + kk_, 0, 0)),   # x group
            cspec(ahat_bf16),                                          # A + I (bf16)
            cspec(w0bd), cspec(b0t),
            cspec(w1bd), cspec(b1t),
            cspec(w2abd), cspec(b2at),
            cspec(w2bs), cspec(b2bp),
        ]
        args = [n_nodes, xg, ahat_bf16, w0bd, b0t, w1bd, b1t, w2abd, b2at,
                w2bs, b2bp]
        if fuse_rho:
            in_specs += [cspec(wr1p), cspec(br1), cspec(wr2p), cspec(br2p)]
            args += [wr1p, br1, wr2p, br2p]

        return pl.pallas_call(
            functools.partial(_enc_pool_kernel, KPC, KB, fuse_rho),
            out_shape=jax.ShapeDtypeStruct((S, N, out_ch), jnp.float32),
            grid=(S, KSTEPS),
            in_specs=in_specs,
            out_specs=pl.BlockSpec((1, N, out_ch), lambda s_, kk_: (s_, 0, 0)),
            scratch_shapes=[pltpu.VMEM((N, Cp), jnp.float32),
                            pltpu.VMEM((N, KB * H), jnp.float32)],
            compiler_params=pltpu.CompilerParams(
                dimension_semantics=("parallel", "arbitrary"),
                vmem_limit_bytes=_vmem_limit_bytes()),
        )(*args)

    try:
        enc_out = _run(True)       # single-buffer all grid-invariant operands
    except Exception:
        # Fallback for JAX versions where pipeline_mode / Buffered(1) is not
        # supported by the classic pallas_call pipeline: default double buffer.
        enc_out = _run(False)

    if fuse_rho:
        return enc_out[0, :, :dim_pe]
    pooled = jnp.sum(enc_out, axis=0)                  # combine per-core slices (v7x)
    return rho_mlp(pooled, wr1p, br1, wr2p, br2p)[:, :dim_pe]


# ------------------------------- parameters ----------------------------------

def init_params(key, in_channels, hidden, out_channels, dim_pe):
    keys = jax.random.split(key, 6)

    def lin(k, cin, cout):
        kw, kb = jax.random.split(k)
        w = jax.random.normal(kw, (cin, cout), jnp.float32) / jnp.sqrt(float(cin))
        b = jax.random.normal(kb, (cout,), jnp.float32) * 0.01
        return w, b

    p = {}
    # GIN (num_layers = 3): conv0 / conv1 have 1-layer update MLPs,
    # conv2 has a 2-layer update MLP (hidden -> hidden -> out, ReLU in between).
    p["W0"], p["b0"] = lin(keys[0], in_channels, hidden)
    p["W1"], p["b1"] = lin(keys[1], hidden, hidden)
    p["W2a"], p["b2a"] = lin(keys[2], hidden, hidden)
    p["W2b"], p["b2b"] = lin(keys[3], hidden, out_channels)
    # rho MLP (2 layers): out_channels -> hidden -> dim_pe
    p["Wr1"], p["br1"] = lin(keys[4], out_channels, hidden)
    p["Wr2"], p["br2"] = lin(keys[5], hidden, dim_pe)
    return p


# ------------------------------- reference ----------------------------------

def ref_forward(x, ahat, n_nodes, p):
    def enc(xk):
        h = jnp.einsum("ij,kjc->kic", ahat, xk) @ p["W0"] + p["b0"]
        h = jnp.einsum("ij,kjc->kic", ahat, h) @ p["W1"] + p["b1"]
        h = jax.nn.relu(jnp.einsum("ij,kjc->kic", ahat, h) @ p["W2a"] + p["b2a"])
        return h @ p["W2b"] + p["b2b"]

    xk = jnp.transpose(x, (1, 0, 2))
    h = enc(xk) + enc(-xk)
    h = jnp.transpose(h, (1, 0, 2))
    N, K, C = h.shape
    mask = (jnp.arange(K, dtype=jnp.int32)[None, :] < n_nodes).astype(h.dtype)
    pooled = jnp.sum(h * mask[:, :, None], axis=1)
    z = jax.nn.relu(pooled @ p["Wr1"] + p["br1"])
    return z @ p["Wr2"] + p["br2"]


# --------------------------------- main --------------------------------------

if __name__ == "__main__":
    N, K, Cin = 16, 16, 4
    hidden, out_ch, dim_pe = 32, 32, 8

    key = jax.random.PRNGKey(0)
    kx, kp = jax.random.split(key)
    x = jax.random.normal(kx, (N, K, Cin), jnp.float32)

    # Two graphs: ring of 10 nodes (0..9) and ring of 6 nodes (10..15), bidirectional.
    sizes = [10, 6]
    src, dst, batch = [], [], []
    start = 0
    for g, gsz in enumerate(sizes):
        for i in range(gsz):
            a, b = start + i, start + (i + 1) % gsz
            src += [a, b]
            dst += [b, a]
        batch += [g] * gsz
        start += gsz
    edge_index = jnp.array([src, dst], dtype=jnp.int32)            # [2, E]
    batch_index = jnp.array(batch, dtype=jnp.int32)                # [N]

    # Dense (A + I): A[i, j] = #edges j -> i  (PyG: edge_index[0]=src, [1]=dst).
    A = jnp.zeros((N, N), jnp.float32).at[edge_index[1], edge_index[0]].add(1.0)
    ahat = A + jnp.eye(N, dtype=jnp.float32)

    # batched_n_nodes: per-node graph size (scatter-add of ones, gathered back).
    num_graphs = int(batch_index.max()) + 1
    counts = jnp.zeros((num_graphs,), jnp.int32).at[batch_index].add(1)
    n_nodes = counts[batch_index].reshape(N, 1)                    # [N, 1] int32

    params = init_params(kp, Cin, hidden, out_ch, dim_pe)

    ref = ref_forward(x, ahat, n_nodes, params)

    out = masked_gin_deepsigns_forward(x, ahat, n_nodes, params)
    out = jax.block_until_ready(out)
    assert out.shape == (N, dim_pe)
    assert jnp.allclose(out, ref, atol=1e-4, rtol=1e-4), float(jnp.max(jnp.abs(out - ref)))

    # Exercise both generation-specific paths regardless of the chip we run on:
    # S=1 (v5e/v6e: fused rho epilogue) and S=2 (v7x: per-core slices + rho kernel).
    for s_force in (1, 2):
        alt = jax.block_until_ready(
            masked_gin_deepsigns_forward(x, ahat, n_nodes, params, force_s=s_force))
        assert jnp.allclose(alt, ref, atol=1e-4, rtol=1e-4), (
            s_force, float(jnp.max(jnp.abs(alt - ref))))

    print("KERNEL_OK")
</pallas_src>

<mosaic_0001>
module attributes {stable_mosaic.version = 11 : i64} {
  func.func @_enc_pool_kernel(%arg0: i32, %arg1: i32, %arg2: memref<16x1xi32, #tpu.memory_space<vmem>>, %arg3: memref<1x16x32xf32, #tpu.memory_space<vmem>>, %arg4: memref<16x16xbf16, #tpu.memory_space<vmem>>, %arg5: memref<32x256xf32, #tpu.memory_space<vmem>>, %arg6: memref<1x256xf32, #tpu.memory_space<vmem>>, %arg7: memref<256x256xf32, #tpu.memory_space<vmem>>, %arg8: memref<1x256xf32, #tpu.memory_space<vmem>>, %arg9: memref<256x256xf32, #tpu.memory_space<vmem>>, %arg10: memref<1x256xf32, #tpu.memory_space<vmem>>, %arg11: memref<256x128xf32, #tpu.memory_space<vmem>>, %arg12: memref<1x128xf32, #tpu.memory_space<vmem>>, %arg13: memref<128x32xf32, #tpu.memory_space<vmem>>, %arg14: memref<1x32xf32, #tpu.memory_space<vmem>>, %arg15: memref<32x128xf32, #tpu.memory_space<vmem>>, %arg16: memref<1x128xf32, #tpu.memory_space<vmem>>, %arg17: memref<1x16x128xf32, #tpu.memory_space<vmem>>, %arg18: memref<16x128xf32, #tpu.memory_space<vmem>>, %arg19: memref<16x256xf32, #tpu.memory_space<vmem>>) attributes {dimension_semantics = [#tpu.dimension_semantics<parallel>, #tpu.dimension_semantics<arbitrary>], iteration_bounds = array<i64: 1, 2>, scalar_prefetch = 0 : i64, scratch_operands = 2 : i64, tpu.core_type = #tpu.core_type<tc>, window_params = [{pipeline_mode = #tpu.pipeline_mode<synchronous>, transform_indices = @transform_0, window_bounds = array<i64: 16, 1>}, {transform_indices = @transform_1, window_bounds = array<i64: 1, 16, 32>}, {pipeline_mode = #tpu.pipeline_mode<synchronous>, transform_indices = @transform_2, window_bounds = array<i64: 16, 16>}, {pipeline_mode = #tpu.pipeline_mode<synchronous>, transform_indices = @transform_3, window_bounds = array<i64: 32, 256>}, {pipeline_mode = #tpu.pipeline_mode<synchronous>, transform_indices = @transform_4, window_bounds = array<i64: 1, 256>}, {pipeline_mode = #tpu.pipeline_mode<synchronous>, transform_indices = @transform_5, window_bounds = array<i64: 256, 256>}, {pipeline_mode = #tpu.pipeline_mode<synchronous>, transform_indices = @transform_6, window_bounds = array<i64: 1, 256>}, {pipeline_mode = #tpu.pipeline_mode<synchronous>, transform_indices = @transform_7, window_bounds = array<i64: 256, 256>}, {pipeline_mode = #tpu.pipeline_mode<synchronous>, transform_indices = @transform_8, window_bounds = array<i64: 1, 256>}, {pipeline_mode = #tpu.pipeline_mode<synchronous>, transform_indices = @transform_9, window_bounds = array<i64: 256, 128>}, {pipeline_mode = #tpu.pipeline_mode<synchronous>, transform_indices = @transform_10, window_bounds = array<i64: 1, 128>}, {pipeline_mode = #tpu.pipeline_mode<synchronous>, transform_indices = @transform_11, window_bounds = array<i64: 128, 32>}, {pipeline_mode = #tpu.pipeline_mode<synchronous>, transform_indices = @transform_12, window_bounds = array<i64: 1, 32>}, {pipeline_mode = #tpu.pipeline_mode<synchronous>, transform_indices = @transform_13, window_bounds = array<i64: 32, 128>}, {pipeline_mode = #tpu.pipeline_mode<synchronous>, transform_indices = @transform_14, window_bounds = array<i64: 1, 128>}, {transform_indices = @transform_15, window_bounds = array<i64: 1, 16, 128>}]} {
    %c0 = arith.constant 0 : index
    %c0_0 = arith.constant 0 : index
    %0 = vector.load %arg4[%c0, %c0_0] : memref<16x16xbf16, #tpu.memory_space<vmem>>, vector<16x16xbf16>
    %1 = arith.extf %0 : vector<16x16xbf16> to vector<16x16xf32>
    %c0_i32 = arith.constant 0 : i32
    %2 = arith.cmpi eq, %arg1, %c0_i32 : i32
    %3 = arith.extui %2 : i1 to i32
    %c0_i32_1 = arith.constant 0 : i32
    %4 = arith.cmpi ne, %3, %c0_i32_1 : i32
    scf.if %4 {
      %cst_37 = arith.constant 0.000000e+00 : f32
      %61 = vector.broadcast %cst_37 : f32 to vector<16x128xf32>
      %c0_38 = arith.constant 0 : index
      %c0_39 = arith.constant 0 : index
      %62 = vector.load %arg18[%c0_38, %c0_39] : memref<16x128xf32, #tpu.memory_space<vmem>>, vector<16x128xf32>
      tpu.vector_store %arg18[%c0_38, %c0_39], %61 {strides = array<i32>} : memref<16x128xf32, #tpu.memory_space<vmem>>, vector<16x128xf32>,
      %c0_40 = arith.constant 0 : index
      %c0_41 = arith.constant 0 : index
      %63 = vector.load %arg6[%c0_40, %c0_41] : memref<1x256xf32, #tpu.memory_space<vmem>>, vector<1x256xf32>
      %64 = vector.shape_cast %63 : vector<1x256xf32> to vector<1x256xf32>
      %65 = vector.broadcast %64 : vector<1x256xf32> to vector<16x256xf32>
      %cst_42 = arith.constant dense<0.000000e+00> : vector<16x256xf32>
      %66 = tpu.matmul %1, %65, %cst_42 {dimension_numbers = #tpu.dot_dimension_numbers<[1], [0], [0], [1], [0, 0, 1, 1], [], []>} : vector<16x16xf32>, vector<16x256xf32>, vector<16x256xf32> -> vector<16x256xf32>
      %c0_43 = arith.constant 0 : index
      %c0_44 = arith.constant 0 : index
      %67 = vector.load %arg7[%c0_43, %c0_44] : memref<256x256xf32, #tpu.memory_space<vmem>>, vector<256x256xf32>
      %cst_45 = arith.constant dense<0.000000e+00> : vector<16x256xf32>
      %68 = tpu.matmul %66, %67, %cst_45 {dimension_numbers = #tpu.dot_dimension_numbers<[1], [0], [0], [1], [0, 0, 1, 1], [], []>} : vector<16x256xf32>, vector<256x256xf32>, vector<16x256xf32> -> vector<16x256xf32>
      %c0_46 = arith.constant 0 : index
      %c0_47 = arith.constant 0 : index
      %69 = vector.load %arg8[%c0_46, %c0_47] : memref<1x256xf32, #tpu.memory_space<vmem>>, vector<1x256xf32>
      %70 = vector.broadcast %69 : vector<1x256xf32> to vector<16x256xf32>
      %71 = arith.addf %68, %70 : vector<16x256xf32>
      %cst_48 = arith.constant dense<0.000000e+00> : vector<16x256xf32>
      %72 = tpu.matmul %1, %71, %cst_48 {dimension_numbers = #tpu.dot_dimension_numbers<[1], [0], [0], [1], [0, 0, 1, 1], [], []>} : vector<16x16xf32>, vector<16x256xf32>, vector<16x256xf32> -> vector<16x256xf32>
      %c0_49 = arith.constant 0 : index
      %c0_50 = arith.constant 0 : index
      %73 = vector.load %arg9[%c0_49, %c0_50] : memref<256x256xf32, #tpu.memory_space<vmem>>, vector<256x256xf32>
      %cst_51 = arith.constant dense<0.000000e+00> : vector<16x256xf32>
      %74 = tpu.matmul %72, %73, %cst_51 {dimension_numbers = #tpu.dot_dimension_numbers<[1], [0], [0], [1], [0, 0, 1, 1], [], []>} : vector<16x256xf32>, vector<256x256xf32>, vector<16x256xf32> -> vector<16x256xf32>
      %c0_52 = arith.constant 0 : index
      %c0_53 = arith.constant 0 : index
      %75 = vector.load %arg10[%c0_52, %c0_53] : memref<1x256xf32, #tpu.memory_space<vmem>>, vector<1x256xf32>
      %76 = vector.broadcast %75 : vector<1x256xf32> to vector<16x256xf32>
      %77 = arith.addf %74, %76 : vector<16x256xf32>
      %c0_54 = arith.constant 0 : index
      %c0_55 = arith.constant 0 : index
      %78 = vector.load %arg19[%c0_54, %c0_55] : memref<16x256xf32, #tpu.memory_space<vmem>>, vector<16x256xf32>
      tpu.vector_store %arg19[%c0_54, %c0_55], %77 {strides = array<i32>} : memref<16x256xf32, #tpu.memory_space<vmem>>, vector<16x256xf32>,
    } else {
    }
    %c0_2 = arith.constant 0 : index
    %c0_3 = arith.constant 0 : index
    %c0_4 = arith.constant 0 : index
    %5 = vector.load %arg3[%c0_2, %c0_3, %c0_4] : memref<1x16x32xf32, #tpu.memory_space<vmem>>, vector<1x16x32xf32>
    %6 = vector.shape_cast %5 : vector<1x16x32xf32> to vector<16x32xf32>
    %cst = arith.constant dense<0.000000e+00> : vector<16x32xf32>
    %7 = tpu.matmul %1, %6, %cst {dimension_numbers = #tpu.dot_dimension_numbers<[1], [0], [0], [1], [0, 0, 1, 1], [], []>} : vector<16x16xf32>, vector<16x32xf32>, vector<16x32xf32> -> vector<16x32xf32>
    %c0_5 = arith.constant 0 : index
    %c0_6 = arith.constant 0 : index
    %8 = vector.load %arg5[%c0_5, %c0_6] : memref<32x256xf32, #tpu.memory_space<vmem>>, vector<32x256xf32>
    %cst_7 = arith.constant dense<0.000000e+00> : vector<16x256xf32>
    %9 = tpu.matmul %7, %8, %cst_7 {dimension_numbers = #tpu.dot_dimension_numbers<[1], [0], [0], [1], [0, 0, 1, 1], [], []>} : vector<16x32xf32>, vector<32x256xf32>, vector<16x256xf32> -> vector<16x256xf32>
    %cst_8 = arith.constant dense<0.000000e+00> : vector<16x256xf32>
    %10 = tpu.matmul %1, %9, %cst_8 {dimension_numbers = #tpu.dot_dimension_numbers<[1], [0], [0], [1], [0, 0, 1, 1], [], []>} : vector<16x16xf32>, vector<16x256xf32>, vector<16x256xf32> -> vector<16x256xf32>
    %c0_9 = arith.constant 0 : index
    %c0_10 = arith.constant 0 : index
    %11 = vector.load %arg7[%c0_9, %c0_10] : memref<256x256xf32, #tpu.memory_space<vmem>>, vector<256x256xf32>
    %cst_11 = arith.constant dense<0.000000e+00> : vector<16x256xf32>
    %12 = tpu.matmul %10, %11, %cst_11 {dimension_numbers = #tpu.dot_dimension_numbers<[1], [0], [0], [1], [0, 0, 1, 1], [], []>} : vector<16x256xf32>, vector<256x256xf32>, vector<16x256xf32> -> vector<16x256xf32>
    %cst_12 = arith.constant dense<0.000000e+00> : vector<16x256xf32>
    %13 = tpu.matmul %1, %12, %cst_12 {dimension_numbers = #tpu.dot_dimension_numbers<[1], [0], [0], [1], [0, 0, 1, 1], [], []>} : vector<16x16xf32>, vector<16x256xf32>, vector<16x256xf32> -> vector<16x256xf32>
    %c0_13 = arith.constant 0 : index
    %c0_14 = arith.constant 0 : index
    %14 = vector.load %arg9[%c0_13, %c0_14] : memref<256x256xf32, #tpu.memory_space<vmem>>, vector<256x256xf32>
    %cst_15 = arith.constant dense<0.000000e+00> : vector<16x256xf32>
    %15 = tpu.matmul %13, %14, %cst_15 {dimension_numbers = #tpu.dot_dimension_numbers<[1], [0], [0], [1], [0, 0, 1, 1], [], []>} : vector<16x256xf32>, vector<256x256xf32>, vector<16x256xf32> -> vector<16x256xf32>
    %c0_16 = arith.constant 0 : index
    %c0_17 = arith.constant 0 : index
    %16 = vector.load %arg19[%c0_16, %c0_17] : memref<16x256xf32, #tpu.memory_space<vmem>>, vector<16x256xf32>
    %17 = arith.addf %16, %15 : vector<16x256xf32>
    %cst_18 = arith.constant 0.000000e+00 : f32
    %18 = vector.broadcast %cst_18 : f32 to vector<16x256xf32>
    %19 = arith.maximumf %17, %18 : vector<16x256xf32>
    %20 = arith.subf %16, %15 : vector<16x256xf32>
    %cst_19 = arith.constant 0.000000e+00 : f32
    %21 = vector.broadcast %cst_19 : f32 to vector<16x256xf32>
    %22 = arith.maximumf %20, %21 : vector<16x256xf32>
    %23 = arith.addf %19, %22 : vector<16x256xf32>
    %c16_i32 = arith.constant 16 : i32
    %24 = arith.muli %arg0, %c16_i32 : i32
    %c8_i32 = arith.constant 8 : i32
    %25 = arith.muli %arg1, %c8_i32 : i32
    %26 = arith.addi %24, %25 : i32
    %27 = tpu.iota {dimensions = array<i32: 1>} : vector<16x256xi32>
    %c0_20 = arith.constant 0 : index
    %c0_21 = arith.constant 0 : index
    %28 = vector.load %arg2[%c0_20, %c0_21] : memref<16x1xi32, #tpu.memory_space<vmem>>, vector<16x1xi32>
    %29 = vector.broadcast %26 : i32 to vector<16x1xi32>
    %30 = arith.subi %28, %29 : vector<16x1xi32>
    %c32_i32 = arith.constant 32 : i32
    %31 = vector.broadcast %c32_i32 : i32 to vector<16x1xi32>
    %32 = arith.muli %30, %31 : vector<16x1xi32>
    %33 = vector.broadcast %32 : vector<16x1xi32> to vector<16x256xi32>
    %34 = arith.cmpi slt, %27, %33 : vector<16x256xi32>
    %35 = arith.extui %34 : vector<16x256xi1> to vector<16x256xi32>
    %36 = arith.sitofp %35 : vector<16x256xi32> to vector<16x256xf32>
    %c0_22 = arith.constant 0 : index
    %c0_23 = arith.constant 0 : index
    %37 = vector.load %arg2[%c0_22, %c0_23] : memref<16x1xi32, #tpu.memory_space<vmem>>, vector<16x1xi32>
    %38 = vector.broadcast %26 : i32 to vector<16x1xi32>
    %39 = arith.subi %37, %38 : vector<16x1xi32>
    %c0_i32_24 = arith.constant 0 : i32
    %c8_i32_25 = arith.constant 8 : i32
    %40 = vector.broadcast %c0_i32_24 : i32 to vector<16x1xi32>
    %41 = arith.maxsi %40, %39 : vector<16x1xi32>
    %42 = vector.broadcast %c8_i32_25 : i32 to vector<16x1xi32>
    %43 = arith.minsi %42, %41 : vector<16x1xi32>
    %44 = arith.sitofp %43 : vector<16x1xi32> to vector<16x1xf32>
    %c0_26 = arith.constant 0 : index
    %c0_27 = arith.constant 0 : index
    %45 = vector.load %arg18[%c0_26, %c0_27] : memref<16x128xf32, #tpu.memory_space<vmem>>, vector<16x128xf32>
    %46 = arith.mulf %23, %36 : vector<16x256xf32>
    %c0_28 = arith.constant 0 : index
    %c0_29 = arith.constant 0 : index
    %47 = vector.load %arg11[%c0_28, %c0_29] : memref<256x128xf32, #tpu.memory_space<vmem>>, vector<256x128xf32>
    %cst_30 = arith.constant dense<0.000000e+00> : vector<16x128xf32>
    %48 = tpu.matmul %46, %47, %cst_30 {dimension_numbers = #tpu.dot_dimension_numbers<[1], [0], [0], [1], [0, 0, 1, 1], [], []>} : vector<16x256xf32>, vector<256x128xf32>, vector<16x128xf32> -> vector<16x128xf32>
    %cst_31 = arith.constant 2.000000e+00 : f32
    %49 = vector.broadcast %cst_31 : f32 to vector<16x1xf32>
    %50 = arith.mulf %49, %44 : vector<16x1xf32>
    %c0_32 = arith.constant 0 : index
    %c0_33 = arith.constant 0 : index
    %51 = vector.load %arg12[%c0_32, %c0_33] : memref<1x128xf32, #tpu.memory_space<vmem>>, vector<1x128xf32>
    %52 = vector.broadcast %50 : vector<16x1xf32> to vector<16x128xf32>
    %53 = vector.broadcast %51 : vector<1x128xf32> to vector<16x128xf32>
    %54 = arith.mulf %52, %53 : vector<16x128xf32>
    %55 = arith.addf %48, %54 : vector<16x128xf32>
    %56 = arith.addf %45, %55 : vector<16x128xf32>
    %c0_34 = arith.constant 0 : index
    %c0_35 = arith.constant 0 : index
    %57 = vector.load %arg18[%c0_34, %c0_35] : memref<16x128xf32, #tpu.memory_space<vmem>>, vector<16x128xf32>
    tpu.vector_store %arg18[%c0_34, %c0_35], %56 {strides = array<i32>} : memref<16x128xf32, #tpu.memory_space<vmem>>, vector<16x128xf32>,
    %c1_i32 = arith.constant 1 : i32
    %58 = arith.cmpi eq, %arg1, %c1_i32 : i32
    %59 = arith.extui %58 : i1 to i32
    %c0_i32_36 = arith.constant 0 : i32
    %60 = arith.cmpi ne, %59, %c0_i32_36 : i32
    scf.if %60 {
      %c0_37 = arith.constant 0 : index
      %c0_38 = arith.constant 0 : index
      %61 = vector.load %arg18[%c0_37, %c0_38] : memref<16x128xf32, #tpu.memory_space<vmem>>, vector<16x128xf32>
      %c0_39 = arith.constant 0 : index
      %c0_40 = arith.constant 0 : index
      %62 = vector.load %arg13[%c0_39, %c0_40] : memref<128x32xf32, #tpu.memory_space<vmem>>, vector<128x32xf32>
      %cst_41 = arith.constant dense<0.000000e+00> : vector<16x32xf32>
      %63 = tpu.matmul %61, %62, %cst_41 {dimension_numbers = #tpu.dot_dimension_numbers<[1], [0], [0], [1], [0, 0, 1, 1], [], []>} : vector<16x128xf32>, vector<128x32xf32>, vector<16x32xf32> -> vector<16x32xf32>
      %c0_42 = arith.constant 0 : index
      %c0_43 = arith.constant 0 : index
      %64 = vector.load %arg14[%c0_42, %c0_43] : memref<1x32xf32, #tpu.memory_space<vmem>>, vector<1x32xf32>
      %65 = vector.broadcast %64 : vector<1x32xf32> to vector<16x32xf32>
      %66 = arith.addf %63, %65 : vector<16x32xf32>
      %cst_44 = arith.constant 0.000000e+00 : f32
      %67 = vector.broadcast %cst_44 : f32 to vector<16x32xf32>
      %68 = arith.maximumf %66, %67 : vector<16x32xf32>
      %c0_45 = arith.constant 0 : index
      %c0_46 = arith.constant 0 : index
      %69 = vector.load %arg15[%c0_45, %c0_46] : memref<32x128xf32, #tpu.memory_space<vmem>>, vector<32x128xf32>
      %cst_47 = arith.constant dense<0.000000e+00> : vector<16x128xf32>
      %70 = tpu.matmul %68, %69, %cst_47 {dimension_numbers = #tpu.dot_dimension_numbers<[1], [0], [0], [1], [0, 0, 1, 1], [], []>} : vector<16x32xf32>, vector<32x128xf32>, vector<16x128xf32> -> vector<16x128xf32>
      %c0_48 = arith.constant 0 : index
      %c0_49 = arith.constant 0 : index
      %71 = vector.load %arg16[%c0_48, %c0_49] : memref<1x128xf32, #tpu.memory_space<vmem>>, vector<1x128xf32>
      %72 = vector.broadcast %71 : vector<1x128xf32> to vector<16x128xf32>
      %73 = arith.addf %70, %72 : vector<16x128xf32>
      %c0_50 = arith.constant 0 : index
      %c0_51 = arith.constant 0 : index
      %c0_52 = arith.constant 0 : index
      %74 = vector.load %arg17[%c0_50, %c0_51, %c0_52] : memref<1x16x128xf32, #tpu.memory_space<vmem>>, vector<1x16x128xf32>
      %75 = vector.shape_cast %74 : vector<1x16x128xf32> to vector<16x128xf32>
      %76 = vector.shape_cast %73 : vector<16x128xf32> to vector<1x16x128xf32>
      tpu.vector_store %arg17[%c0_50, %c0_51, %c0_52], %76 {strides = array<i32>} : memref<1x16x128xf32, #tpu.memory_space<vmem>>, vector<1x16x128xf32>,
    } else {
    }
    return
  }
  func.func @transform_0(%arg0: i32, %arg1: i32) -> (i32, i32) {
    %c0_i32 = arith.constant 0 : i32
    %c0_i32_0 = arith.constant 0 : i32
    %c0_i32_1 = arith.constant 0 : i32
    return %c0_i32, %c0_i32_0 : i32, i32
  }
  func.func @transform_1(%arg0: i32, %arg1: i32) -> (i32, i32, i32) {
    %c2_i32 = arith.constant 2 : i32
    %0 = arith.muli %arg0, %c2_i32 : i32
    %1 = arith.addi %0, %arg1 : i32
    %c0_i32 = arith.constant 0 : i32
    %c0_i32_0 = arith.constant 0 : i32
    %c0_i32_1 = arith.constant 0 : i32
    return %1, %c0_i32, %c0_i32_0 : i32, i32, i32
  }
  func.func @transform_2(%arg0: i32, %arg1: i32) -> (i32, i32) {
    %c0_i32 = arith.constant 0 : i32
    %c0_i32_0 = arith.constant 0 : i32
    %c0_i32_1 = arith.constant 0 : i32
    return %c0_i32, %c0_i32_0 : i32, i32
  }
  func.func @transform_3(%arg0: i32, %arg1: i32) -> (i32, i32) {
    %c0_i32 = arith.constant 0 : i32
    %c0_i32_0 = arith.constant 0 : i32
    %c0_i32_1 = arith.constant 0 : i32
    return %c0_i32, %c0_i32_0 : i32, i32
  }
  func.func @transform_4(%arg0: i32, %arg1: i32) -> (i32, i32) {
    %c0_i32 = arith.constant 0 : i32
    %c0_i32_0 = arith.constant 0 : i32
    %c0_i32_1 = arith.constant 0 : i32
    return %c0_i32, %c0_i32_0 : i32, i32
  }
  func.func @transform_5(%arg0: i32, %arg1: i32) -> (i32, i32) {
    %c0_i32 = arith.constant 0 : i32
    %c0_i32_0 = arith.constant 0 : i32
    %c0_i32_1 = arith.constant 0 : i32
    return %c0_i32, %c0_i32_0 : i32, i32
  }
  func.func @transform_6(%arg0: i32, %arg1: i32) -> (i32, i32) {
    %c0_i32 = arith.constant 0 : i32
    %c0_i32_0 = arith.constant 0 : i32
    %c0_i32_1 = arith.constant 0 : i32
    return %c0_i32, %c0_i32_0 : i32, i32
  }
  func.func @transform_7(%arg0: i32, %arg1: i32) -> (i32, i32) {
    %c0_i32 = arith.constant 0 : i32
    %c0_i32_0 = arith.constant 0 : i32
    %c0_i32_1 = arith.constant 0 : i32
    return %c0_i32, %c0_i32_0 : i32, i32
  }
  func.func @transform_8(%arg0: i32, %arg1: i32) -> (i32, i32) {
    %c0_i32 = arith.constant 0 : i32
    %c0_i32_0 = arith.constant 0 : i32
    %c0_i32_1 = arith.constant 0 : i32
    return %c0_i32, %c0_i32_0 : i32, i32
  }
  func.func @transform_9(%arg0: i32, %arg1: i32) -> (i32, i32) {
    %c0_i32 = arith.constant 0 : i32
    %c0_i32_0 = arith.constant 0 : i32
    %c0_i32_1 = arith.constant 0 : i32
    return %c0_i32, %c0_i32_0 : i32, i32
  }
  func.func @transform_10(%arg0: i32, %arg1: i32) -> (i32, i32) {
    %c0_i32 = arith.constant 0 : i32
    %c0_i32_0 = arith.constant 0 : i32
    %c0_i32_1 = arith.constant 0 : i32
    return %c0_i32, %c0_i32_0 : i32, i32
  }
  func.func @transform_11(%arg0: i32, %arg1: i32) -> (i32, i32) {
    %c0_i32 = arith.constant 0 : i32
    %c0_i32_0 = arith.constant 0 : i32
    %c0_i32_1 = arith.constant 0 : i32
    return %c0_i32, %c0_i32_0 : i32, i32
  }
  func.func @transform_12(%arg0: i32, %arg1: i32) -> (i32, i32) {
    %c0_i32 = arith.constant 0 : i32
    %c0_i32_0 = arith.constant 0 : i32
    %c0_i32_1 = arith.constant 0 : i32
    return %c0_i32, %c0_i32_0 : i32, i32
  }
  func.func @transform_13(%arg0: i32, %arg1: i32) -> (i32, i32) {
    %c0_i32 = arith.constant 0 : i32
    %c0_i32_0 = arith.constant 0 : i32
    %c0_i32_1 = arith.constant 0 : i32
    return %c0_i32, %c0_i32_0 : i32, i32
  }
  func.func @transform_14(%arg0: i32, %arg1: i32) -> (i32, i32) {
    %c0_i32 = arith.constant 0 : i32
    %c0_i32_0 = arith.constant 0 : i32
    %c0_i32_1 = arith.constant 0 : i32
    return %c0_i32, %c0_i32_0 : i32, i32
  }
  func.func @transform_15(%arg0: i32, %arg1: i32) -> (i32, i32, i32) {
    %c0_i32 = arith.constant 0 : i32
    %c0_i32_0 = arith.constant 0 : i32
    %c0_i32_1 = arith.constant 0 : i32
    return %arg0, %c0_i32, %c0_i32_0 : i32, i32, i32
  }
}

module attributes {stable_mosaic.version = 11 : i64} {
  func.func @_enc_pool_kernel(%arg0: i32, %arg1: i32, %arg2: memref<16x1xi32, #tpu.memory_space<vmem>>, %arg3: memref<1x16x32xf32, #tpu.memory_space<vmem>>, %arg4: memref<16x16xbf16, #tpu.memory_space<vmem>>, %arg5: memref<32x256xf32, #tpu.memory_space<vmem>>, %arg6: memref<1x256xf32, #tpu.memory_space<vmem>>, %arg7: memref<256x256xf32, #tpu.memory_space<vmem>>, %arg8: memref<1x256xf32, #tpu.memory_space<vmem>>, %arg9: memref<256x256xf32, #tpu.memory_space<vmem>>, %arg10: memref<1x256xf32, #tpu.memory_space<vmem>>, %arg11: memref<256x128xf32, #tpu.memory_space<vmem>>, %arg12: memref<1x128xf32, #tpu.memory_space<vmem>>, %arg13: memref<128x32xf32, #tpu.memory_space<vmem>>, %arg14: memref<1x32xf32, #tpu.memory_space<vmem>>, %arg15: memref<32x128xf32, #tpu.memory_space<vmem>>, %arg16: memref<1x128xf32, #tpu.memory_space<vmem>>, %arg17: memref<1x16x128xf32, #tpu.memory_space<vmem>>, %arg18: memref<16x128xf32, #tpu.memory_space<vmem>>, %arg19: memref<16x256xf32, #tpu.memory_space<vmem>>) attributes {dimension_semantics = [#tpu.dimension_semantics<parallel>, #tpu.dimension_semantics<arbitrary>], iteration_bounds = array<i64: 1, 2>, scalar_prefetch = 0 : i64, scratch_operands = 2 : i64, tpu.core_type = #tpu.core_type<tc>, window_params = [{pipeline_mode = #tpu.pipeline_mode<synchronous>, transform_indices = @transform_0, window_bounds = array<i64: 16, 1>}, {transform_indices = @transform_1, window_bounds = array<i64: 1, 16, 32>}, {pipeline_mode = #tpu.pipeline_mode<synchronous>, transform_indices = @transform_2, window_bounds = array<i64: 16, 16>}, {pipeline_mode = #tpu.pipeline_mode<synchronous>, transform_indices = @transform_3, window_bounds = array<i64: 32, 256>}, {pipeline_mode = #tpu.pipeline_mode<synchronous>, transform_indices = @transform_4, window_bounds = array<i64: 1, 256>}, {pipeline_mode = #tpu.pipeline_mode<synchronous>, transform_indices = @transform_5, window_bounds = array<i64: 256, 256>}, {pipeline_mode = #tpu.pipeline_mode<synchronous>, transform_indices = @transform_6, window_bounds = array<i64: 1, 256>}, {pipeline_mode = #tpu.pipeline_mode<synchronous>, transform_indices = @transform_7, window_bounds = array<i64: 256, 256>}, {pipeline_mode = #tpu.pipeline_mode<synchronous>, transform_indices = @transform_8, window_bounds = array<i64: 1, 256>}, {pipeline_mode = #tpu.pipeline_mode<synchronous>, transform_indices = @transform_9, window_bounds = array<i64: 256, 128>}, {pipeline_mode = #tpu.pipeline_mode<synchronous>, transform_indices = @transform_10, window_bounds = array<i64: 1, 128>}, {pipeline_mode = #tpu.pipeline_mode<synchronous>, transform_indices = @transform_11, window_bounds = array<i64: 128, 32>}, {pipeline_mode = #tpu.pipeline_mode<synchronous>, transform_indices = @transform_12, window_bounds = array<i64: 1, 32>}, {pipeline_mode = #tpu.pipeline_mode<synchronous>, transform_indices = @transform_13, window_bounds = array<i64: 32, 128>}, {pipeline_mode = #tpu.pipeline_mode<synchronous>, transform_indices = @transform_14, window_bounds = array<i64: 1, 128>}, {transform_indices = @transform_15, window_bounds = array<i64: 1, 16, 128>}]} {
    %c0 = arith.constant 0 : index
    %c0_0 = arith.constant 0 : index
    %0 = vector.load %arg4[%c0, %c0_0] : memref<16x16xbf16, #tpu.memory_space<vmem>>, vector<16x16xbf16>
    %1 = arith.extf %0 : vector<16x16xbf16> to vector<16x16xf32>
    %c0_i32 = arith.constant 0 : i32
    %2 = arith.cmpi eq, %arg1, %c0_i32 : i32
    %3 = arith.extui %2 : i1 to i32
    %c0_i32_1 = arith.constant 0 : i32
    %4 = arith.cmpi ne, %3, %c0_i32_1 : i32
    scf.if %4 {
      %cst_37 = arith.constant 0.000000e+00 : f32
      %61 = vector.broadcast %cst_37 : f32 to vector<16x128xf32>
      %c0_38 = arith.constant 0 : index
      %c0_39 = arith.constant 0 : index
      %62 = vector.load %arg18[%c0_38, %c0_39] : memref<16x128xf32, #tpu.memory_space<vmem>>, vector<16x128xf32>
      tpu.vector_store %arg18[%c0_38, %c0_39], %61 {strides = array<i32>} : memref<16x128xf32, #tpu.memory_space<vmem>>, vector<16x128xf32>,
      %c0_40 = arith.constant 0 : index
      %c0_41 = arith.constant 0 : index
      %63 = vector.load %arg6[%c0_40, %c0_41] : memref<1x256xf32, #tpu.memory_space<vmem>>, vector<1x256xf32>
      %64 = vector.shape_cast %63 : vector<1x256xf32> to vector<1x256xf32>
      %65 = vector.broadcast %64 : vector<1x256xf32> to vector<16x256xf32>
      %cst_42 = arith.constant dense<0.000000e+00> : vector<16x256xf32>
      %66 = tpu.matmul %1, %65, %cst_42 {dimension_numbers = #tpu.dot_dimension_numbers<[1], [0], [0], [1], [0, 0, 1, 1], [], []>} : vector<16x16xf32>, vector<16x256xf32>, vector<16x256xf32> -> vector<16x256xf32>
      %c0_43 = arith.constant 0 : index
      %c0_44 = arith.constant 0 : index
      %67 = vector.load %arg7[%c0_43, %c0_44] : memref<256x256xf32, #tpu.memory_space<vmem>>, vector<256x256xf32>
      %cst_45 = arith.constant dense<0.000000e+00> : vector<16x256xf32>
      %68 = tpu.matmul %66, %67, %cst_45 {dimension_numbers = #tpu.dot_dimension_numbers<[1], [0], [0], [1], [0, 0, 1, 1], [], []>} : vector<16x256xf32>, vector<256x256xf32>, vector<16x256xf32> -> vector<16x256xf32>
      %c0_46 = arith.constant 0 : index
      %c0_47 = arith.constant 0 : index
      %69 = vector.load %arg8[%c0_46, %c0_47] : memref<1x256xf32, #tpu.memory_space<vmem>>, vector<1x256xf32>
      %70 = vector.broadcast %69 : vector<1x256xf32> to vector<16x256xf32>
      %71 = arith.addf %68, %70 : vector<16x256xf32>
      %cst_48 = arith.constant dense<0.000000e+00> : vector<16x256xf32>
      %72 = tpu.matmul %1, %71, %cst_48 {dimension_numbers = #tpu.dot_dimension_numbers<[1], [0], [0], [1], [0, 0, 1, 1], [], []>} : vector<16x16xf32>, vector<16x256xf32>, vector<16x256xf32> -> vector<16x256xf32>
      %c0_49 = arith.constant 0 : index
      %c0_50 = arith.constant 0 : index
      %73 = vector.load %arg9[%c0_49, %c0_50] : memref<256x256xf32, #tpu.memory_space<vmem>>, vector<256x256xf32>
      %cst_51 = arith.constant dense<0.000000e+00> : vector<16x256xf32>
      %74 = tpu.matmul %72, %73, %cst_51 {dimension_numbers = #tpu.dot_dimension_numbers<[1], [0], [0], [1], [0, 0, 1, 1], [], []>} : vector<16x256xf32>, vector<256x256xf32>, vector<16x256xf32> -> vector<16x256xf32>
      %c0_52 = arith.constant 0 : index
      %c0_53 = arith.constant 0 : index
      %75 = vector.load %arg10[%c0_52, %c0_53] : memref<1x256xf32, #tpu.memory_space<vmem>>, vector<1x256xf32>
      %76 = vector.broadcast %75 : vector<1x256xf32> to vector<16x256xf32>
      %77 = arith.addf %74, %76 : vector<16x256xf32>
      %c0_54 = arith.constant 0 : index
      %c0_55 = arith.constant 0 : index
      %78 = vector.load %arg19[%c0_54, %c0_55] : memref<16x256xf32, #tpu.memory_space<vmem>>, vector<16x256xf32>
      tpu.vector_store %arg19[%c0_54, %c0_55], %77 {strides = array<i32>} : memref<16x256xf32, #tpu.memory_space<vmem>>, vector<16x256xf32>,
    } else {
    }
    %c0_2 = arith.constant 0 : index
    %c0_3 = arith.constant 0 : index
    %c0_4 = arith.constant 0 : index
    %5 = vector.load %arg3[%c0_2, %c0_3, %c0_4] : memref<1x16x32xf32, #tpu.memory_space<vmem>>, vector<1x16x32xf32>
    %6 = vector.shape_cast %5 : vector<1x16x32xf32> to vector<16x32xf32>
    %cst = arith.constant dense<0.000000e+00> : vector<16x32xf32>
    %7 = tpu.matmul %1, %6, %cst {dimension_numbers = #tpu.dot_dimension_numbers<[1], [0], [0], [1], [0, 0, 1, 1], [], []>} : vector<16x16xf32>, vector<16x32xf32>, vector<16x32xf32> -> vector<16x32xf32>
    %c0_5 = arith.constant 0 : index
    %c0_6 = arith.constant 0 : index
    %8 = vector.load %arg5[%c0_5, %c0_6] : memref<32x256xf32, #tpu.memory_space<vmem>>, vector<32x256xf32>
    %cst_7 = arith.constant dense<0.000000e+00> : vector<16x256xf32>
    %9 = tpu.matmul %7, %8, %cst_7 {dimension_numbers = #tpu.dot_dimension_numbers<[1], [0], [0], [1], [0, 0, 1, 1], [], []>} : vector<16x32xf32>, vector<32x256xf32>, vector<16x256xf32> -> vector<16x256xf32>
    %cst_8 = arith.constant dense<0.000000e+00> : vector<16x256xf32>
    %10 = tpu.matmul %1, %9, %cst_8 {dimension_numbers = #tpu.dot_dimension_numbers<[1], [0], [0], [1], [0, 0, 1, 1], [], []>} : vector<16x16xf32>, vector<16x256xf32>, vector<16x256xf32> -> vector<16x256xf32>
    %c0_9 = arith.constant 0 : index
    %c0_10 = arith.constant 0 : index
    %11 = vector.load %arg7[%c0_9, %c0_10] : memref<256x256xf32, #tpu.memory_space<vmem>>, vector<256x256xf32>
    %cst_11 = arith.constant dense<0.000000e+00> : vector<16x256xf32>
    %12 = tpu.matmul %10, %11, %cst_11 {dimension_numbers = #tpu.dot_dimension_numbers<[1], [0], [0], [1], [0, 0, 1, 1], [], []>} : vector<16x256xf32>, vector<256x256xf32>, vector<16x256xf32> -> vector<16x256xf32>
    %cst_12 = arith.constant dense<0.000000e+00> : vector<16x256xf32>
    %13 = tpu.matmul %1, %12, %cst_12 {dimension_numbers = #tpu.dot_dimension_numbers<[1], [0], [0], [1], [0, 0, 1, 1], [], []>} : vector<16x16xf32>, vector<16x256xf32>, vector<16x256xf32> -> vector<16x256xf32>
    %c0_13 = arith.constant 0 : index
    %c0_14 = arith.constant 0 : index
    %14 = vector.load %arg9[%c0_13, %c0_14] : memref<256x256xf32, #tpu.memory_space<vmem>>, vector<256x256xf32>
    %cst_15 = arith.constant dense<0.000000e+00> : vector<16x256xf32>
    %15 = tpu.matmul %13, %14, %cst_15 {dimension_numbers = #tpu.dot_dimension_numbers<[1], [0], [0], [1], [0, 0, 1, 1], [], []>} : vector<16x256xf32>, vector<256x256xf32>, vector<16x256xf32> -> vector<16x256xf32>
    %c0_16 = arith.constant 0 : index
    %c0_17 = arith.constant 0 : index
    %16 = vector.load %arg19[%c0_16, %c0_17] : memref<16x256xf32, #tpu.memory_space<vmem>>, vector<16x256xf32>
    %17 = arith.addf %16, %15 : vector<16x256xf32>
    %cst_18 = arith.constant 0.000000e+00 : f32
    %18 = vector.broadcast %cst_18 : f32 to vector<16x256xf32>
    %19 = arith.maximumf %17, %18 : vector<16x256xf32>
    %20 = arith.subf %16, %15 : vector<16x256xf32>
    %cst_19 = arith.constant 0.000000e+00 : f32
    %21 = vector.broadcast %cst_19 : f32 to vector<16x256xf32>
    %22 = arith.maximumf %20, %21 : vector<16x256xf32>
    %23 = arith.addf %19, %22 : vector<16x256xf32>
    %c16_i32 = arith.constant 16 : i32
    %24 = arith.muli %arg0, %c16_i32 : i32
    %c8_i32 = arith.constant 8 : i32
    %25 = arith.muli %arg1, %c8_i32 : i32
    %26 = arith.addi %24, %25 : i32
    %27 = tpu.iota {dimensions = array<i32: 1>} : vector<16x256xi32>
    %c0_20 = arith.constant 0 : index
    %c0_21 = arith.constant 0 : index
    %28 = vector.load %arg2[%c0_20, %c0_21] : memref<16x1xi32, #tpu.memory_space<vmem>>, vector<16x1xi32>
    %29 = vector.broadcast %26 : i32 to vector<16x1xi32>
    %30 = arith.subi %28, %29 : vector<16x1xi32>
    %c32_i32 = arith.constant 32 : i32
    %31 = vector.broadcast %c32_i32 : i32 to vector<16x1xi32>
    %32 = arith.muli %30, %31 : vector<16x1xi32>
    %33 = vector.broadcast %32 : vector<16x1xi32> to vector<16x256xi32>
    %34 = arith.cmpi slt, %27, %33 : vector<16x256xi32>
    %35 = arith.extui %34 : vector<16x256xi1> to vector<16x256xi32>
    %36 = arith.sitofp %35 : vector<16x256xi32> to vector<16x256xf32>
    %c0_22 = arith.constant 0 : index
    %c0_23 = arith.constant 0 : index
    %37 = vector.load %arg2[%c0_22, %c0_23] : memref<16x1xi32, #tpu.memory_space<vmem>>, vector<16x1xi32>
    %38 = vector.broadcast %26 : i32 to vector<16x1xi32>
    %39 = arith.subi %37, %38 : vector<16x1xi32>
    %c0_i32_24 = arith.constant 0 : i32
    %c8_i32_25 = arith.constant 8 : i32
    %40 = vector.broadcast %c0_i32_24 : i32 to vector<16x1xi32>
    %41 = arith.maxsi %40, %39 : vector<16x1xi32>
    %42 = vector.broadcast %c8_i32_25 : i32 to vector<16x1xi32>
    %43 = arith.minsi %42, %41 : vector<16x1xi32>
    %44 = arith.sitofp %43 : vector<16x1xi32> to vector<16x1xf32>
    %c0_26 = arith.constant 0 : index
    %c0_27 = arith.constant 0 : index
    %45 = vector.load %arg18[%c0_26, %c0_27] : memref<16x128xf32, #tpu.memory_space<vmem>>, vector<16x128xf32>
    %46 = arith.mulf %23, %36 : vector<16x256xf32>
    %c0_28 = arith.constant 0 : index
    %c0_29 = arith.constant 0 : index
    %47 = vector.load %arg11[%c0_28, %c0_29] : memref<256x128xf32, #tpu.memory_space<vmem>>, vector<256x128xf32>
    %cst_30 = arith.constant dense<0.000000e+00> : vector<16x128xf32>
    %48 = tpu.matmul %46, %47, %cst_30 {dimension_numbers = #tpu.dot_dimension_numbers<[1], [0], [0], [1], [0, 0, 1, 1], [], []>} : vector<16x256xf32>, vector<256x128xf32>, vector<16x128xf32> -> vector<16x128xf32>
    %cst_31 = arith.constant 2.000000e+00 : f32
    %49 = vector.broadcast %cst_31 : f32 to vector<16x1xf32>
    %50 = arith.mulf %49, %44 : vector<16x1xf32>
    %c0_32 = arith.constant 0 : index
    %c0_33 = arith.constant 0 : index
    %51 = vector.load %arg12[%c0_32, %c0_33] : memref<1x128xf32, #tpu.memory_space<vmem>>, vector<1x128xf32>
    %52 = vector.broadcast %50 : vector<16x1xf32> to vector<16x128xf32>
    %53 = vector.broadcast %51 : vector<1x128xf32> to vector<16x128xf32>
    %54 = arith.mulf %52, %53 : vector<16x128xf32>
    %55 = arith.addf %48, %54 : vector<16x128xf32>
    %56 = arith.addf %45, %55 : vector<16x128xf32>
    %c0_34 = arith.constant 0 : index
    %c0_35 = arith.constant 0 : index
    %57 = vector.load %arg18[%c0_34, %c0_35] : memref<16x128xf32, #tpu.memory_space<vmem>>, vector<16x128xf32>
    tpu.vector_store %arg18[%c0_34, %c0_35], %56 {strides = array<i32>} : memref<16x128xf32, #tpu.memory_space<vmem>>, vector<16x128xf32>,
    %c1_i32 = arith.constant 1 : i32
    %58 = arith.cmpi eq, %arg1, %c1_i32 : i32
    %59 = arith.extui %58 : i1 to i32
    %c0_i32_36 = arith.constant 0 : i32
    %60 = arith.cmpi ne, %59, %c0_i32_36 : i32
    scf.if %60 {
      %c0_37 = arith.constant 0 : index
      %c0_38 = arith.constant 0 : index
      %61 = vector.load %arg18[%c0_37, %c0_38] : memref<16x128xf32, #tpu.memory_space<vmem>>, vector<16x128xf32>
      %c0_39 = arith.constant 0 : index
      %c0_40 = arith.constant 0 : index
      %62 = vector.load %arg13[%c0_39, %c0_40] : memref<128x32xf32, #tpu.memory_space<vmem>>, vector<128x32xf32>
      %cst_41 = arith.constant dense<0.000000e+00> : vector<16x32xf32>
      %63 = tpu.matmul %61, %62, %cst_41 {dimension_numbers = #tpu.dot_dimension_numbers<[1], [0], [0], [1], [0, 0, 1, 1], [], []>} : vector<16x128xf32>, vector<128x32xf32>, vector<16x32xf32> -> vector<16x32xf32>
      %c0_42 = arith.constant 0 : index
      %c0_43 = arith.constant 0 : index
      %64 = vector.load %arg14[%c0_42, %c0_43] : memref<1x32xf32, #tpu.memory_space<vmem>>, vector<1x32xf32>
      %65 = vector.broadcast %64 : vector<1x32xf32> to vector<16x32xf32>
      %66 = arith.addf %63, %65 : vector<16x32xf32>
      %cst_44 = arith.constant 0.000000e+00 : f32
      %67 = vector.broadcast %cst_44 : f32 to vector<16x32xf32>
      %68 = arith.maximumf %66, %67 : vector<16x32xf32>
      %c0_45 = arith.constant 0 : index
      %c0_46 = arith.constant 0 : index
      %69 = vector.load %arg15[%c0_45, %c0_46] : memref<32x128xf32, #tpu.memory_space<vmem>>, vector<32x128xf32>
      %cst_47 = arith.constant dense<0.000000e+00> : vector<16x128xf32>
      %70 = tpu.matmul %68, %69, %cst_47 {dimension_numbers = #tpu.dot_dimension_numbers<[1], [0], [0], [1], [0, 0, 1, 1], [], []>} : vector<16x32xf32>, vector<32x128xf32>, vector<16x128xf32> -> vector<16x128xf32>
      %c0_48 = arith.constant 0 : index
      %c0_49 = arith.constant 0 : index
      %71 = vector.load %arg16[%c0_48, %c0_49] : memref<1x128xf32, #tpu.memory_space<vmem>>, vector<1x128xf32>
      %72 = vector.broadcast %71 : vector<1x128xf32> to vector<16x128xf32>
      %73 = arith.addf %70, %72 : vector<16x128xf32>
      %c0_50 = arith.constant 0 : index
      %c0_51 = arith.constant 0 : index
      %c0_52 = arith.constant 0 : index
      %74 = vector.load %arg17[%c0_50, %c0_51, %c0_52] : memref<1x16x128xf32, #tpu.memory_space<vmem>>, vector<1x16x128xf32>
      %75 = vector.shape_cast %74 : vector<1x16x128xf32> to vector<16x128xf32>
      %76 = vector.shape_cast %73 : vector<16x128xf32> to vector<1x16x128xf32>
      tpu.vector_store %arg17[%c0_50, %c0_51, %c0_52], %76 {strides = array<i32>} : memref<1x16x128xf32, #tpu.memory_space<vmem>>, vector<1x16x128xf32>,
    } else {
    }
    return
  }
  func.func @transform_0(%arg0: i32, %arg1: i32) -> (i32, i32) {
    %c0_i32 = arith.constant 0 : i32
    %c0_i32_0 = arith.constant 0 : i32
    %c0_i32_1 = arith.constant 0 : i32
    return %c0_i32, %c0_i32_0 : i32, i32
  }
  func.func @transform_1(%arg0: i32, %arg1: i32) -> (i32, i32, i32) {
    %c2_i32 = arith.constant 2 : i32
    %0 = arith.muli %arg0, %c2_i32 : i32
    %1 = arith.addi %0, %arg1 : i32
    %c0_i32 = arith.constant 0 : i32
    %c0_i32_0 = arith.constant 0 : i32
    %c0_i32_1 = arith.constant 0 : i32
    return %1, %c0_i32, %c0_i32_0 : i32, i32, i32
  }
  func.func @transform_2(%arg0: i32, %arg1: i32) -> (i32, i32) {
    %c0_i32 = arith.constant 0 : i32
    %c0_i32_0 = arith.constant 0 : i32
    %c0_i32_1 = arith.constant 0 : i32
    return %c0_i32, %c0_i32_0 : i32, i32
  }
  func.func @transform_3(%arg0: i32, %arg1: i32) -> (i32, i32) {
    %c0_i32 = arith.constant 0 : i32
    %c0_i32_0 = arith.constant 0 : i32
    %c0_i32_1 = arith.constant 0 : i32
    return %c0_i32, %c0_i32_0 : i32, i32
  }
  func.func @transform_4(%arg0: i32, %arg1: i32) -> (i32, i32) {
    %c0_i32 = arith.constant 0 : i32
    %c0_i32_0 = arith.constant 0 : i32
    %c0_i32_1 = arith.constant 0 : i32
    return %c0_i32, %c0_i32_0 : i32, i32
  }
  func.func @transform_5(%arg0: i32, %arg1: i32) -> (i32, i32) {
    %c0_i32 = arith.constant 0 : i32
    %c0_i32_0 = arith.constant 0 : i32
    %c0_i32_1 = arith.constant 0 : i32
    return %c0_i32, %c0_i32_0 : i32, i32
  }
  func.func @transform_6(%arg0: i32, %arg1: i32) -> (i32, i32) {
    %c0_i32 = arith.constant 0 : i32
    %c0_i32_0 = arith.constant 0 : i32
    %c0_i32_1 = arith.constant 0 : i32
    return %c0_i32, %c0_i32_0 : i32, i32
  }
  func.func @transform_7(%arg0: i32, %arg1: i32) -> (i32, i32) {
    %c0_i32 = arith.constant 0 : i32
    %c0_i32_0 = arith.constant 0 : i32
    %c0_i32_1 = arith.constant 0 : i32
    return %c0_i32, %c0_i32_0 : i32, i32
  }
  func.func @transform_8(%arg0: i32, %arg1: i32) -> (i32, i32) {
    %c0_i32 = arith.constant 0 : i32
    %c0_i32_0 = arith.constant 0 : i32
    %c0_i32_1 = arith.constant 0 : i32
    return %c0_i32, %c0_i32_0 : i32, i32
  }
  func.func @transform_9(%arg0: i32, %arg1: i32) -> (i32, i32) {
    %c0_i32 = arith.constant 0 : i32
    %c0_i32_0 = arith.constant 0 : i32
    %c0_i32_1 = arith.constant 0 : i32
    return %c0_i32, %c0_i32_0 : i32, i32
  }
  func.func @transform_10(%arg0: i32, %arg1: i32) -> (i32, i32) {
    %c0_i32 = arith.constant 0 : i32
    %c0_i32_0 = arith.constant 0 : i32
    %c0_i32_1 = arith.constant 0 : i32
    return %c0_i32, %c0_i32_0 : i32, i32
  }
  func.func @transform_11(%arg0: i32, %arg1: i32) -> (i32, i32) {
    %c0_i32 = arith.constant 0 : i32
    %c0_i32_0 = arith.constant 0 : i32
    %c0_i32_1 = arith.constant 0 : i32
    return %c0_i32, %c0_i32_0 : i32, i32
  }
  func.func @transform_12(%arg0: i32, %arg1: i32) -> (i32, i32) {
    %c0_i32 = arith.constant 0 : i32
    %c0_i32_0 = arith.constant 0 : i32
    %c0_i32_1 = arith.constant 0 : i32
    return %c0_i32, %c0_i32_0 : i32, i32
  }
  func.func @transform_13(%arg0: i32, %arg1: i32) -> (i32, i32) {
    %c0_i32 = arith.constant 0 : i32
    %c0_i32_0 = arith.constant 0 : i32
    %c0_i32_1 = arith.constant 0 : i32
    return %c0_i32, %c0_i32_0 : i32, i32
  }
  func.func @transform_14(%arg0: i32, %arg1: i32) -> (i32, i32) {
    %c0_i32 = arith.constant 0 : i32
    %c0_i32_0 = arith.constant 0 : i32
    %c0_i32_1 = arith.constant 0 : i32
    return %c0_i32, %c0_i32_0 : i32, i32
  }
  func.func @transform_15(%arg0: i32, %arg1: i32) -> (i32, i32, i32) {
    %c0_i32 = arith.constant 0 : i32
    %c0_i32_0 = arith.constant 0 : i32
    %c0_i32_1 = arith.constant 0 : i32
    return %arg0, %c0_i32, %c0_i32_0 : i32, i32, i32
  }
}

</mosaic_0001>

<llo_original>
// kernel: tpu_custom_call.1
$region0: #{tpu_custom_call.1}
  #allocation0 [shape = 'u32[]', space=smem, size = 0x4, offset = 0x4, fixed_abs, tag = 'smem constant byte address 0x4 - core index']
  #allocation1 [shape = 'u32[144,128]{1,0:T(1,128)}', space=vmem, size = 0x12000, scoped, tag = 'internal scratch']
  #allocation2 [shape = 'f32[16,128]{1,0:T(8,128)}', space=vmem, size = 0x2000, scoped, tag = 'scratch operand']
  #allocation3 [shape = 'f32[16,256]{1,0:T(8,128)}', space=vmem, size = 0x4000, scoped, tag = 'scratch operand']
  %s0 = inlined_call_operand.vmem [shape: s32[16,1], index: 0, kind: input, shape index: {}]
  %s1 = inlined_call_operand.vmem [shape: f32[2,16,32], index: 1, kind: input, shape index: {}]
  %s2 = inlined_call_operand.vmem [shape: bf16[16,16], index: 2, kind: input, shape index: {}]
  %s3 = inlined_call_operand.vmem [shape: f32[32,256], index: 3, kind: input, shape index: {}]
  %s4 = inlined_call_operand.vmem [shape: f32[1,256], index: 4, kind: input, shape index: {}]
  %s5 = inlined_call_operand.hbm [shape: f32[256,256], index: 5, kind: input, shape index: {}]
  %s6 = inlined_call_operand.vmem [shape: f32[1,256], index: 6, kind: input, shape index: {}]
  %s7 = inlined_call_operand.hbm [shape: f32[256,256], index: 7, kind: input, shape index: {}]
  %s8 = inlined_call_operand.vmem [shape: f32[1,256], index: 8, kind: input, shape index: {}]
  %s9 = inlined_call_operand.hbm [shape: f32[256,128], index: 9, kind: input, shape index: {}]
  %s10 = inlined_call_operand.vmem [shape: f32[1,128], index: 10, kind: input, shape index: {}]
  %s11 = inlined_call_operand.vmem [shape: f32[128,32], index: 11, kind: input, shape index: {}]
  %s12 = inlined_call_operand.vmem [shape: f32[1,32], index: 12, kind: input, shape index: {}]
  %s13 = inlined_call_operand.vmem [shape: f32[32,128], index: 13, kind: input, shape index: {}]
  %s14 = inlined_call_operand.vmem [shape: f32[1,128], index: 14, kind: input, shape index: {}]
  %s15 = inlined_call_operand.hbm [shape: f32[1,16,128], index: 15, kind: output, shape index: {}]
  %s16 = sld [smem:[#allocation0]]
  $region113: #{tpu_custom_call.1} parent=0
    _
  %s18 = ssub.s32 1, %s16
  %s19 = scalar_select 0, %s18, %s16
  $region1: #{tpu_custom_call.1} parent=0
    #allocation4 [shape = 'u8[262144]{0}', space=vmem, size = 0x40000, scoped, tag = 'input window, operand 5, single buffered']
    #allocation5 [shape = 's32[2]{0}', space=sflag, size = 0x8, scoped, tag = 'scoped memory for tpu_custom_call.1']
    #allocation6 [shape = 's32[2]{0}', space=sflag, size = 0x8, scoped, tag = 'scoped memory for tpu_custom_call.1']
    #allocation7 [shape = 'u8[262144]{0}', space=vmem, size = 0x40000, scoped, tag = 'input window, operand 7, single buffered']
    #allocation8 [shape = 's32[1]{0}', space=sflag, size = 0x4, scoped, tag = 'scoped memory for tpu_custom_call.1']
    #allocation9 [shape = 'u8[131072]{0}', space=vmem, size = 0x20000, scoped, tag = 'input window, operand 9, single buffered']
    #allocation10 [shape = 'u8[8192]{0}', space=vmem, size = 0x2000, scoped, tag = 'output window, operand 0, single buffered']
    %20 = vsyncpa [#allocation5], 0
    %21 = vsyncpa [#allocation8], 0
    %22 = vsyncpa [#allocation6], 0
    loop: start=0, step=1, limit=4
    $region2: #{tpu_custom_call.1} parent=1 // loop_pre_header
      _
    $region3: #{tpu_custom_call.1} parent=1 // loop_header
      %s24 = sphi 0, %s28
      %p25 = scmp.ge.s32.totalorder %s24, 4
      %s31 = sphi 0, %s43
      %s32 = sphi 0, %s39
      %s33 = sphi 0, %s31
      %s34 = sphi 0, %s32
      %s35 = sphi 0, %s33
      %s36 = sphi 0, %s34
      %s44 = sphi 0, %s44
      %s46 = sphi 0, %s44
      %s47 = sphi 0, %s46
      %s61 = sphi 0, %s47
      %s71 = sphi 0, %s73
      %s74 = sphi 0, %s71
      %s75 = sphi 0, %s74
      %s91 = sphi 0, %s75
      %s95 = sphi 0, %s95
      %s97 = sphi 0, %s95
      %s98 = sphi 0, %s97
      %s112 = sphi 0, %s98
      %s116 = sphi 0, %s116
      %s118 = sphi 0, %s116
      %s119 = sphi 0, %s118
      %s133 = sphi 0, %s119
      %s137 = sphi 0, %s137
      %s139 = sphi 0, %s137
      %s140 = sphi 0, %s139
      %s154 = sphi 0, %s140
      %s158 = sphi 0, %s158
      %s160 = sphi 0, %s158
      %s161 = sphi 0, %s160
      %s175 = sphi 0, %s161
      %s179 = sphi 0, %s179
      %s181 = sphi 0, %s179
      %s182 = sphi 0, %s181
      %s196 = sphi 0, %s182
      %s200 = sphi 0, %s200
      %s202 = sphi 0, %s200
      %s203 = sphi 0, %s202
      %s217 = sphi 0, %s203
      %s221 = sphi 0, %s221
      %s223 = sphi 0, %s221
      %s224 = sphi 0, %s223
      %s238 = sphi 0, %s224
      %s242 = sphi 0, %s242
      %s244 = sphi 0, %s242
      %s245 = sphi 0, %s244
      %s259 = sphi 0, %s245
      %s263 = sphi 0, %s263
      %s265 = sphi 0, %s263
      %s266 = sphi 0, %s265
      %s280 = sphi 0, %s266
      %s284 = sphi 0, %s284
      %s286 = sphi 0, %s284
      %s287 = sphi 0, %s286
      %s301 = sphi 0, %s287
      %s305 = sphi 0, %s305
      %s307 = sphi 0, %s305
      %s308 = sphi 0, %s307
      %s322 = sphi 0, %s308
      %s326 = sphi 0, %s326
      %s328 = sphi 0, %s326
      %s329 = sphi 0, %s328
      %s343 = sphi 0, %s329
      %s347 = sphi 0, %s347
      %s349 = sphi 0, %s347
      %s350 = sphi 0, %s349
      %s364 = sphi 0, %s350
      %s370 = sphi 0, %s372
      %s373 = sphi 0, %s370
      %s374 = sphi 0, %s373
      %s390 = sphi 0, %s374
    $region4: #{tpu_custom_call.1} parent=1 // loop_header_branch
      %27 = sbr.rel (%p25) target = $region8
    $region5: #{tpu_custom_call.1} parent=1 // loop_body
      %s29 = ssub.s32 %s24, 1
      %s30 = ssub.s32 %s24, 2
      %s37 = sadd.s32 1, %s32
      %p38 = scmp.ge.s32.totalorder %s37, 2
      %s39 = scalar_select %p38, 0, %s37
      %s40 = sadd.s32 1, %s31
      %s41 = scalar_select %p38, %s40, %s31
      %p42 = scmp.ge.s32.totalorder %s41, 1
      %s43 = scalar_select %p42, 0, %s41
      %s45 = sadd.s32 %s44, 1
      %p48 = scmp.eq.s32.totalorder %s24, 1
      %p49 = scmp.ne.s32.totalorder %s44, %s46
      %p50 = scmp.eq.s32.totalorder %s24, 0
      %p51 = por %p49, %p50
      %p52 = scmp.ne.s32.totalorder %s44, %s46
      %p53 = scmp.eq.s32.totalorder %s29, 1
      %p54 = por %p52, %p53
      %p55 = scmp.ne.s32.totalorder %s46, %s47
      %p56 = scmp.eq.s32.totalorder %s29, 0
      %p57 = por %p55, %p56
      %p58 = scmp.ne.s32.totalorder %s46, %s47
      %p59 = scmp.eq.s32.totalorder %s30, 1
      %p60 = por %p58, %p59
      %p62 = scmp.ne.s32.totalorder %s47, %s61
      %p63 = scmp.eq.s32.totalorder %s30, 0
      %p64 = por %p62, %p63
      %s65 = smul.u32 %s31, 2
      %s66 = sadd.s32 %s65, %s32
      %s67 = smul.u32 %s43, 2
      %s68 = sadd.s32 %s67, %s39
      %s69 = ssub.s32 %s66, %s68
      %p70 = scmp.eq.s32.totalorder %s69, 0
      %s72 = sadd.s32 %s71, 1
      %s73 = scalar_select %p70, %s71, %s72
      %p76 = pneg %p70
      %p77 = scmp.eq.s32.totalorder %s24, 1
      %p78 = por %p76, %p77
      %p79 = scmp.ne.s32.totalorder %s71, %s74
      %p80 = scmp.eq.s32.totalorder %s24, 0
      %p81 = por %p79, %p80
      %p82 = scmp.ne.s32.totalorder %s71, %s74
      %p83 = scmp.eq.s32.totalorder %s29, 1
      %p84 = por %p82, %p83
      %p85 = scmp.ne.s32.totalorder %s74, %s75
      %p86 = scmp.eq.s32.totalorder %s29, 0
      %p87 = por %p85, %p86
      %p88 = scmp.ne.s32.totalorder %s74, %s75
      %p89 = scmp.eq.s32.totalorder %s30, 1
      %p90 = por %p88, %p89
      %p92 = scmp.ne.s32.totalorder %s75, %s91
      %p93 = scmp.eq.s32.totalorder %s30, 0
      %p94 = por %p92, %p93
      %s96 = sadd.s32 %s95, 1
      %p99 = scmp.eq.s32.totalorder %s24, 1
      %p100 = scmp.ne.s32.totalorder %s95, %s97
      %p101 = scmp.eq.s32.totalorder %s24, 0
      %p102 = por %p100, %p101
      %p103 = scmp.ne.s32.totalorder %s95, %s97
      %p104 = scmp.eq.s32.totalorder %s29, 1
      %p105 = por %p103, %p104
      %p106 = scmp.ne.s32.totalorder %s97, %s98
      %p107 = scmp.eq.s32.totalorder %s29, 0
      %p108 = por %p106, %p107
      %p109 = scmp.ne.s32.totalorder %s97, %s98
      %p110 = scmp.eq.s32.totalorder %s30, 1
      %p111 = por %p109, %p110
      %p113 = scmp.ne.s32.totalorder %s98, %s112
      %p114 = scmp.eq.s32.totalorder %s30, 0
      %p115 = por %p113, %p114
      %s117 = sadd.s32 %s116, 1
      %p120 = scmp.eq.s32.totalorder %s24, 1
      %p121 = scmp.ne.s32.totalorder %s116, %s118
      %p122 = scmp.eq.s32.totalorder %s24, 0
      %p123 = por %p121, %p122
      %p124 = scmp.ne.s32.totalorder %s116, %s118
      %p125 = scmp.eq.s32.totalorder %s29, 1
      %p126 = por %p124, %p125
      %p127 = scmp.ne.s32.totalorder %s118, %s119
      %p128 = scmp.eq.s32.totalorder %s29, 0
      %p129 = por %p127, %p128
      %p130 = scmp.ne.s32.totalorder %s118, %s119
      %p131 = scmp.eq.s32.totalorder %s30, 1
      %p132 = por %p130, %p131
      %p134 = scmp.ne.s32.totalorder %s119, %s133
      %p135 = scmp.eq.s32.totalorder %s30, 0
      %p136 = por %p134, %p135
      %s138 = sadd.s32 %s137, 1
      %p141 = scmp.eq.s32.totalorder %s24, 1
      %p142 = scmp.ne.s32.totalorder %s137, %s139
      %p143 = scmp.eq.s32.totalorder %s24, 0
      %p144 = por %p142, %p143
      %p145 = scmp.ne.s32.totalorder %s137, %s139
      %p146 = scmp.eq.s32.totalorder %s29, 1
      %p147 = por %p145, %p146
      %p148 = scmp.ne.s32.totalorder %s139, %s140
      %p149 = scmp.eq.s32.totalorder %s29, 0
      %p150 = por %p148, %p149
      %p151 = scmp.ne.s32.totalorder %s139, %s140
      %p152 = scmp.eq.s32.totalorder %s30, 1
      %p153 = por %p151, %p152
      %p155 = scmp.ne.s32.totalorder %s140, %s154
      %p156 = scmp.eq.s32.totalorder %s30, 0
      %p157 = por %p155, %p156
      %s159 = sadd.s32 %s158, 1
      %p162 = scmp.eq.s32.totalorder %s24, 1
      %p163 = scmp.ne.s32.totalorder %s158, %s160
      %p164 = scmp.eq.s32.totalorder %s24, 0
      %p165 = por %p163, %p164
      %p166 = scmp.ne.s32.totalorder %s158, %s160
      %p167 = scmp.eq.s32.totalorder %s29, 1
      %p168 = por %p166, %p167
      %p169 = scmp.ne.s32.totalorder %s160, %s161
      %p170 = scmp.eq.s32.totalorder %s29, 0
      %p171 = por %p169, %p170
      %p172 = scmp.ne.s32.totalorder %s160, %s161
      %p173 = scmp.eq.s32.totalorder %s30, 1
      %p174 = por %p172, %p173
      %p176 = scmp.ne.s32.totalorder %s161, %s175
      %p177 = scmp.eq.s32.totalorder %s30, 0
      %p178 = por %p176, %p177
      %s180 = sadd.s32 %s179, 1
      %p183 = scmp.eq.s32.totalorder %s24, 1
      %p184 = scmp.ne.s32.totalorder %s179, %s181
      %p185 = scmp.eq.s32.totalorder %s24, 0
      %p186 = por %p184, %p185
      %p187 = scmp.ne.s32.totalorder %s179, %s181
      %p188 = scmp.eq.s32.totalorder %s29, 1
      %p189 = por %p187, %p188
      %p190 = scmp.ne.s32.totalorder %s181, %s182
      %p191 = scmp.eq.s32.totalorder %s29, 0
      %p192 = por %p190, %p191
      %p193 = scmp.ne.s32.totalorder %s181, %s182
      %p194 = scmp.eq.s32.totalorder %s30, 1
      %p195 = por %p193, %p194
      %p197 = scmp.ne.s32.totalorder %s182, %s196
      %p198 = scmp.eq.s32.totalorder %s30, 0
      %p199 = por %p197, %p198
      %s201 = sadd.s32 %s200, 1
      %p204 = scmp.eq.s32.totalorder %s24, 1
      %p205 = scmp.ne.s32.totalorder %s200, %s202
      %p206 = scmp.eq.s32.totalorder %s24, 0
      %p207 = por %p205, %p206
      %p208 = scmp.ne.s32.totalorder %s200, %s202
      %p209 = scmp.eq.s32.totalorder %s29, 1
      %p210 = por %p208, %p209
      %p211 = scmp.ne.s32.totalorder %s202, %s203
      %p212 = scmp.eq.s32.totalorder %s29, 0
      %p213 = por %p211, %p212
      %p214 = scmp.ne.s32.totalorder %s202, %s203
      %p215 = scmp.eq.s32.totalorder %s30, 1
      %p216 = por %p214, %p215
      %p218 = scmp.ne.s32.totalorder %s203, %s217
      %p219 = scmp.eq.s32.totalorder %s30, 0
      %p220 = por %p218, %p219
      %s222 = sadd.s32 %s221, 1
      %p225 = scmp.eq.s32.totalorder %s24, 1
      %p226 = scmp.ne.s32.totalorder %s221, %s223
      %p227 = scmp.eq.s32.totalorder %s24, 0
      %p228 = por %p226, %p227
      %p229 = scmp.ne.s32.totalorder %s221, %s223
      %p230 = scmp.eq.s32.totalorder %s29, 1
      %p231 = por %p229, %p230
      %p232 = scmp.ne.s32.totalorder %s223, %s224
      %p233 = scmp.eq.s32.totalorder %s29, 0
      %p234 = por %p232, %p233
      %p235 = scmp.ne.s32.totalorder %s223, %s224
      %p236 = scmp.eq.s32.totalorder %s30, 1
      %p237 = por %p235, %p236
      %p239 = scmp.ne.s32.totalorder %s224, %s238
      %p240 = scmp.eq.s32.totalorder %s30, 0
      %p241 = por %p239, %p240
      %s243 = sadd.s32 %s242, 1
      %p246 = scmp.eq.s32.totalorder %s24, 1
      %p247 = scmp.ne.s32.totalorder %s242, %s244
      %p248 = scmp.eq.s32.totalorder %s24, 0
      %p249 = por %p247, %p248
      %p250 = scmp.ne.s32.totalorder %s242, %s244
      %p251 = scmp.eq.s32.totalorder %s29, 1
      %p252 = por %p250, %p251
      %p253 = scmp.ne.s32.totalorder %s244, %s245
      %p254 = scmp.eq.s32.totalorder %s29, 0
      %p255 = por %p253, %p254
      %p256 = scmp.ne.s32.totalorder %s244, %s245
      %p257 = scmp.eq.s32.totalorder %s30, 1
      %p258 = por %p256, %p257
      %p260 = scmp.ne.s32.totalorder %s245, %s259
      %p261 = scmp.eq.s32.totalorder %s30, 0
      %p262 = por %p260, %p261
      %s264 = sadd.s32 %s263, 1
      %p267 = scmp.eq.s32.totalorder %s24, 1
      %p268 = scmp.ne.s32.totalorder %s263, %s265
      %p269 = scmp.eq.s32.totalorder %s24, 0
      %p270 = por %p268, %p269
      %p271 = scmp.ne.s32.totalorder %s263, %s265
      %p272 = scmp.eq.s32.totalorder %s29, 1
      %p273 = por %p271, %p272
      %p274 = scmp.ne.s32.totalorder %s265, %s266
      %p275 = scmp.eq.s32.totalorder %s29, 0
      %p276 = por %p274, %p275
      %p277 = scmp.ne.s32.totalorder %s265, %s266
      %p278 = scmp.eq.s32.totalorder %s30, 1
      %p279 = por %p277, %p278
      %p281 = scmp.ne.s32.totalorder %s266, %s280
      %p282 = scmp.eq.s32.totalorder %s30, 0
      %p283 = por %p281, %p282
      %s285 = sadd.s32 %s284, 1
      %p288 = scmp.eq.s32.totalorder %s24, 1
      %p289 = scmp.ne.s32.totalorder %s284, %s286
      %p290 = scmp.eq.s32.totalorder %s24, 0
      %p291 = por %p289, %p290
      %p292 = scmp.ne.s32.totalorder %s284, %s286
      %p293 = scmp.eq.s32.totalorder %s29, 1
      %p294 = por %p292, %p293
      %p295 = scmp.ne.s32.totalorder %s286, %s287
      %p296 = scmp.eq.s32.totalorder %s29, 0
      %p297 = por %p295, %p296
      %p298 = scmp.ne.s32.totalorder %s286, %s287
      %p299 = scmp.eq.s32.totalorder %s30, 1
      %p300 = por %p298, %p299
      %p302 = scmp.ne.s32.totalorder %s287, %s301
      %p303 = scmp.eq.s32.totalorder %s30, 0
      %p304 = por %p302, %p303
      %s306 = sadd.s32 %s305, 1
      %p309 = scmp.eq.s32.totalorder %s24, 1
      %p310 = scmp.ne.s32.totalorder %s305, %s307
      %p311 = scmp.eq.s32.totalorder %s24, 0
      %p312 = por %p310, %p311
      %p313 = scmp.ne.s32.totalorder %s305, %s307
      %p314 = scmp.eq.s32.totalorder %s29, 1
      %p315 = por %p313, %p314
      %p316 = scmp.ne.s32.totalorder %s307, %s308
      %p317 = scmp.eq.s32.totalorder %s29, 0
      %p318 = por %p316, %p317
      %p319 = scmp.ne.s32.totalorder %s307, %s308
      %p320 = scmp.eq.s32.totalorder %s30, 1
      %p321 = por %p319, %p320
      %p323 = scmp.ne.s32.totalorder %s308, %s322
      %p324 = scmp.eq.s32.totalorder %s30, 0
      %p325 = por %p323, %p324
      %s327 = sadd.s32 %s326, 1
      %p330 = scmp.eq.s32.totalorder %s24, 1
      %p331 = scmp.ne.s32.totalorder %s326, %s328
      %p332 = scmp.eq.s32.totalorder %s24, 0
      %p333 = por %p331, %p332
      %p334 = scmp.ne.s32.totalorder %s326, %s328
      %p335 = scmp.eq.s32.totalorder %s29, 1
      %p336 = por %p334, %p335
      %p337 = scmp.ne.s32.totalorder %s328, %s329
      %p338 = scmp.eq.s32.totalorder %s29, 0
      %p339 = por %p337, %p338
      %p340 = scmp.ne.s32.totalorder %s328, %s329
      %p341 = scmp.eq.s32.totalorder %s30, 1
      %p342 = por %p340, %p341
      %p344 = scmp.ne.s32.totalorder %s329, %s343
      %p345 = scmp.eq.s32.totalorder %s30, 0
      %p346 = por %p344, %p345
      %s348 = sadd.s32 %s347, 1
      %p351 = scmp.eq.s32.totalorder %s24, 1
      %p352 = scmp.ne.s32.totalorder %s347, %s349
      %p353 = scmp.eq.s32.totalorder %s24, 0
      %p354 = por %p352, %p353
      %p355 = scmp.ne.s32.totalorder %s347, %s349
      %p356 = scmp.eq.s32.totalorder %s29, 1
      %p357 = por %p355, %p356
      %p358 = scmp.ne.s32.totalorder %s349, %s350
      %p359 = scmp.eq.s32.totalorder %s29, 0
      %p360 = por %p358, %p359
      %p361 = scmp.ne.s32.totalorder %s349, %s350
      %p362 = scmp.eq.s32.totalorder %s30, 1
      %p363 = por %p361, %p362
      %p365 = scmp.ne.s32.totalorder %s350, %s364
      %p366 = scmp.eq.s32.totalorder %s30, 0
      %p367 = por %p365, %p366
      %s368 = ssub.s32 %s31, %s43
      %p369 = scmp.eq.s32.totalorder %s368, 0
      %s371 = sadd.s32 %s370, 1
      %s372 = scalar_select %p369, %s370, %s371
      %p375 = pneg %p369
      %p376 = scmp.eq.s32.totalorder %s24, 1
      %p377 = por %p375, %p376
      %p378 = scmp.ne.s32.totalorder %s370, %s373
      %p379 = scmp.eq.s32.totalorder %s24, 0
      %p380 = por %p378, %p379
      %p381 = scmp.ne.s32.totalorder %s370, %s373
      %p382 = scmp.eq.s32.totalorder %s29, 1
      %p383 = por %p381, %p382
      %p384 = scmp.ne.s32.totalorder %s373, %s374
      %p385 = scmp.eq.s32.totalorder %s29, 0
      %p386 = por %p384, %p385
      %p387 = scmp.ne.s32.totalorder %s373, %s374
      %p388 = scmp.eq.s32.totalorder %s30, 1
      %p389 = por %p387, %p388
      %p391 = scmp.ne.s32.totalorder %s374, %s390
      %p392 = scmp.eq.s32.totalorder %s30, 0
      %p393 = por %p391, %p392
      %p394 = scmp.le.s32.totalorder 1, %s24
      %p395 = scmp.lt.s32.totalorder %s24, 3
      %p396 = pnand %p394, %p395
      %p397 = pneg %p396
      // Predicated region
      $region9: #{tpu_custom_call.1} parent=5 // pred_check
        _
      $region10: #{tpu_custom_call.1} parent=5 // pred_check_branch
        %399 = sbr.rel (%p396) target = $region12
      $region11: #{tpu_custom_call.1} parent=5 // pred_region
        %s400 = ssub.s32 %s24, 1
        // Predicated region
        $region13: #{tpu_custom_call.1} parent=11 // pred_check
          %p401 = pneg %p57
        $region14: #{tpu_custom_call.1} parent=11 // pred_check_branch
          %403 = sbr.rel (%p401) target = $region16
        $region15: #{tpu_custom_call.1} parent=11 // pred_region
          _
        $region16: #{tpu_custom_call.1} parent=11 // pred_fallthru
          _
        // Predicated region
        $region17: #{tpu_custom_call.1} parent=11 // pred_check
          %p404 = pneg %p108
        $region18: #{tpu_custom_call.1} parent=11 // pred_check_branch
          %406 = sbr.rel (%p404) target = $region20
        $region19: #{tpu_custom_call.1} parent=11 // pred_region
          _
        $region20: #{tpu_custom_call.1} parent=11 // pred_fallthru
          _
        // Predicated region
        $region21: #{tpu_custom_call.1} parent=11 // pred_check
          %p407 = pneg %p129
        $region22: #{tpu_custom_call.1} parent=11 // pred_check_branch
          %409 = sbr.rel (%p407) target = $region24
        $region23: #{tpu_custom_call.1} parent=11 // pred_region
          _
        $region24: #{tpu_custom_call.1} parent=11 // pred_fallthru
          _
        // Predicated region
        $region25: #{tpu_custom_call.1} parent=11 // pred_check
          %p410 = pneg %p150
        $region26: #{tpu_custom_call.1} parent=11 // pred_check_branch
          %412 = sbr.rel (%p410) target = $region28
        $region27: #{tpu_custom_call.1} parent=11 // pred_region
          _
        $region28: #{tpu_custom_call.1} parent=11 // pred_fallthru
          _
        // Predicated region
        $region29: #{tpu_custom_call.1} parent=11 // pred_check
          %p413 = pneg %p171
        $region30: #{tpu_custom_call.1} parent=11 // pred_check_branch
          %415 = sbr.rel (%p413) target = $region32
        $region31: #{tpu_custom_call.1} parent=11 // pred_region
          %s417 = ssub.s32 8192, 8192
          %418 = vsyncadd [#allocation5], %s417
          %s419 = sshll.u32 [#allocation4], 4
          %s420 = int_to_ptr.vmem [resolvable:$true] %s419
          %425 = dma.hbm_to_vmem [thread:$0]  %s5, 8192, %s420, [#allocation5], 256, 256, 16
        $region32: #{tpu_custom_call.1} parent=11 // pred_fallthru
          _
        // Predicated region
        $region33: #{tpu_custom_call.1} parent=11 // pred_check
          %p426 = pneg %p192
        $region34: #{tpu_custom_call.1} parent=11 // pred_check_branch
          %428 = sbr.rel (%p426) target = $region36
        $region35: #{tpu_custom_call.1} parent=11 // pred_region
          _
        $region36: #{tpu_custom_call.1} parent=11 // pred_fallthru
          _
        // Predicated region
        $region37: #{tpu_custom_call.1} parent=11 // pred_check
          %p429 = pneg %p213
        $region38: #{tpu_custom_call.1} parent=11 // pred_check_branch
          %431 = sbr.rel (%p429) target = $region40
        $region39: #{tpu_custom_call.1} parent=11 // pred_region
          %s433 = ssub.s32 8192, 8192
          %434 = vsyncadd [#allocation8], %s433
          %s435 = sshll.u32 [#allocation7], 4
          %s436 = int_to_ptr.vmem [resolvable:$true] %s435
          %441 = dma.hbm_to_vmem [thread:$0]  %s7, 8192, %s436, [#allocation8], 256, 256, 16
        $region40: #{tpu_custom_call.1} parent=11 // pred_fallthru
          _
        // Predicated region
        $region41: #{tpu_custom_call.1} parent=11 // pred_check
          %p442 = pneg %p234
        $region42: #{tpu_custom_call.1} parent=11 // pred_check_branch
          %444 = sbr.rel (%p442) target = $region44
        $region43: #{tpu_custom_call.1} parent=11 // pred_region
          _
        $region44: #{tpu_custom_call.1} parent=11 // pred_fallthru
          _
        // Predicated region
        $region45: #{tpu_custom_call.1} parent=11 // pred_check
          %p445 = pneg %p255
        $region46: #{tpu_custom_call.1} parent=11 // pred_check_branch
          %447 = sbr.rel (%p445) target = $region48
        $region47: #{tpu_custom_call.1} parent=11 // pred_region
          %s449 = ssub.s32 4096, 4096
          %450 = vsyncadd [#allocation8], %s449
          %s451 = sshll.u32 [#allocation9], 4
          %s452 = int_to_ptr.vmem [resolvable:$true] %s451
          %457 = dma.hbm_to_vmem [thread:$0]  %s9, 4096, %s452, [#allocation8], 128, 128, 8
        $region48: #{tpu_custom_call.1} parent=11 // pred_fallthru
          _
        // Predicated region
        $region49: #{tpu_custom_call.1} parent=11 // pred_check
          %p458 = pneg %p276
        $region50: #{tpu_custom_call.1} parent=11 // pred_check_branch
          %460 = sbr.rel (%p458) target = $region52
        $region51: #{tpu_custom_call.1} parent=11 // pred_region
          _
        $region52: #{tpu_custom_call.1} parent=11 // pred_fallthru
          _
        // Predicated region
        $region53: #{tpu_custom_call.1} parent=11 // pred_check
          %p461 = pneg %p297
        $region54: #{tpu_custom_call.1} parent=11 // pred_check_branch
          %463 = sbr.rel (%p461) target = $region56
        $region55: #{tpu_custom_call.1} parent=11 // pred_region
          _
        $region56: #{tpu_custom_call.1} parent=11 // pred_fallthru
          _
        // Predicated region
        $region57: #{tpu_custom_call.1} parent=11 // pred_check
          %p464 = pneg %p318
        $region58: #{tpu_custom_call.1} parent=11 // pred_check_branch
          %466 = sbr.rel (%p464) target = $region60
        $region59: #{tpu_custom_call.1} parent=11 // pred_region
          _
        $region60: #{tpu_custom_call.1} parent=11 // pred_fallthru
          _
        // Predicated region
        $region61: #{tpu_custom_call.1} parent=11 // pred_check
          %p467 = pneg %p339
        $region62: #{tpu_custom_call.1} parent=11 // pred_check_branch
          %469 = sbr.rel (%p467) target = $region64
        $region63: #{tpu_custom_call.1} parent=11 // pred_region
          _
        $region64: #{tpu_custom_call.1} parent=11 // pred_fallthru
          _
        // Predicated region
        $region65: #{tpu_custom_call.1} parent=11 // pred_check
          %p470 = pneg %p360
        $region66: #{tpu_custom_call.1} parent=11 // pred_check_branch
          %472 = sbr.rel (%p470) target = $region68
        $region67: #{tpu_custom_call.1} parent=11 // pred_region
          _
        $region68: #{tpu_custom_call.1} parent=11 // pred_fallthru
          _
      $region12: #{tpu_custom_call.1} parent=5 // pred_fallthru
        _
      %p473 = scmp.lt.s32.totalorder %s24, 2
      // Predicated region
      $region69: #{tpu_custom_call.1} parent=5 // pred_check
        %p474 = pneg %p473
      $region70: #{tpu_custom_call.1} parent=5 // pred_check_branch
        %476 = sbr.rel (%p474) target = $region72
      $region71: #{tpu_custom_call.1} parent=5 // pred_region
        // Predicated region
        $region73: #{tpu_custom_call.1} parent=71 // pred_check
          %p477 = pneg %p81
        $region74: #{tpu_custom_call.1} parent=71 // pred_check_branch
          %479 = sbr.rel (%p477) target = $region76
        $region75: #{tpu_custom_call.1} parent=71 // pred_region
          %s480 = smul.u32 %s31, 2
          %s481 = sadd.s32 %s480, %s32
          %p482 = scmp.lt.s32.totalorder %s481, 1
          %s483 = scalar_select %p482, %s481, 1
          %s484 = smul.addr %s483, 2
          %s485 = smul.addr %s484, 8
          %s486 = scalar_lea.vmem %s1, %s485
          %s487 = smul.u32 %s31, 2
          %s488 = sadd.s32 %s487, %s32
        $region76: #{tpu_custom_call.1} parent=71 // pred_fallthru
          _
      $region72: #{tpu_custom_call.1} parent=5 // pred_fallthru
        _
      %p489 = scmp.le.s32.totalorder 1, %s24
      %p490 = scmp.lt.s32.totalorder %s24, 3
      %p491 = pnand %p489, %p490
      %p492 = pneg %p491
      // Predicated region
      $region77: #{tpu_custom_call.1} parent=5 // pred_check
        _
      $region78: #{tpu_custom_call.1} parent=5 // pred_check_branch
        %494 = sbr.rel (%p491) target = $region80
      $region79: #{tpu_custom_call.1} parent=5 // pred_region
        %s495 = ssub.s32 %s24, 1
        // Predicated region
        $region81: #{tpu_custom_call.1} parent=79 // pred_check
          %p496 = pneg %p171
        $region82: #{tpu_custom_call.1} parent=79 // pred_check_branch
          %498 = sbr.rel (%p496) target = $region84
        $region83: #{tpu_custom_call.1} parent=79 // pred_region
          %499 = dma.done [#allocation5], 8192
        $region84: #{tpu_custom_call.1} parent=79 // pred_fallthru
          _
        // Predicated region
        $region85: #{tpu_custom_call.1} parent=79 // pred_check
          %p500 = pneg %p213
        $region86: #{tpu_custom_call.1} parent=79 // pred_check_branch
          %502 = sbr.rel (%p500) target = $region88
        $region87: #{tpu_custom_call.1} parent=79 // pred_region
          %503 = dma.done [#allocation8], 8192
        $region88: #{tpu_custom_call.1} parent=79 // pred_fallthru
          _
        // Predicated region
        $region89: #{tpu_custom_call.1} parent=79 // pred_check
          %p504 = pneg %p255
        $region90: #{tpu_custom_call.1} parent=79 // pred_check_branch
          %506 = sbr.rel (%p504) target = $region92
        $region91: #{tpu_custom_call.1} parent=79 // pred_region
          %507 = dma.done [#allocation8], 4096
        $region92: #{tpu_custom_call.1} parent=79 // pred_fallthru
          _
        %p508 = pneg %p57
        %p509 = pneg %p54
        %s510 = smul.u32 %s33, 2
        %s511 = sadd.s32 %s510, %s34
        %p512 = scmp.lt.s32.totalorder %s511, 1
        %s513 = scalar_select %p512, %s511, 1
        %s514 = smul.addr %s513, 2
        %s515 = smul.addr %s514, 8
        %s516 = scalar_lea.vmem %s1, %s515
        %p517 = pneg %p87
        %p518 = pneg %p84
        %p519 = pneg %p108
        %p520 = pneg %p105
        %p521 = pneg %p129
        %p522 = pneg %p126
        %p523 = pneg %p150
        %p524 = pneg %p147
        %p525 = pneg %p171
        %p526 = pneg %p168
        %p527 = pneg %p192
        %p528 = pneg %p189
        %p529 = pneg %p213
        %p530 = pneg %p210
        %p531 = pneg %p234
        %p532 = pneg %p231
        %p533 = pneg %p255
        %p534 = pneg %p252
        %p535 = pneg %p276
        %p536 = pneg %p273
        %p537 = pneg %p297
        %p538 = pneg %p294
        %p539 = pneg %p318
        %p540 = pneg %p315
        %p541 = pneg %p339
        %p542 = pneg %p336
        %p543 = pneg %p360
        %p544 = pneg %p357
        %p545 = pneg %p386
        %p546 = pneg %p383
        %s547 = smul.u32 %s33, 2
        %s548 = sadd.s32 %s547, %s34
        %p549 = scmp.lt.s32.totalorder %s548, 1
        %s550 = scalar_select %p549, %s548, 1
        %s551 = smul.addr %s550, 2
        %s552 = smul.addr %s551, 8
        %s553 = scalar_lea.vmem %s1, %s552
        %s554 = smul.u32 %s33, 2
        %s555 = sadd.s32 %s554, %s34
        %v556 = vld [vmem:[%s2] sm:$0xf]
        %v557 = vld [vmem:[%s2 + $0x4] sm:$0xf]
        %v558 = vunpack.c.l.bf16 %v556
        %v559 = vunpack.c.l.bf16 %v557
        %p560 = scmp.eq.s32.totalorder %s34, 0
        // Predicated region
        $region93: #{tpu_custom_call.1} parent=79 // pred_check
          %p561 = pneg %p560
        $region94: #{tpu_custom_call.1} parent=79 // pred_check_branch
          %563 = sbr.rel (%p561) target = $region96
        $region95: #{tpu_custom_call.1} parent=79 // pred_region
          %564 = vst [vmem:[#allocation2] sm:$0xff] 0.0
          %565 = vst [vmem:[#allocation2 + $0x8] sm:$0xff] 0.0
          %v566 = vld [vmem:[%s4] sm:$0x3]
          %v568 = vlaneseq
          %v569 = vshrl.u32 %v568, 7
          %v570 = vsub.s32 0, %v569
          %v571 = vrot.slane %v566, %v570
          %v572 = vlaneseq
          %v573 = vshrl.u32 %v572, 7
          %v574 = vsub.s32 1, %v573
          %v575 = vrot.slane %v566, %v574
          %vm578 = vcmask 130048
          %v580 = vsel %vm578, %v558, 0
          %v583 = vsel %vm578, %v559, 0
          %585 = vmatprep.subr.mxu0 0.0
          %586 = vmatpush1.msra.mxu0 0.0
          %587 = vmatprep.subr.mxu0 0.0
          %588 = vmatpush1.msra.mxu0 0.0
          %589 = vmatprep.subr.mxu0 0.0
          %590 = vmatpush1.msra.mxu0 0.0
          %591 = vmatprep.subr.mxu0 0.0
          %592 = vmatpush1.msra.mxu0 0.0
          %593 = vmatprep.subr.mxu0 0.0
          %594 = vmatpush1.msra.mxu0 0.0
          %595 = vmatprep.subr.mxu0 0.0
          %596 = vmatpush1.msra.mxu0 0.0
          %597 = vmatprep.subr.mxu0 0.0
          %598 = vmatpush1.msra.mxu0 0.0
          %599 = vmatprep.subr.mxu0 0.0
          %600 = vmatpush1.msra.mxu0 0.0
          %601 = vmatprep.subr.mxu0 0.0
          %602 = vmatpush1.msra.mxu0 0.0
          %603 = vmatprep.subr.mxu0 0.0
          %604 = vmatpush1.msra.mxu0 0.0
          %605 = vmatprep.subr.mxu0 0.0
          %606 = vmatpush1.msra.mxu0 0.0
          %607 = vmatprep.subr.mxu0 0.0
          %608 = vmatpush1.msra.mxu0 0.0
          %609 = vmatprep.subr.mxu0 0.0
          %610 = vmatpush1.msra.mxu0 0.0
          %611 = vmatprep.subr.mxu0 0.0
          %612 = vmatpush1.msra.mxu0 0.0
          %613 = vmatprep.subr.mxu0 %v575
          %614 = vmatpush1.msra.mxu0 %v571
          %615 = vmatprep.subr.mxu0 %v575
          %616 = vmatpush1.msra.mxu0 %v571
          %617 = vmatprep.subr.mxu0 0.0
          %618 = vmatpush2.msra.mxu0 0.0
          %619 = vmatprep.subr.mxu0 0.0
          %620 = vmatpush2.msra.mxu0 0.0
          %621 = vmatprep.subr.mxu0 0.0
          %622 = vmatpush2.msra.mxu0 0.0
          %623 = vmatprep.subr.mxu0 0.0
          %624 = vmatpush2.msra.mxu0 0.0
          %625 = vmatprep.subr.mxu0 0.0
          %626 = vmatpush2.msra.mxu0 0.0
          %627 = vmatprep.subr.mxu0 0.0
          %628 = vmatpush2.msra.mxu0 0.0
          %629 = vmatprep.subr.mxu0 0.0
          %630 = vmatpush2.msra.mxu0 0.0
          %631 = vmatprep.subr.mxu0 0.0
          %632 = vmatpush2.msra.mxu0 0.0
          %633 = vmatprep.subr.mxu0 0.0
          %634 = vmatpush2.msra.mxu0 0.0
          %635 = vmatprep.subr.mxu0 0.0
          %636 = vmatpush2.msra.mxu0 0.0
          %637 = vmatprep.subr.mxu0 0.0
          %638 = vmatpush2.msra.mxu0 0.0
          %639 = vmatprep.subr.mxu0 0.0
          %640 = vmatpush2.msra.mxu0 0.0
          %641 = vmatprep.subr.mxu0 0.0
          %642 = vmatpush2.msra.mxu0 0.0
          %643 = vmatprep.subr.mxu0 0.0
          %644 = vmatpush2.msra.mxu0 0.0
          %645 = vmatprep.subr.mxu0 0.0
          %646 = vmatpush2.msra.mxu0 0.0
          %647 = vmatprep.subr.mxu0 0.0
          %648 = vmatpush2.msra.mxu0 0.0
          %649 = vmatprep.mubr.f32.mxu0 0.0
          %650 = vmatmul.mubr.f32.gmra.mxu0 %v580
          %v651 = vpop.f32.mrf.mxu0
          %v652 = vadd.f32 0.0, %v651
          %v653 = vpop.f32.mrf.mxu0
          %v654 = vadd.f32 0.0, %v653
          %655 = vmatprep.mubr.f32.mxu0 0.0
          %656 = vmatmul.mubr.f32.gmra.mxu0 %v583
          %v657 = vpop.f32.mrf.mxu0
          %v658 = vadd.f32 0.0, %v657
          %v659 = vpop.f32.mrf.mxu0
          %v660 = vadd.f32 0.0, %v659
          %661 = vdwg.mxu0
          %v662 = vld [vmem:[#allocation4] sm:$0xff]
          %v663 = vld [vmem:[#allocation4 + $0x8] sm:$0xff]
          %v664 = vld [vmem:[#allocation4 + $0x10] sm:$0xff]
          %v665 = vld [vmem:[#allocation4 + $0x18] sm:$0xff]
          %v666 = vld [vmem:[#allocation4 + $0x20] sm:$0xff]
          %v667 = vld [vmem:[#allocation4 + $0x28] sm:$0xff]
          %v668 = vld [vmem:[#allocation4 + $0x30] sm:$0xff]
          %v669 = vld [vmem:[#allocation4 + $0x38] sm:$0xff]
          %v670 = vld [vmem:[#allocation4 + $0x40] sm:$0xff]
          %v671 = vld [vmem:[#allocation4 + $0x48] sm:$0xff]
          %v672 = vld [vmem:[#allocation4 + $0x50] sm:$0xff]
          %v673 = vld [vmem:[#allocation4 + $0x58] sm:$0xff]
          %v674 = vld [vmem:[#allocation4 + $0x60] sm:$0xff]
          %v675 = vld [vmem:[#allocation4 + $0x68] sm:$0xff]
          %v676 = vld [vmem:[#allocation4 + $0x70] sm:$0xff]
          %v677 = vld [vmem:[#allocation4 + $0x78] sm:$0xff]
          %v678 = vld [vmem:[#allocation4 + $0x80] sm:$0xff]
          %v679 = vld [vmem:[#allocation4 + $0x88] sm:$0xff]
          %v680 = vld [vmem:[#allocation4 + $0x90] sm:$0xff]
          %v681 = vld [vmem:[#allocation4 + $0x98] sm:$0xff]
          %v682 = vld [vmem:[#allocation4 + $0xa0] sm:$0xff]
          %v683 = vld [vmem:[#allocation4 + $0xa8] sm:$0xff]
          %v684 = vld [vmem:[#allocation4 + $0xb0] sm:$0xff]
          %v685 = vld [vmem:[#allocation4 + $0xb8] sm:$0xff]
          %v686 = vld [vmem:[#allocation4 + $0xc0] sm:$0xff]
          %v687 = vld [vmem:[#allocation4 + $0xc8] sm:$0xff]
          %v688 = vld [vmem:[#allocation4 + $0xd0] sm:$0xff]
          %v689 = vld [vmem:[#allocation4 + $0xd8] sm:$0xff]
          %v690 = vld [vmem:[#allocation4 + $0xe0] sm:$0xff]
          %v691 = vld [vmem:[#allocation4 + $0xe8] sm:$0xff]
          %v692 = vld [vmem:[#allocation4 + $0xf0] sm:$0xff]
          %v693 = vld [vmem:[#allocation4 + $0xf8] sm:$0xff]
          %v694 = vld [vmem:[#allocation4 + $0x100] sm:$0xff]
          %v695 = vld [vmem:[#allocation4 + $0x108] sm:$0xff]
          %v696 = vld [vmem:[#allocation4 + $0x110] sm:$0xff]
          %v697 = vld [vmem:[#allocation4 + $0x118] sm:$0xff]
          %v698 = vld [vmem:[#allocation4 + $0x120] sm:$0xff]
          %v699 = vld [vmem:[#allocation4 + $0x128] sm:$0xff]
          %v700 = vld [vmem:[#allocation4 + $0x130] sm:$0xff]
          %v701 = vld [vmem:[#allocation4 + $0x138] sm:$0xff]
          %v702 = vld [vmem:[#allocation4 + $0x140] sm:$0xff]
          %v703 = vld [vmem:[#allocation4 + $0x148] sm:$0xff]
          %v704 = vld [vmem:[#allocation4 + $0x150] sm:$0xff]
          %v705 = vld [vmem:[#allocation4 + $0x158] sm:$0xff]
          %v706 = vld [vmem:[#allocation4 + $0x160] sm:$0xff]
          %v707 = vld [vmem:[#allocation4 + $0x168] sm:$0xff]
          %v708 = vld [vmem:[#allocation4 + $0x170] sm:$0xff]
          %v709 = vld [vmem:[#allocation4 + $0x178] sm:$0xff]
          %v710 = vld [vmem:[#allocation4 + $0x180] sm:$0xff]
          %v711 = vld [vmem:[#allocation4 + $0x188] sm:$0xff]
          %v712 = vld [vmem:[#allocation4 + $0x190] sm:$0xff]
          %v713 = vld [vmem:[#allocation4 + $0x198] sm:$0xff]
          %v714 = vld [vmem:[#allocation4 + $0x1a0] sm:$0xff]
          %v715 = vld [vmem:[#allocation4 + $0x1a8] sm:$0xff]
          %v716 = vld [vmem:[#allocation4 + $0x1b0] sm:$0xff]
          %v717 = vld [vmem:[#allocation4 + $0x1b8] sm:$0xff]
          %v718 = vld [vmem:[#allocation4 + $0x1c0] sm:$0xff]
          %v719 = vld [vmem:[#allocation4 + $0x1c8] sm:$0xff]
          %v720 = vld [vmem:[#allocation4 + $0x1d0] sm:$0xff]
          %v721 = vld [vmem:[#allocation4 + $0x1d8] sm:$0xff]
          %v722 = vld [vmem:[#allocation4 + $0x1e0] sm:$0xff]
          %v723 = vld [vmem:[#allocation4 + $0x1e8] sm:$0xff]
          %v724 = vld [vmem:[#allocation4 + $0x1f0] sm:$0xff]
          %v725 = vld [vmem:[#allocation4 + $0x1f8] sm:$0xff]
          %v726 = vld [vmem:[%s6] sm:$0x3]
          %v728 = vlaneseq
          %v729 = vshrl.u32 %v728, 7
          %v730 = vsub.s32 0, %v729
          %v731 = vrot.slane %v726, %v730
          %v732 = vlaneseq
          %v733 = vshrl.u32 %v732, 7
          %v734 = vsub.s32 1, %v733
          %v735 = vrot.slane %v726, %v734
          %738 = vmatprep.subr.mxu0 %v693
          %739 = vmatpush1.msra.mxu0 %v692
          %740 = vmatprep.subr.mxu0 %v691
          %741 = vmatpush1.msra.mxu0 %v690
          %742 = vmatprep.subr.mxu0 %v689
          %743 = vmatpush1.msra.mxu0 %v688
          %744 = vmatprep.subr.mxu0 %v687
          %745 = vmatpush1.msra.mxu0 %v686
          %746 = vmatprep.subr.mxu0 %v685
          %747 = vmatpush1.msra.mxu0 %v684
          %748 = vmatprep.subr.mxu0 %v683
          %749 = vmatpush1.msra.mxu0 %v682
          %750 = vmatprep.subr.mxu0 %v681
          %751 = vmatpush1.msra.mxu0 %v680
          %752 = vmatprep.subr.mxu0 %v679
          %753 = vmatpush1.msra.mxu0 %v678
          %754 = vmatprep.subr.mxu0 %v677
          %755 = vmatpush1.msra.mxu0 %v676
          %756 = vmatprep.subr.mxu0 %v675
          %757 = vmatpush1.msra.mxu0 %v674
          %758 = vmatprep.subr.mxu0 %v673
          %759 = vmatpush1.msra.mxu0 %v672
          %760 = vmatprep.subr.mxu0 %v671
          %761 = vmatpush1.msra.mxu0 %v670
          %762 = vmatprep.subr.mxu0 %v669
          %763 = vmatpush1.msra.mxu0 %v668
          %764 = vmatprep.subr.mxu0 %v667
          %765 = vmatpush1.msra.mxu0 %v666
          %766 = vmatprep.subr.mxu0 %v665
          %767 = vmatpush1.msra.mxu0 %v664
          %768 = vmatprep.subr.mxu0 %v663
          %769 = vmatpush1.msra.mxu0 %v662
          %770 = vmatprep.subr.mxu0 %v725
          %771 = vmatpush2.msra.mxu0 %v724
          %772 = vmatprep.subr.mxu0 %v723
          %773 = vmatpush2.msra.mxu0 %v722
          %774 = vmatprep.subr.mxu0 %v721
          %775 = vmatpush2.msra.mxu0 %v720
          %776 = vmatprep.subr.mxu0 %v719
          %777 = vmatpush2.msra.mxu0 %v718
          %778 = vmatprep.subr.mxu0 %v717
          %779 = vmatpush2.msra.mxu0 %v716
          %780 = vmatprep.subr.mxu0 %v715
          %781 = vmatpush2.msra.mxu0 %v714
          %782 = vmatprep.subr.mxu0 %v713
          %783 = vmatpush2.msra.mxu0 %v712
          %784 = vmatprep.subr.mxu0 %v711
          %785 = vmatpush2.msra.mxu0 %v710
          %786 = vmatprep.subr.mxu0 %v709
          %787 = vmatpush2.msra.mxu0 %v708
          %788 = vmatprep.subr.mxu0 %v707
          %789 = vmatpush2.msra.mxu0 %v706
          %790 = vmatprep.subr.mxu0 %v705
          %791 = vmatpush2.msra.mxu0 %v704
          %792 = vmatprep.subr.mxu0 %v703
          %793 = vmatpush2.msra.mxu0 %v702
          %794 = vmatprep.subr.mxu0 %v701
          %795 = vmatpush2.msra.mxu0 %v700
          %796 = vmatprep.subr.mxu0 %v699
          %797 = vmatpush2.msra.mxu0 %v698
          %798 = vmatprep.subr.mxu0 %v697
          %799 = vmatpush2.msra.mxu0 %v696
          %800 = vmatprep.subr.mxu0 %v695
          %801 = vmatpush2.msra.mxu0 %v694
          %802 = vmatprep.mubr.f32.mxu0 %v654
          %803 = vmatmul.mubr.f32.gmra.mxu0 %v652
          %v804 = vpop.f32.mrf.mxu0
          %v805 = vadd.f32 %v731, %v804
          %v806 = vpop.f32.mrf.mxu0
          %v807 = vadd.f32 %v735, %v806
          %808 = vmatprep.mubr.f32.mxu0 %v660
          %809 = vmatmul.mubr.f32.gmra.mxu0 %v658
          %v810 = vpop.f32.mrf.mxu0
          %v811 = vadd.f32 %v731, %v810
          %v812 = vpop.f32.mrf.mxu0
          %v813 = vadd.f32 %v735, %v812
          %814 = vdwg.mxu0
          %815 = vmatprep.subr.mxu0 0.0
          %816 = vmatpush1.msra.mxu0 0.0
          %817 = vmatprep.subr.mxu0 0.0
          %818 = vmatpush1.msra.mxu0 0.0
          %819 = vmatprep.subr.mxu0 0.0
          %820 = vmatpush1.msra.mxu0 0.0
          %821 = vmatprep.subr.mxu0 0.0
          %822 = vmatpush1.msra.mxu0 0.0
          %823 = vmatprep.subr.mxu0 0.0
          %824 = vmatpush1.msra.mxu0 0.0
          %825 = vmatprep.subr.mxu0 0.0
          %826 = vmatpush1.msra.mxu0 0.0
          %827 = vmatprep.subr.mxu0 0.0
          %828 = vmatpush1.msra.mxu0 0.0
          %829 = vmatprep.subr.mxu0 0.0
          %830 = vmatpush1.msra.mxu0 0.0
          %831 = vmatprep.subr.mxu0 0.0
          %832 = vmatpush1.msra.mxu0 0.0
          %833 = vmatprep.subr.mxu0 0.0
          %834 = vmatpush1.msra.mxu0 0.0
          %835 = vmatprep.subr.mxu0 0.0
          %836 = vmatpush1.msra.mxu0 0.0
          %837 = vmatprep.subr.mxu0 0.0
          %838 = vmatpush1.msra.mxu0 0.0
          %839 = vmatprep.subr.mxu0 0.0
          %840 = vmatpush1.msra.mxu0 0.0
          %841 = vmatprep.subr.mxu0 0.0
          %842 = vmatpush1.msra.mxu0 0.0
          %843 = vmatprep.subr.mxu0 %v813
          %844 = vmatpush1.msra.mxu0 %v811
          %845 = vmatprep.subr.mxu0 %v807
          %846 = vmatpush1.msra.mxu0 %v805
          %847 = vmatprep.subr.mxu0 0.0
          %848 = vmatpush2.msra.mxu0 0.0
          %849 = vmatprep.subr.mxu0 0.0
          %850 = vmatpush2.msra.mxu0 0.0
          %851 = vmatprep.subr.mxu0 0.0
          %852 = vmatpush2.msra.mxu0 0.0
          %853 = vmatprep.subr.mxu0 0.0
          %854 = vmatpush2.msra.mxu0 0.0
          %855 = vmatprep.subr.mxu0 0.0
          %856 = vmatpush2.msra.mxu0 0.0
          %857 = vmatprep.subr.mxu0 0.0
          %858 = vmatpush2.msra.mxu0 0.0
          %859 = vmatprep.subr.mxu0 0.0
          %860 = vmatpush2.msra.mxu0 0.0
          %861 = vmatprep.subr.mxu0 0.0
          %862 = vmatpush2.msra.mxu0 0.0
          %863 = vmatprep.subr.mxu0 0.0
          %864 = vmatpush2.msra.mxu0 0.0
          %865 = vmatprep.subr.mxu0 0.0
          %866 = vmatpush2.msra.mxu0 0.0
          %867 = vmatprep.subr.mxu0 0.0
          %868 = vmatpush2.msra.mxu0 0.0
          %869 = vmatprep.subr.mxu0 0.0
          %870 = vmatpush2.msra.mxu0 0.0
          %871 = vmatprep.subr.mxu0 0.0
          %872 = vmatpush2.msra.mxu0 0.0
          %873 = vmatprep.subr.mxu0 0.0
          %874 = vmatpush2.msra.mxu0 0.0
          %875 = vmatprep.subr.mxu0 0.0
          %876 = vmatpush2.msra.mxu0 0.0
          %877 = vmatprep.subr.mxu0 0.0
          %878 = vmatpush2.msra.mxu0 0.0
          %879 = vmatprep.mubr.f32.mxu0 0.0
          %880 = vmatmul.mubr.f32.gmra.mxu0 %v580
          %v881 = vpop.f32.mrf.mxu0
          %v882 = vadd.f32 0.0, %v881
          %v883 = vpop.f32.mrf.mxu0
          %v884 = vadd.f32 0.0, %v883
          %885 = vmatprep.mubr.f32.mxu0 0.0
          %886 = vmatmul.mubr.f32.gmra.mxu0 %v583
          %v887 = vpop.f32.mrf.mxu0
          %v888 = vadd.f32 0.0, %v887
          %v889 = vpop.f32.mrf.mxu0
          %v890 = vadd.f32 0.0, %v889
          %891 = vdwg.mxu0
          %v892 = vld [vmem:[#allocation7] sm:$0xff]
          %v893 = vld [vmem:[#allocation7 + $0x8] sm:$0xff]
          %v894 = vld [vmem:[#allocation7 + $0x10] sm:$0xff]
          %v895 = vld [vmem:[#allocation7 + $0x18] sm:$0xff]
          %v896 = vld [vmem:[#allocation7 + $0x20] sm:$0xff]
          %v897 = vld [vmem:[#allocation7 + $0x28] sm:$0xff]
          %v898 = vld [vmem:[#allocation7 + $0x30] sm:$0xff]
          %v899 = vld [vmem:[#allocation7 + $0x38] sm:$0xff]
          %v900 = vld [vmem:[#allocation7 + $0x40] sm:$0xff]
          %v901 = vld [vmem:[#allocation7 + $0x48] sm:$0xff]
          %v902 = vld [vmem:[#allocation7 + $0x50] sm:$0xff]
          %v903 = vld [vmem:[#allocation7 + $0x58] sm:$0xff]
          %v904 = vld [vmem:[#allocation7 + $0x60] sm:$0xff]
          %v905 = vld [vmem:[#allocation7 + $0x68] sm:$0xff]
          %v906 = vld [vmem:[#allocation7 + $0x70] sm:$0xff]
          %v907 = vld [vmem:[#allocation7 + $0x78] sm:$0xff]
          %v908 = vld [vmem:[#allocation7 + $0x80] sm:$0xff]
          %v909 = vld [vmem:[#allocation7 + $0x88] sm:$0xff]
          %v910 = vld [vmem:[#allocation7 + $0x90] sm:$0xff]
          %v911 = vld [vmem:[#allocation7 + $0x98] sm:$0xff]
          %v912 = vld [vmem:[#allocation7 + $0xa0] sm:$0xff]
          %v913 = vld [vmem:[#allocation7 + $0xa8] sm:$0xff]
          %v914 = vld [vmem:[#allocation7 + $0xb0] sm:$0xff]
          %v915 = vld [vmem:[#allocation7 + $0xb8] sm:$0xff]
          %v916 = vld [vmem:[#allocation7 + $0xc0] sm:$0xff]
          %v917 = vld [vmem:[#allocation7 + $0xc8] sm:$0xff]
          %v918 = vld [vmem:[#allocation7 + $0xd0] sm:$0xff]
          %v919 = vld [vmem:[#allocation7 + $0xd8] sm:$0xff]
          %v920 = vld [vmem:[#allocation7 + $0xe0] sm:$0xff]
          %v921 = vld [vmem:[#allocation7 + $0xe8] sm:$0xff]
          %v922 = vld [vmem:[#allocation7 + $0xf0] sm:$0xff]
          %v923 = vld [vmem:[#allocation7 + $0xf8] sm:$0xff]
          %v924 = vld [vmem:[#allocation7 + $0x100] sm:$0xff]
          %v925 = vld [vmem:[#allocation7 + $0x108] sm:$0xff]
          %v926 = vld [vmem:[#allocation7 + $0x110] sm:$0xff]
          %v927 = vld [vmem:[#allocation7 + $0x118] sm:$0xff]
          %v928 = vld [vmem:[#allocation7 + $0x120] sm:$0xff]
          %v929 = vld [vmem:[#allocation7 + $0x128] sm:$0xff]
          %v930 = vld [vmem:[#allocation7 + $0x130] sm:$0xff]
          %v931 = vld [vmem:[#allocation7 + $0x138] sm:$0xff]
          %v932 = vld [vmem:[#allocation7 + $0x140] sm:$0xff]
          %v933 = vld [vmem:[#allocation7 + $0x148] sm:$0xff]
          %v934 = vld [vmem:[#allocation7 + $0x150] sm:$0xff]
          %v935 = vld [vmem:[#allocation7 + $0x158] sm:$0xff]
          %v936 = vld [vmem:[#allocation7 + $0x160] sm:$0xff]
          %v937 = vld [vmem:[#allocation7 + $0x168] sm:$0xff]
          %v938 = vld [vmem:[#allocation7 + $0x170] sm:$0xff]
          %v939 = vld [vmem:[#allocation7 + $0x178] sm:$0xff]
          %v940 = vld [vmem:[#allocation7 + $0x180] sm:$0xff]
          %v941 = vld [vmem:[#allocation7 + $0x188] sm:$0xff]
          %v942 = vld [vmem:[#allocation7 + $0x190] sm:$0xff]
          %v943 = vld [vmem:[#allocation7 + $0x198] sm:$0xff]
          %v944 = vld [vmem:[#allocation7 + $0x1a0] sm:$0xff]
          %v945 = vld [vmem:[#allocation7 + $0x1a8] sm:$0xff]
          %v946 = vld [vmem:[#allocation7 + $0x1b0] sm:$0xff]
          %v947 = vld [vmem:[#allocation7 + $0x1b8] sm:$0xff]
          %v948 = vld [vmem:[#allocation7 + $0x1c0] sm:$0xff]
          %v949 = vld [vmem:[#allocation7 + $0x1c8] sm:$0xff]
          %v950 = vld [vmem:[#allocation7 + $0x1d0] sm:$0xff]
          %v951 = vld [vmem:[#allocation7 + $0x1d8] sm:$0xff]
          %v952 = vld [vmem:[#allocation7 + $0x1e0] sm:$0xff]
          %v953 = vld [vmem:[#allocation7 + $0x1e8] sm:$0xff]
          %v954 = vld [vmem:[#allocation7 + $0x1f0] sm:$0xff]
          %v955 = vld [vmem:[#allocation7 + $0x1f8] sm:$0xff]
          %v956 = vld [vmem:[%s8] sm:$0x3]
          %v958 = vlaneseq
          %v959 = vshrl.u32 %v958, 7
          %v960 = vsub.s32 0, %v959
          %v961 = vrot.slane %v956, %v960
          %v962 = vlaneseq
          %v963 = vshrl.u32 %v962, 7
          %v964 = vsub.s32 1, %v963
          %v965 = vrot.slane %v956, %v964
          %968 = vmatprep.subr.mxu0 %v923
          %969 = vmatpush1.msra.mxu0 %v922
          %970 = vmatprep.subr.mxu0 %v921
          %971 = vmatpush1.msra.mxu0 %v920
          %972 = vmatprep.subr.mxu0 %v919
          %973 = vmatpush1.msra.mxu0 %v918
          %974 = vmatprep.subr.mxu0 %v917
          %975 = vmatpush1.msra.mxu0 %v916
          %976 = vmatprep.subr.mxu0 %v915
          %977 = vmatpush1.msra.mxu0 %v914
          %978 = vmatprep.subr.mxu0 %v913
          %979 = vmatpush1.msra.mxu0 %v912
          %980 = vmatprep.subr.mxu0 %v911
          %981 = vmatpush1.msra.mxu0 %v910
          %982 = vmatprep.subr.mxu0 %v909
          %983 = vmatpush1.msra.mxu0 %v908
          %984 = vmatprep.subr.mxu0 %v907
          %985 = vmatpush1.msra.mxu0 %v906
          %986 = vmatprep.subr.mxu0 %v905
          %987 = vmatpush1.msra.mxu0 %v904
          %988 = vmatprep.subr.mxu0 %v903
          %989 = vmatpush1.msra.mxu0 %v902
          %990 = vmatprep.subr.mxu0 %v901
          %991 = vmatpush1.msra.mxu0 %v900
          %992 = vmatprep.subr.mxu0 %v899
          %993 = vmatpush1.msra.mxu0 %v898
          %994 = vmatprep.subr.mxu0 %v897
          %995 = vmatpush1.msra.mxu0 %v896
          %996 = vmatprep.subr.mxu0 %v895
          %997 = vmatpush1.msra.mxu0 %v894
          %998 = vmatprep.subr.mxu0 %v893
          %999 = vmatpush1.msra.mxu0 %v892
          %1000 = vmatprep.subr.mxu0 %v955
          %1001 = vmatpush2.msra.mxu0 %v954
          %1002 = vmatprep.subr.mxu0 %v953
          %1003 = vmatpush2.msra.mxu0 %v952
          %1004 = vmatprep.subr.mxu0 %v951
          %1005 = vmatpush2.msra.mxu0 %v950
          %1006 = vmatprep.subr.mxu0 %v949
          %1007 = vmatpush2.msra.mxu0 %v948
          %1008 = vmatprep.subr.mxu0 %v947
          %1009 = vmatpush2.msra.mxu0 %v946
          %1010 = vmatprep.subr.mxu0 %v945
          %1011 = vmatpush2.msra.mxu0 %v944
          %1012 = vmatprep.subr.mxu0 %v943
          %1013 = vmatpush2.msra.mxu0 %v942
          %1014 = vmatprep.subr.mxu0 %v941
          %1015 = vmatpush2.msra.mxu0 %v940
          %1016 = vmatprep.subr.mxu0 %v939
          %1017 = vmatpush2.msra.mxu0 %v938
          %1018 = vmatprep.subr.mxu0 %v937
          %1019 = vmatpush2.msra.mxu0 %v936
          %1020 = vmatprep.subr.mxu0 %v935
          %1021 = vmatpush2.msra.mxu0 %v934
          %1022 = vmatprep.subr.mxu0 %v933
          %1023 = vmatpush2.msra.mxu0 %v932
          %1024 = vmatprep.subr.mxu0 %v931
          %1025 = vmatpush2.msra.mxu0 %v930
          %1026 = vmatprep.subr.mxu0 %v929
          %1027 = vmatpush2.msra.mxu0 %v928
          %1028 = vmatprep.subr.mxu0 %v927
          %1029 = vmatpush2.msra.mxu0 %v926
          %1030 = vmatprep.subr.mxu0 %v925
          %1031 = vmatpush2.msra.mxu0 %v924
          %1032 = vmatprep.mubr.f32.mxu0 %v884
          %1033 = vmatmul.mubr.f32.gmra.mxu0 %v882
          %v1034 = vpop.f32.mrf.mxu0
          %v1035 = vadd.f32 %v961, %v1034
          %v1036 = vpop.f32.mrf.mxu0
          %v1037 = vadd.f32 %v965, %v1036
          %1038 = vmatprep.mubr.f32.mxu0 %v890
          %1039 = vmatmul.mubr.f32.gmra.mxu0 %v888
          %v1040 = vpop.f32.mrf.mxu0
          %v1041 = vadd.f32 %v961, %v1040
          %v1042 = vpop.f32.mrf.mxu0
          %v1043 = vadd.f32 %v965, %v1042
          %1044 = vdwg.mxu0
          %1045 = vst [vmem:[#allocation3] sm:$0xff] %v1035
          %1046 = vst [vmem:[#allocation3 + $0x8] sm:$0xff] %v1037
          %1047 = vst [vmem:[#allocation3 + $0x10] sm:$0xff] %v1041
          %1048 = vst [vmem:[#allocation3 + $0x18] sm:$0xff] %v1043
        $region96: #{tpu_custom_call.1} parent=79 // pred_fallthru
          _
        %v1049 = vld [vmem:[%s553] sm:$0xff]
        %v1050 = vld [vmem:[%s553 + $0x8] sm:$0xff]
        %vm1051 = vcmask 130048
        %v1053 = vsel %vm1051, %v558, 0
        %v1056 = vsel %vm1051, %v559, 0
        %1058 = vmatprep.subr.mxu0 0.0
        %1059 = vmatpush1.msra.mxu0 0.0
        %1060 = vmatprep.subr.mxu0 0.0
        %1061 = vmatpush1.msra.mxu0 0.0
        %1062 = vmatprep.subr.mxu0 0.0
        %1063 = vmatpush1.msra.mxu0 0.0
        %1064 = vmatprep.subr.mxu0 0.0
        %1065 = vmatpush1.msra.mxu0 0.0
        %1066 = vmatprep.subr.mxu0 0.0
        %1067 = vmatpush1.msra.mxu0 0.0
        %1068 = vmatprep.subr.mxu0 0.0
        %1069 = vmatpush1.msra.mxu0 0.0
        %1070 = vmatprep.subr.mxu0 0.0
        %1071 = vmatpush1.msra.mxu0 0.0
        %1072 = vmatprep.subr.mxu0 0.0
        %1073 = vmatpush1.msra.mxu0 0.0
        %1074 = vmatprep.subr.mxu0 0.0
        %1075 = vmatpush1.msra.mxu0 0.0
        %1076 = vmatprep.subr.mxu0 0.0
        %1077 = vmatpush1.msra.mxu0 0.0
        %1078 = vmatprep.subr.mxu0 0.0
        %1079 = vmatpush1.msra.mxu0 0.0
        %1080 = vmatprep.subr.mxu0 0.0
        %1081 = vmatpush1.msra.mxu0 0.0
        %1082 = vmatprep.subr.mxu0 0.0
        %1083 = vmatpush1.msra.mxu0 0.0
        %1084 = vmatprep.subr.mxu0 0.0
        %1085 = vmatpush1.msra.mxu0 0.0
        %1086 = vmatprep.subr.mxu0 0.0
        %1087 = vmatpush1.msra.mxu0 %v1050
        %1088 = vmatprep.subr.mxu0 0.0
        %1089 = vmatpush1.msra.mxu0 %v1049
        %1090 = vmatprep.subr.mxu0 0.0
        %1091 = vmatpush2.msra.mxu0 0.0
        %1092 = vmatprep.subr.mxu0 0.0
        %1093 = vmatpush2.msra.mxu0 0.0
        %1094 = vmatprep.subr.mxu0 0.0
        %1095 = vmatpush2.msra.mxu0 0.0
        %1096 = vmatprep.subr.mxu0 0.0
        %1097 = vmatpush2.msra.mxu0 0.0
        %1098 = vmatprep.subr.mxu0 0.0
        %1099 = vmatpush2.msra.mxu0 0.0
        %1100 = vmatprep.subr.mxu0 0.0
        %1101 = vmatpush2.msra.mxu0 0.0
        %1102 = vmatprep.subr.mxu0 0.0
        %1103 = vmatpush2.msra.mxu0 0.0
        %1104 = vmatprep.subr.mxu0 0.0
        %1105 = vmatpush2.msra.mxu0 0.0
        %1106 = vmatprep.subr.mxu0 0.0
        %1107 = vmatpush2.msra.mxu0 0.0
        %1108 = vmatprep.subr.mxu0 0.0
        %1109 = vmatpush2.msra.mxu0 0.0
        %1110 = vmatprep.subr.mxu0 0.0
        %1111 = vmatpush2.msra.mxu0 0.0
        %1112 = vmatprep.subr.mxu0 0.0
        %1113 = vmatpush2.msra.mxu0 0.0
        %1114 = vmatprep.subr.mxu0 0.0
        %1115 = vmatpush2.msra.mxu0 0.0
        %1116 = vmatprep.subr.mxu0 0.0
        %1117 = vmatpush2.msra.mxu0 0.0
        %1118 = vmatprep.subr.mxu0 0.0
        %1119 = vmatpush2.msra.mxu0 0.0
        %1120 = vmatprep.subr.mxu0 0.0
        %1121 = vmatpush2.msra.mxu0 0.0
        %1122 = vmatprep.mubr.f32.mxu0 0.0
        %1123 = vmatmul.mubr.f32.gmra.mxu0 %v1053
        %v1124 = vpop.f32.mrf.mxu0
        %v1125 = vadd.f32 0.0, %v1124
        %v1126 = vpop.f32.mrf.mxu0
        %1127 = vmatprep.mubr.f32.mxu0 0.0
        %1128 = vmatmul.mubr.f32.gmra.mxu0 %v1056
        %v1129 = vpop.f32.mrf.mxu0
        %v1130 = vadd.f32 0.0, %v1129
        %v1131 = vpop.f32.mrf.mxu0
        %1132 = vdwg.mxu0
        %v1133 = vld [vmem:[%s3] sm:$0xff]
        %v1134 = vld [vmem:[%s3 + $0x8] sm:$0xff]
        %v1135 = vld [vmem:[%s3 + $0x10] sm:$0xff]
        %v1136 = vld [vmem:[%s3 + $0x18] sm:$0xff]
        %v1137 = vld [vmem:[%s3 + $0x20] sm:$0xff]
        %v1138 = vld [vmem:[%s3 + $0x28] sm:$0xff]
        %v1139 = vld [vmem:[%s3 + $0x30] sm:$0xff]
        %v1140 = vld [vmem:[%s3 + $0x38] sm:$0xff]
        %vm1141 = vcmask 261120
        %v1143 = vsel %vm1141, %v1125, 0
        %v1146 = vsel %vm1141, %v1130, 0
        %1148 = vmatprep.subr.mxu0 0.0
        %1149 = vmatpush1.msra.mxu0 0.0
        %1150 = vmatprep.subr.mxu0 0.0
        %1151 = vmatpush1.msra.mxu0 0.0
        %1152 = vmatprep.subr.mxu0 0.0
        %1153 = vmatpush1.msra.mxu0 0.0
        %1154 = vmatprep.subr.mxu0 0.0
        %1155 = vmatpush1.msra.mxu0 0.0
        %1156 = vmatprep.subr.mxu0 0.0
        %1157 = vmatpush1.msra.mxu0 0.0
        %1158 = vmatprep.subr.mxu0 0.0
        %1159 = vmatpush1.msra.mxu0 0.0
        %1160 = vmatprep.subr.mxu0 0.0
        %1161 = vmatpush1.msra.mxu0 0.0
        %1162 = vmatprep.subr.mxu0 0.0
        %1163 = vmatpush1.msra.mxu0 0.0
        %1164 = vmatprep.subr.mxu0 0.0
        %1165 = vmatpush1.msra.mxu0 0.0
        %1166 = vmatprep.subr.mxu0 0.0
        %1167 = vmatpush1.msra.mxu0 0.0
        %1168 = vmatprep.subr.mxu0 0.0
        %1169 = vmatpush1.msra.mxu0 0.0
        %1170 = vmatprep.subr.mxu0 0.0
        %1171 = vmatpush1.msra.mxu0 0.0
        %1172 = vmatprep.subr.mxu0 %v1140
        %1173 = vmatpush1.msra.mxu0 %v1139
        %1174 = vmatprep.subr.mxu0 %v1138
        %1175 = vmatpush1.msra.mxu0 %v1137
        %1176 = vmatprep.subr.mxu0 %v1136
        %1177 = vmatpush1.msra.mxu0 %v1135
        %1178 = vmatprep.subr.mxu0 %v1134
        %1179 = vmatpush1.msra.mxu0 %v1133
        %1180 = vmatprep.subr.mxu0 0.0
        %1181 = vmatpush2.msra.mxu0 0.0
        %1182 = vmatprep.subr.mxu0 0.0
        %1183 = vmatpush2.msra.mxu0 0.0
        %1184 = vmatprep.subr.mxu0 0.0
        %1185 = vmatpush2.msra.mxu0 0.0
        %1186 = vmatprep.subr.mxu0 0.0
        %1187 = vmatpush2.msra.mxu0 0.0
        %1188 = vmatprep.subr.mxu0 0.0
        %1189 = vmatpush2.msra.mxu0 0.0
        %1190 = vmatprep.subr.mxu0 0.0
        %1191 = vmatpush2.msra.mxu0 0.0
        %1192 = vmatprep.subr.mxu0 0.0
        %1193 = vmatpush2.msra.mxu0 0.0
        %1194 = vmatprep.subr.mxu0 0.0
        %1195 = vmatpush2.msra.mxu0 0.0
        %1196 = vmatprep.subr.mxu0 0.0
        %1197 = vmatpush2.msra.mxu0 0.0
        %1198 = vmatprep.subr.mxu0 0.0
        %1199 = vmatpush2.msra.mxu0 0.0
        %1200 = vmatprep.subr.mxu0 0.0
        %1201 = vmatpush2.msra.mxu0 0.0
        %1202 = vmatprep.subr.mxu0 0.0
        %1203 = vmatpush2.msra.mxu0 0.0
        %1204 = vmatprep.subr.mxu0 0.0
        %1205 = vmatpush2.msra.mxu0 0.0
        %1206 = vmatprep.subr.mxu0 0.0
        %1207 = vmatpush2.msra.mxu0 0.0
        %1208 = vmatprep.subr.mxu0 0.0
        %1209 = vmatpush2.msra.mxu0 0.0
        %1210 = vmatprep.subr.mxu0 0.0
        %1211 = vmatpush2.msra.mxu0 0.0
        %1212 = vmatprep.mubr.f32.mxu0 0.0
        %1213 = vmatmul.mubr.f32.gmra.mxu0 %v1143
        %v1214 = vpop.f32.mrf.mxu0
        %v1215 = vadd.f32 0.0, %v1214
        %v1216 = vpop.f32.mrf.mxu0
        %v1217 = vadd.f32 0.0, %v1216
        %1218 = vmatprep.mubr.f32.mxu0 0.0
        %1219 = vmatmul.mubr.f32.gmra.mxu0 %v1146
        %v1220 = vpop.f32.mrf.mxu0
        %v1221 = vadd.f32 0.0, %v1220
        %v1222 = vpop.f32.mrf.mxu0
        %v1223 = vadd.f32 0.0, %v1222
        %1224 = vdwg.mxu0
        %1225 = vmatprep.subr.mxu0 0.0
        %1226 = vmatpush1.msra.mxu0 0.0
        %1227 = vmatprep.subr.mxu0 0.0
        %1228 = vmatpush1.msra.mxu0 0.0
        %1229 = vmatprep.subr.mxu0 0.0
        %1230 = vmatpush1.msra.mxu0 0.0
        %1231 = vmatprep.subr.mxu0 0.0
        %1232 = vmatpush1.msra.mxu0 0.0
        %1233 = vmatprep.subr.mxu0 0.0
        %1234 = vmatpush1.msra.mxu0 0.0
        %1235 = vmatprep.subr.mxu0 0.0
        %1236 = vmatpush1.msra.mxu0 0.0
        %1237 = vmatprep.subr.mxu0 0.0
        %1238 = vmatpush1.msra.mxu0 0.0
        %1239 = vmatprep.subr.mxu0 0.0
        %1240 = vmatpush1.msra.mxu0 0.0
        %1241 = vmatprep.subr.mxu0 0.0
        %1242 = vmatpush1.msra.mxu0 0.0
        %1243 = vmatprep.subr.mxu0 0.0
        %1244 = vmatpush1.msra.mxu0 0.0
        %1245 = vmatprep.subr.mxu0 0.0
        %1246 = vmatpush1.msra.mxu0 0.0
        %1247 = vmatprep.subr.mxu0 0.0
        %1248 = vmatpush1.msra.mxu0 0.0
        %1249 = vmatprep.subr.mxu0 0.0
        %1250 = vmatpush1.msra.mxu0 0.0
        %1251 = vmatprep.subr.mxu0 0.0
        %1252 = vmatpush1.msra.mxu0 0.0
        %1253 = vmatprep.subr.mxu0 %v1223
        %1254 = vmatpush1.msra.mxu0 %v1221
        %1255 = vmatprep.subr.mxu0 %v1217
        %1256 = vmatpush1.msra.mxu0 %v1215
        %1257 = vmatprep.subr.mxu0 0.0
        %1258 = vmatpush2.msra.mxu0 0.0
        %1259 = vmatprep.subr.mxu0 0.0
        %1260 = vmatpush2.msra.mxu0 0.0
        %1261 = vmatprep.subr.mxu0 0.0
        %1262 = vmatpush2.msra.mxu0 0.0
        %1263 = vmatprep.subr.mxu0 0.0
        %1264 = vmatpush2.msra.mxu0 0.0
        %1265 = vmatprep.subr.mxu0 0.0
        %1266 = vmatpush2.msra.mxu0 0.0
        %1267 = vmatprep.subr.mxu0 0.0
        %1268 = vmatpush2.msra.mxu0 0.0
        %1269 = vmatprep.subr.mxu0 0.0
        %1270 = vmatpush2.msra.mxu0 0.0
        %1271 = vmatprep.subr.mxu0 0.0
        %1272 = vmatpush2.msra.mxu0 0.0
        %1273 = vmatprep.subr.mxu0 0.0
        %1274 = vmatpush2.msra.mxu0 0.0
        %1275 = vmatprep.subr.mxu0 0.0
        %1276 = vmatpush2.msra.mxu0 0.0
        %1277 = vmatprep.subr.mxu0 0.0
        %1278 = vmatpush2.msra.mxu0 0.0
        %1279 = vmatprep.subr.mxu0 0.0
        %1280 = vmatpush2.msra.mxu0 0.0
        %1281 = vmatprep.subr.mxu0 0.0
        %1282 = vmatpush2.msra.mxu0 0.0
        %1283 = vmatprep.subr.mxu0 0.0
        %1284 = vmatpush2.msra.mxu0 0.0
        %1285 = vmatprep.subr.mxu0 0.0
        %1286 = vmatpush2.msra.mxu0 0.0
        %1287 = vmatprep.subr.mxu0 0.0
        %1288 = vmatpush2.msra.mxu0 0.0
        %1289 = vmatprep.mubr.f32.mxu0 0.0
        %1290 = vmatmul.mubr.f32.gmra.mxu0 %v1053
        %v1291 = vpop.f32.mrf.mxu0
        %v1292 = vadd.f32 0.0, %v1291
        %v1293 = vpop.f32.mrf.mxu0
        %v1294 = vadd.f32 0.0, %v1293
        %1295 = vmatprep.mubr.f32.mxu0 0.0
        %1296 = vmatmul.mubr.f32.gmra.mxu0 %v1056
        %v1297 = vpop.f32.mrf.mxu0
        %v1298 = vadd.f32 0.0, %v1297
        %v1299 = vpop.f32.mrf.mxu0
        %v1300 = vadd.f32 0.0, %v1299
        %1301 = vdwg.mxu0
        %v1302 = vld [vmem:[#allocation4] sm:$0xff]
        %v1303 = vld [vmem:[#allocation4 + $0x8] sm:$0xff]
        %v1304 = vld [vmem:[#allocation4 + $0x10] sm:$0xff]
        %v1305 = vld [vmem:[#allocation4 + $0x18] sm:$0xff]
        %v1306 = vld [vmem:[#allocation4 + $0x20] sm:$0xff]
        %v1307 = vld [vmem:[#allocation4 + $0x28] sm:$0xff]
        %v1308 = vld [vmem:[#allocation4 + $0x30] sm:$0xff]
        %v1309 = vld [vmem:[#allocation4 + $0x38] sm:$0xff]
        %v1310 = vld [vmem:[#allocation4 + $0x40] sm:$0xff]
        %v1311 = vld [vmem:[#allocation4 + $0x48] sm:$0xff]
        %v1312 = vld [vmem:[#allocation4 + $0x50] sm:$0xff]
        %v1313 = vld [vmem:[#allocation4 + $0x58] sm:$0xff]
        %v1314 = vld [vmem:[#allocation4 + $0x60] sm:$0xff]
        %v1315 = vld [vmem:[#allocation4 + $0x68] sm:$0xff]
        %v1316 = vld [vmem:[#allocation4 + $0x70] sm:$0xff]
        %v1317 = vld [vmem:[#allocation4 + $0x78] sm:$0xff]
        %v1318 = vld [vmem:[#allocation4 + $0x80] sm:$0xff]
        %v1319 = vld [vmem:[#allocation4 + $0x88] sm:$0xff]
        %v1320 = vld [vmem:[#allocation4 + $0x90] sm:$0xff]
        %v1321 = vld [vmem:[#allocation4 + $0x98] sm:$0xff]
        %v1322 = vld [vmem:[#allocation4 + $0xa0] sm:$0xff]
        %v1323 = vld [vmem:[#allocation4 + $0xa8] sm:$0xff]
        %v1324 = vld [vmem:[#allocation4 + $0xb0] sm:$0xff]
        %v1325 = vld [vmem:[#allocation4 + $0xb8] sm:$0xff]
        %v1326 = vld [vmem:[#allocation4 + $0xc0] sm:$0xff]
        %v1327 = vld [vmem:[#allocation4 + $0xc8] sm:$0xff]
        %v1328 = vld [vmem:[#allocation4 + $0xd0] sm:$0xff]
        %v1329 = vld [vmem:[#allocation4 + $0xd8] sm:$0xff]
        %v1330 = vld [vmem:[#allocation4 + $0xe0] sm:$0xff]
        %v1331 = vld [vmem:[#allocation4 + $0xe8] sm:$0xff]
        %v1332 = vld [vmem:[#allocation4 + $0xf0] sm:$0xff]
        %v1333 = vld [vmem:[#allocation4 + $0xf8] sm:$0xff]
        %v1334 = vld [vmem:[#allocation4 + $0x100] sm:$0xff]
        %v1335 = vld [vmem:[#allocation4 + $0x108] sm:$0xff]
        %v1336 = vld [vmem:[#allocation4 + $0x110] sm:$0xff]
        %v1337 = vld [vmem:[#allocation4 + $0x118] sm:$0xff]
        %v1338 = vld [vmem:[#allocation4 + $0x120] sm:$0xff]
        %v1339 = vld [vmem:[#allocation4 + $0x128] sm:$0xff]
        %v1340 = vld [vmem:[#allocation4 + $0x130] sm:$0xff]
        %v1341 = vld [vmem:[#allocation4 + $0x138] sm:$0xff]
        %v1342 = vld [vmem:[#allocation4 + $0x140] sm:$0xff]
        %v1343 = vld [vmem:[#allocation4 + $0x148] sm:$0xff]
        %v1344 = vld [vmem:[#allocation4 + $0x150] sm:$0xff]
        %v1345 = vld [vmem:[#allocation4 + $0x158] sm:$0xff]
        %v1346 = vld [vmem:[#allocation4 + $0x160] sm:$0xff]
        %v1347 = vld [vmem:[#allocation4 + $0x168] sm:$0xff]
        %v1348 = vld [vmem:[#allocation4 + $0x170] sm:$0xff]
        %v1349 = vld [vmem:[#allocation4 + $0x178] sm:$0xff]
        %v1350 = vld [vmem:[#allocation4 + $0x180] sm:$0xff]
        %v1351 = vld [vmem:[#allocation4 + $0x188] sm:$0xff]
        %v1352 = vld [vmem:[#allocation4 + $0x190] sm:$0xff]
        %v1353 = vld [vmem:[#allocation4 + $0x198] sm:$0xff]
        %v1354 = vld [vmem:[#allocation4 + $0x1a0] sm:$0xff]
        %v1355 = vld [vmem:[#allocation4 + $0x1a8] sm:$0xff]
        %v1356 = vld [vmem:[#allocation4 + $0x1b0] sm:$0xff]
        %v1357 = vld [vmem:[#allocation4 + $0x1b8] sm:$0xff]
        %v1358 = vld [vmem:[#allocation4 + $0x1c0] sm:$0xff]
        %v1359 = vld [vmem:[#allocation4 + $0x1c8] sm:$0xff]
        %v1360 = vld [vmem:[#allocation4 + $0x1d0] sm:$0xff]
        %v1361 = vld [vmem:[#allocation4 + $0x1d8] sm:$0xff]
        %v1362 = vld [vmem:[#allocation4 + $0x1e0] sm:$0xff]
        %v1363 = vld [vmem:[#allocation4 + $0x1e8] sm:$0xff]
        %v1364 = vld [vmem:[#allocation4 + $0x1f0] sm:$0xff]
        %v1365 = vld [vmem:[#allocation4 + $0x1f8] sm:$0xff]
        %1366 = vmatprep.subr.mxu0 %v1333
        %1367 = vmatpush1.msra.mxu0 %v1332
        %1368 = vmatprep.subr.mxu0 %v1331
        %1369 = vmatpush1.msra.mxu0 %v1330
        %1370 = vmatprep.subr.mxu0 %v1329
        %1371 = vmatpush1.msra.mxu0 %v1328
        %1372 = vmatprep.subr.mxu0 %v1327
        %1373 = vmatpush1.msra.mxu0 %v1326
        %1374 = vmatprep.subr.mxu0 %v1325
        %1375 = vmatpush1.msra.mxu0 %v1324
        %1376 = vmatprep.subr.mxu0 %v1323
        %1377 = vmatpush1.msra.mxu0 %v1322
        %1378 = vmatprep.subr.mxu0 %v1321
        %1379 = vmatpush1.msra.mxu0 %v1320
        %1380 = vmatprep.subr.mxu0 %v1319
        %1381 = vmatpush1.msra.mxu0 %v1318
        %1382 = vmatprep.subr.mxu0 %v1317
        %1383 = vmatpush1.msra.mxu0 %v1316
        %1384 = vmatprep.subr.mxu0 %v1315
        %1385 = vmatpush1.msra.mxu0 %v1314
        %1386 = vmatprep.subr.mxu0 %v1313
        %1387 = vmatpush1.msra.mxu0 %v1312
        %1388 = vmatprep.subr.mxu0 %v1311
        %1389 = vmatpush1.msra.mxu0 %v1310
        %1390 = vmatprep.subr.mxu0 %v1309
        %1391 = vmatpush1.msra.mxu0 %v1308
        %1392 = vmatprep.subr.mxu0 %v1307
        %1393 = vmatpush1.msra.mxu0 %v1306
        %1394 = vmatprep.subr.mxu0 %v1305
        %1395 = vmatpush1.msra.mxu0 %v1304
        %1396 = vmatprep.subr.mxu0 %v1303
        %1397 = vmatpush1.msra.mxu0 %v1302
        %1398 = vmatprep.subr.mxu0 %v1365
        %1399 = vmatpush2.msra.mxu0 %v1364
        %1400 = vmatprep.subr.mxu0 %v1363
        %1401 = vmatpush2.msra.mxu0 %v1362
        %1402 = vmatprep.subr.mxu0 %v1361
        %1403 = vmatpush2.msra.mxu0 %v1360
        %1404 = vmatprep.subr.mxu0 %v1359
        %1405 = vmatpush2.msra.mxu0 %v1358
        %1406 = vmatprep.subr.mxu0 %v1357
        %1407 = vmatpush2.msra.mxu0 %v1356
        %1408 = vmatprep.subr.mxu0 %v1355
        %1409 = vmatpush2.msra.mxu0 %v1354
        %1410 = vmatprep.subr.mxu0 %v1353
        %1411 = vmatpush2.msra.mxu0 %v1352
        %1412 = vmatprep.subr.mxu0 %v1351
        %1413 = vmatpush2.msra.mxu0 %v1350
        %1414 = vmatprep.subr.mxu0 %v1349
        %1415 = vmatpush2.msra.mxu0 %v1348
        %1416 = vmatprep.subr.mxu0 %v1347
        %1417 = vmatpush2.msra.mxu0 %v1346
        %1418 = vmatprep.subr.mxu0 %v1345
        %1419 = vmatpush2.msra.mxu0 %v1344
        %1420 = vmatprep.subr.mxu0 %v1343
        %1421 = vmatpush2.msra.mxu0 %v1342
        %1422 = vmatprep.subr.mxu0 %v1341
        %1423 = vmatpush2.msra.mxu0 %v1340
        %1424 = vmatprep.subr.mxu0 %v1339
        %1425 = vmatpush2.msra.mxu0 %v1338
        %1426 = vmatprep.subr.mxu0 %v1337
        %1427 = vmatpush2.msra.mxu0 %v1336
        %1428 = vmatprep.subr.mxu0 %v1335
        %1429 = vmatpush2.msra.mxu0 %v1334
        %1430 = vmatprep.mubr.f32.mxu0 %v1294
        %1431 = vmatmul.mubr.f32.gmra.mxu0 %v1292
        %v1432 = vpop.f32.mrf.mxu0
        %v1433 = vadd.f32 0.0, %v1432
        %v1434 = vpop.f32.mrf.mxu0
        %v1435 = vadd.f32 0.0, %v1434
        %1436 = vmatprep.mubr.f32.mxu0 %v1300
        %1437 = vmatmul.mubr.f32.gmra.mxu0 %v1298
        %v1438 = vpop.f32.mrf.mxu0
        %v1439 = vadd.f32 0.0, %v1438
        %v1440 = vpop.f32.mrf.mxu0
        %v1441 = vadd.f32 0.0, %v1440
        %1442 = vdwg.mxu0
        %1443 = vmatprep.subr.mxu0 0.0
        %1444 = vmatpush1.msra.mxu0 0.0
        %1445 = vmatprep.subr.mxu0 0.0
        %1446 = vmatpush1.msra.mxu0 0.0
        %1447 = vmatprep.subr.mxu0 0.0
        %1448 = vmatpush1.msra.mxu0 0.0
        %1449 = vmatprep.subr.mxu0 0.0
        %1450 = vmatpush1.msra.mxu0 0.0
        %1451 = vmatprep.subr.mxu0 0.0
        %1452 = vmatpush1.msra.mxu0 0.0
        %1453 = vmatprep.subr.mxu0 0.0
        %1454 = vmatpush1.msra.mxu0 0.0
        %1455 = vmatprep.subr.mxu0 0.0
        %1456 = vmatpush1.msra.mxu0 0.0
        %1457 = vmatprep.subr.mxu0 0.0
        %1458 = vmatpush1.msra.mxu0 0.0
        %1459 = vmatprep.subr.mxu0 0.0
        %1460 = vmatpush1.msra.mxu0 0.0
        %1461 = vmatprep.subr.mxu0 0.0
        %1462 = vmatpush1.msra.mxu0 0.0
        %1463 = vmatprep.subr.mxu0 0.0
        %1464 = vmatpush1.msra.mxu0 0.0
        %1465 = vmatprep.subr.mxu0 0.0
        %1466 = vmatpush1.msra.mxu0 0.0
        %1467 = vmatprep.subr.mxu0 0.0
        %1468 = vmatpush1.msra.mxu0 0.0
        %1469 = vmatprep.subr.mxu0 0.0
        %1470 = vmatpush1.msra.mxu0 0.0
        %1471 = vmatprep.subr.mxu0 %v1441
        %1472 = vmatpush1.msra.mxu0 %v1439
        %1473 = vmatprep.subr.mxu0 %v1435
        %1474 = vmatpush1.msra.mxu0 %v1433
        %1475 = vmatprep.subr.mxu0 0.0
        %1476 = vmatpush2.msra.mxu0 0.0
        %1477 = vmatprep.subr.mxu0 0.0
        %1478 = vmatpush2.msra.mxu0 0.0
        %1479 = vmatprep.subr.mxu0 0.0
        %1480 = vmatpush2.msra.mxu0 0.0
        %1481 = vmatprep.subr.mxu0 0.0
        %1482 = vmatpush2.msra.mxu0 0.0
        %1483 = vmatprep.subr.mxu0 0.0
        %1484 = vmatpush2.msra.mxu0 0.0
        %1485 = vmatprep.subr.mxu0 0.0
        %1486 = vmatpush2.msra.mxu0 0.0
        %1487 = vmatprep.subr.mxu0 0.0
        %1488 = vmatpush2.msra.mxu0 0.0
        %1489 = vmatprep.subr.mxu0 0.0
        %1490 = vmatpush2.msra.mxu0 0.0
        %1491 = vmatprep.subr.mxu0 0.0
        %1492 = vmatpush2.msra.mxu0 0.0
        %1493 = vmatprep.subr.mxu0 0.0
        %1494 = vmatpush2.msra.mxu0 0.0
        %1495 = vmatprep.subr.mxu0 0.0
        %1496 = vmatpush2.msra.mxu0 0.0
        %1497 = vmatprep.subr.mxu0 0.0
        %1498 = vmatpush2.msra.mxu0 0.0
        %1499 = vmatprep.subr.mxu0 0.0
        %1500 = vmatpush2.msra.mxu0 0.0
        %1501 = vmatprep.subr.mxu0 0.0
        %1502 = vmatpush2.msra.mxu0 0.0
        %1503 = vmatprep.subr.mxu0 0.0
        %1504 = vmatpush2.msra.mxu0 0.0
        %1505 = vmatprep.subr.mxu0 0.0
        %1506 = vmatpush2.msra.mxu0 0.0
        %1507 = vmatprep.mubr.f32.mxu0 0.0
        %1508 = vmatmul.mubr.f32.gmra.mxu0 %v1053
        %v1509 = vpop.f32.mrf.mxu0
        %v1510 = vadd.f32 0.0, %v1509
        %v1511 = vpop.f32.mrf.mxu0
        %v1512 = vadd.f32 0.0, %v1511
        %1513 = vmatprep.mubr.f32.mxu0 0.0
        %1514 = vmatmul.mubr.f32.gmra.mxu0 %v1056
        %v1515 = vpop.f32.mrf.mxu0
        %v1516 = vadd.f32 0.0, %v1515
        %v1517 = vpop.f32.mrf.mxu0
        %v1518 = vadd.f32 0.0, %v1517
        %1519 = vdwg.mxu0
        %v1520 = vld [vmem:[#allocation7] sm:$0xff]
        %v1521 = vld [vmem:[#allocation7 + $0x8] sm:$0xff]
        %v1522 = vld [vmem:[#allocation7 + $0x10] sm:$0xff]
        %v1523 = vld [vmem:[#allocation7 + $0x18] sm:$0xff]
        %v1524 = vld [vmem:[#allocation7 + $0x20] sm:$0xff]
        %v1525 = vld [vmem:[#allocation7 + $0x28] sm:$0xff]
        %v1526 = vld [vmem:[#allocation7 + $0x30] sm:$0xff]
        %v1527 = vld [vmem:[#allocation7 + $0x38] sm:$0xff]
        %v1528 = vld [vmem:[#allocation7 + $0x40] sm:$0xff]
        %v1529 = vld [vmem:[#allocation7 + $0x48] sm:$0xff]
        %v1530 = vld [vmem:[#allocation7 + $0x50] sm:$0xff]
        %v1531 = vld [vmem:[#allocation7 + $0x58] sm:$0xff]
        %v1532 = vld [vmem:[#allocation7 + $0x60] sm:$0xff]
        %v1533 = vld [vmem:[#allocation7 + $0x68] sm:$0xff]
        %v1534 = vld [vmem:[#allocation7 + $0x70] sm:$0xff]
        %v1535 = vld [vmem:[#allocation7 + $0x78] sm:$0xff]
        %v1536 = vld [vmem:[#allocation7 + $0x80] sm:$0xff]
        %v1537 = vld [vmem:[#allocation7 + $0x88] sm:$0xff]
        %v1538 = vld [vmem:[#allocation7 + $0x90] sm:$0xff]
        %v1539 = vld [vmem:[#allocation7 + $0x98] sm:$0xff]
        %v1540 = vld [vmem:[#allocation7 + $0xa0] sm:$0xff]
        %v1541 = vld [vmem:[#allocation7 + $0xa8] sm:$0xff]
        %v1542 = vld [vmem:[#allocation7 + $0xb0] sm:$0xff]
        %v1543 = vld [vmem:[#allocation7 + $0xb8] sm:$0xff]
        %v1544 = vld [vmem:[#allocation7 + $0xc0] sm:$0xff]
        %v1545 = vld [vmem:[#allocation7 + $0xc8] sm:$0xff]
        %v1546 = vld [vmem:[#allocation7 + $0xd0] sm:$0xff]
        %v1547 = vld [vmem:[#allocation7 + $0xd8] sm:$0xff]
        %v1548 = vld [vmem:[#allocation7 + $0xe0] sm:$0xff]
        %v1549 = vld [vmem:[#allocation7 + $0xe8] sm:$0xff]
        %v1550 = vld [vmem:[#allocation7 + $0xf0] sm:$0xff]
        %v1551 = vld [vmem:[#allocation7 + $0xf8] sm:$0xff]
        %v1552 = vld [vmem:[#allocation7 + $0x100] sm:$0xff]
        %v1553 = vld [vmem:[#allocation7 + $0x108] sm:$0xff]
        %v1554 = vld [vmem:[#allocation7 + $0x110] sm:$0xff]
        %v1555 = vld [vmem:[#allocation7 + $0x118] sm:$0xff]
        %v1556 = vld [vmem:[#allocation7 + $0x120] sm:$0xff]
        %v1557 = vld [vmem:[#allocation7 + $0x128] sm:$0xff]
        %v1558 = vld [vmem:[#allocation7 + $0x130] sm:$0xff]
        %v1559 = vld [vmem:[#allocation7 + $0x138] sm:$0xff]
        %v1560 = vld [vmem:[#allocation7 + $0x140] sm:$0xff]
        %v1561 = vld [vmem:[#allocation7 + $0x148] sm:$0xff]
        %v1562 = vld [vmem:[#allocation7 + $0x150] sm:$0xff]
        %v1563 = vld [vmem:[#allocation7 + $0x158] sm:$0xff]
        %v1564 = vld [vmem:[#allocation7 + $0x160] sm:$0xff]
        %v1565 = vld [vmem:[#allocation7 + $0x168] sm:$0xff]
        %v1566 = vld [vmem:[#allocation7 + $0x170] sm:$0xff]
        %v1567 = vld [vmem:[#allocation7 + $0x178] sm:$0xff]
        %v1568 = vld [vmem:[#allocation7 + $0x180] sm:$0xff]
        %v1569 = vld [vmem:[#allocation7 + $0x188] sm:$0xff]
        %v1570 = vld [vmem:[#allocation7 + $0x190] sm:$0xff]
        %v1571 = vld [vmem:[#allocation7 + $0x198] sm:$0xff]
        %v1572 = vld [vmem:[#allocation7 + $0x1a0] sm:$0xff]
        %v1573 = vld [vmem:[#allocation7 + $0x1a8] sm:$0xff]
        %v1574 = vld [vmem:[#allocation7 + $0x1b0] sm:$0xff]
        %v1575 = vld [vmem:[#allocation7 + $0x1b8] sm:$0xff]
        %v1576 = vld [vmem:[#allocation7 + $0x1c0] sm:$0xff]
        %v1577 = vld [vmem:[#allocation7 + $0x1c8] sm:$0xff]
        %v1578 = vld [vmem:[#allocation7 + $0x1d0] sm:$0xff]
        %v1579 = vld [vmem:[#allocation7 + $0x1d8] sm:$0xff]
        %v1580 = vld [vmem:[#allocation7 + $0x1e0] sm:$0xff]
        %v1581 = vld [vmem:[#allocation7 + $0x1e8] sm:$0xff]
        %v1582 = vld [vmem:[#allocation7 + $0x1f0] sm:$0xff]
        %v1583 = vld [vmem:[#allocation7 + $0x1f8] sm:$0xff]
        %1584 = vmatprep.subr.mxu0 %v1551
        %1585 = vmatpush1.msra.mxu0 %v1550
        %1586 = vmatprep.subr.mxu0 %v1549
        %1587 = vmatpush1.msra.mxu0 %v1548
        %1588 = vmatprep.subr.mxu0 %v1547
        %1589 = vmatpush1.msra.mxu0 %v1546
        %1590 = vmatprep.subr.mxu0 %v1545
        %1591 = vmatpush1.msra.mxu0 %v1544
        %1592 = vmatprep.subr.mxu0 %v1543
        %1593 = vmatpush1.msra.mxu0 %v1542
        %1594 = vmatprep.subr.mxu0 %v1541
        %1595 = vmatpush1.msra.mxu0 %v1540
        %1596 = vmatprep.subr.mxu0 %v1539
        %1597 = vmatpush1.msra.mxu0 %v1538
        %1598 = vmatprep.subr.mxu0 %v1537
        %1599 = vmatpush1.msra.mxu0 %v1536
        %1600 = vmatprep.subr.mxu0 %v1535
        %1601 = vmatpush1.msra.mxu0 %v1534
        %1602 = vmatprep.subr.mxu0 %v1533
        %1603 = vmatpush1.msra.mxu0 %v1532
        %1604 = vmatprep.subr.mxu0 %v1531
        %1605 = vmatpush1.msra.mxu0 %v1530
        %1606 = vmatprep.subr.mxu0 %v1529
        %1607 = vmatpush1.msra.mxu0 %v1528
        %1608 = vmatprep.subr.mxu0 %v1527
        %1609 = vmatpush1.msra.mxu0 %v1526
        %1610 = vmatprep.subr.mxu0 %v1525
        %1611 = vmatpush1.msra.mxu0 %v1524
        %1612 = vmatprep.subr.mxu0 %v1523
        %1613 = vmatpush1.msra.mxu0 %v1522
        %1614 = vmatprep.subr.mxu0 %v1521
        %1615 = vmatpush1.msra.mxu0 %v1520
        %1616 = vmatprep.subr.mxu0 %v1583
        %1617 = vmatpush2.msra.mxu0 %v1582
        %1618 = vmatprep.subr.mxu0 %v1581
        %1619 = vmatpush2.msra.mxu0 %v1580
        %1620 = vmatprep.subr.mxu0 %v1579
        %1621 = vmatpush2.msra.mxu0 %v1578
        %1622 = vmatprep.subr.mxu0 %v1577
        %1623 = vmatpush2.msra.mxu0 %v1576
        %1624 = vmatprep.subr.mxu0 %v1575
        %1625 = vmatpush2.msra.mxu0 %v1574
        %1626 = vmatprep.subr.mxu0 %v1573
        %1627 = vmatpush2.msra.mxu0 %v1572
        %1628 = vmatprep.subr.mxu0 %v1571
        %1629 = vmatpush2.msra.mxu0 %v1570
        %1630 = vmatprep.subr.mxu0 %v1569
        %1631 = vmatpush2.msra.mxu0 %v1568
        %1632 = vmatprep.subr.mxu0 %v1567
        %1633 = vmatpush2.msra.mxu0 %v1566
        %1634 = vmatprep.subr.mxu0 %v1565
        %1635 = vmatpush2.msra.mxu0 %v1564
        %1636 = vmatprep.subr.mxu0 %v1563
        %1637 = vmatpush2.msra.mxu0 %v1562
        %1638 = vmatprep.subr.mxu0 %v1561
        %1639 = vmatpush2.msra.mxu0 %v1560
        %1640 = vmatprep.subr.mxu0 %v1559
        %1641 = vmatpush2.msra.mxu0 %v1558
        %1642 = vmatprep.subr.mxu0 %v1557
        %1643 = vmatpush2.msra.mxu0 %v1556
        %1644 = vmatprep.subr.mxu0 %v1555
        %1645 = vmatpush2.msra.mxu0 %v1554
        %1646 = vmatprep.subr.mxu0 %v1553
        %1647 = vmatpush2.msra.mxu0 %v1552
        %1648 = vmatprep.mubr.f32.mxu0 %v1512
        %1649 = vmatmul.mubr.f32.gmra.mxu0 %v1510
        %v1650 = vpop.f32.mrf.mxu0
        %v1651 = vadd.f32 0.0, %v1650
        %v1652 = vpop.f32.mrf.mxu0
        %v1653 = vadd.f32 0.0, %v1652
        %1654 = vmatprep.mubr.f32.mxu0 %v1518
        %1655 = vmatmul.mubr.f32.gmra.mxu0 %v1516
        %v1656 = vpop.f32.mrf.mxu0
        %v1657 = vadd.f32 0.0, %v1656
        %v1658 = vpop.f32.mrf.mxu0
        %v1659 = vadd.f32 0.0, %v1658
        %1660 = vdwg.mxu0
        %v1661 = vld [vmem:[#allocation3] sm:$0xff]
        %v1662 = vld [vmem:[#allocation3 + $0x8] sm:$0xff]
        %v1663 = vld [vmem:[#allocation3 + $0x10] sm:$0xff]
        %v1664 = vld [vmem:[#allocation3 + $0x18] sm:$0xff]
        %v1665 = vadd.f32 %v1661, %v1651
        %v1666 = vadd.f32 %v1662, %v1653
        %v1667 = vadd.f32 %v1663, %v1657
        %v1668 = vadd.f32 %v1664, %v1659
        %v1669 = vmax.f32 %v1665, 0.0
        %v1670 = vmax.f32 %v1666, 0.0
        %v1671 = vmax.f32 %v1667, 0.0
        %v1672 = vmax.f32 %v1668, 0.0
        %v1673 = vsub.f32 %v1661, %v1651
        %v1674 = vsub.f32 %v1662, %v1653
        %v1675 = vsub.f32 %v1663, %v1657
        %v1676 = vsub.f32 %v1664, %v1659
        %v1677 = vmax.f32 %v1673, 0.0
        %v1678 = vmax.f32 %v1674, 0.0
        %v1679 = vmax.f32 %v1675, 0.0
        %v1680 = vmax.f32 %v1676, 0.0
        %v1681 = vadd.f32 %v1669, %v1677
        %v1682 = vadd.f32 %v1670, %v1678
        %v1683 = vadd.f32 %v1671, %v1679
        %v1684 = vadd.f32 %v1672, %v1680
        %s1685 = smul.u32 %s33, 16
        %s1686 = smul.u32 %s34, 8
        %s1687 = sadd.s32 %s1685, %s1686
        %v1688 = vlaneseq
        %v1689 = vand.u32 %v1688, 127
        %v1690 = vadd.s32 %v1689, 128
        %v1691 = vld [vmem:[%s0] sm:$0xff]
        %v1692 = vld [vmem:[%s0 + $0x8] sm:$0xff]
        %v1693 = vstv %s1687
        %v1694 = vsub.s32 %v1691, %v1693
        %v1695 = vsub.s32 %v1692, %v1693
        %v1696 = vmul.u32 %v1694, 32
        %v1697 = vmul.u32 %v1695, 32
        %1698 = vset.pattern.permute.xlu0 0
        %1699 = vperm.xlu0 %1698, %v1696
        %v1700 = vpop.permute.xlu0 %1699
        %1701 = vset.pattern.permute.xlu0 0
        %1702 = vperm.xlu0 %1701, %v1697
        %v1703 = vpop.permute.xlu0 %1702
        %vm1704 = vcmp.lt.s32.totalorder %v1689, %v1700
        %vm1705 = vcmp.lt.s32.totalorder %v1690, %v1700
        %vm1706 = vcmp.lt.s32.totalorder %v1689, %v1703
        %vm1707 = vcmp.lt.s32.totalorder %v1690, %v1703
        %v1708 = vsel %vm1704, 1, 0
        %v1709 = vsel %vm1705, 1, 0
        %v1710 = vsel %vm1706, 1, 0
        %v1711 = vsel %vm1707, 1, 0
        %v1712 = vcvt.s32.f32 %v1708
        %v1713 = vcvt.s32.f32 %v1709
        %v1714 = vcvt.s32.f32 %v1710
        %v1715 = vcvt.s32.f32 %v1711
        %vm1716 = vcmp.gt.s32.totalorder %v1694, 0
        %v1717 = vsel %vm1716, %v1694, 0
        %vm1718 = vcmp.gt.s32.totalorder %v1695, 0
        %v1719 = vsel %vm1718, %v1695, 0
        %vm1720 = vcmp.lt.s32.totalorder %v1717, 8
        %v1721 = vsel %vm1720, %v1717, 8
        %vm1722 = vcmp.lt.s32.totalorder %v1719, 8
        %v1723 = vsel %vm1722, %v1719, 8
        %v1724 = vcvt.s32.f32 %v1721
        %v1725 = vcvt.s32.f32 %v1723
        %v1726 = vld [vmem:[#allocation2] sm:$0xff]
        %v1727 = vld [vmem:[#allocation2 + $0x8] sm:$0xff]
        %v1728 = vmul.f32 %v1681, %v1712
        %v1729 = vmul.f32 %v1682, %v1713
        %v1730 = vmul.f32 %v1683, %v1714
        %v1731 = vmul.f32 %v1684, %v1715
        %v1732 = vld [vmem:[#allocation9] sm:$0xff]
        %v1733 = vld [vmem:[#allocation9 + $0x8] sm:$0xff]
        %v1734 = vld [vmem:[#allocation9 + $0x10] sm:$0xff]
        %v1735 = vld [vmem:[#allocation9 + $0x18] sm:$0xff]
        %v1736 = vld [vmem:[#allocation9 + $0x20] sm:$0xff]
        %v1737 = vld [vmem:[#allocation9 + $0x28] sm:$0xff]
        %v1738 = vld [vmem:[#allocation9 + $0x30] sm:$0xff]
        %v1739 = vld [vmem:[#allocation9 + $0x38] sm:$0xff]
        %v1740 = vld [vmem:[#allocation9 + $0x40] sm:$0xff]
        %v1741 = vld [vmem:[#allocation9 + $0x48] sm:$0xff]
        %v1742 = vld [vmem:[#allocation9 + $0x50] sm:$0xff]
        %v1743 = vld [vmem:[#allocation9 + $0x58] sm:$0xff]
        %v1744 = vld [vmem:[#allocation9 + $0x60] sm:$0xff]
        %v1745 = vld [vmem:[#allocation9 + $0x68] sm:$0xff]
        %v1746 = vld [vmem:[#allocation9 + $0x70] sm:$0xff]
        %v1747 = vld [vmem:[#allocation9 + $0x78] sm:$0xff]
        %v1748 = vld [vmem:[#allocation9 + $0x80] sm:$0xff]
        %v1749 = vld [vmem:[#allocation9 + $0x88] sm:$0xff]
        %v1750 = vld [vmem:[#allocation9 + $0x90] sm:$0xff]
        %v1751 = vld [vmem:[#allocation9 + $0x98] sm:$0xff]
        %v1752 = vld [vmem:[#allocation9 + $0xa0] sm:$0xff]
        %v1753 = vld [vmem:[#allocation9 + $0xa8] sm:$0xff]
        %v1754 = vld [vmem:[#allocation9 + $0xb0] sm:$0xff]
        %v1755 = vld [vmem:[#allocation9 + $0xb8] sm:$0xff]
        %v1756 = vld [vmem:[#allocation9 + $0xc0] sm:$0xff]
        %v1757 = vld [vmem:[#allocation9 + $0xc8] sm:$0xff]
        %v1758 = vld [vmem:[#allocation9 + $0xd0] sm:$0xff]
        %v1759 = vld [vmem:[#allocation9 + $0xd8] sm:$0xff]
        %v1760 = vld [vmem:[#allocation9 + $0xe0] sm:$0xff]
        %v1761 = vld [vmem:[#allocation9 + $0xe8] sm:$0xff]
        %v1762 = vld [vmem:[#allocation9 + $0xf0] sm:$0xff]
        %v1763 = vld [vmem:[#allocation9 + $0xf8] sm:$0xff]
        %v1764 = vmul.f32 %v1724, 2.0
        %v1765 = vmul.f32 %v1725, 2.0
        %v1766 = vld [vmem:[%s10] sm:$0x1]
        %1768 = vset.pattern.permute.xlu0 0
        %1769 = vperm.xlu0 %1768, %v1764
        %v1770 = vpop.permute.xlu0 %1769
        %1773 = vset.pattern.permute.xlu0 0
        %1774 = vperm.xlu0 %1773, %v1765
        %v1775 = vpop.permute.xlu0 %1774
        %v1778 = vlaneseq
        %v1779 = vshrl.u32 %v1778, 7
        %v1780 = vsub.s32 0, %v1779
        %v1781 = vrot.slane %v1766, %v1780
        %v1783 = vmul.f32 %v1770, %v1781
        %v1784 = vmul.f32 %v1775, %v1781
        %1785 = vmatprep.subr.mxu0 0.0
        %1786 = vmatpush1.msra.mxu0 %v1747
        %1787 = vmatprep.subr.mxu0 0.0
        %1788 = vmatpush1.msra.mxu0 %v1746
        %1789 = vmatprep.subr.mxu0 0.0
        %1790 = vmatpush1.msra.mxu0 %v1745
        %1791 = vmatprep.subr.mxu0 0.0
        %1792 = vmatpush1.msra.mxu0 %v1744
        %1793 = vmatprep.subr.mxu0 0.0
        %1794 = vmatpush1.msra.mxu0 %v1743
        %1795 = vmatprep.subr.mxu0 0.0
        %1796 = vmatpush1.msra.mxu0 %v1742
        %1797 = vmatprep.subr.mxu0 0.0
        %1798 = vmatpush1.msra.mxu0 %v1741
        %1799 = vmatprep.subr.mxu0 0.0
        %1800 = vmatpush1.msra.mxu0 %v1740
        %1801 = vmatprep.subr.mxu0 0.0
        %1802 = vmatpush1.msra.mxu0 %v1739
        %1803 = vmatprep.subr.mxu0 0.0
        %1804 = vmatpush1.msra.mxu0 %v1738
        %1805 = vmatprep.subr.mxu0 0.0
        %1806 = vmatpush1.msra.mxu0 %v1737
        %1807 = vmatprep.subr.mxu0 0.0
        %1808 = vmatpush1.msra.mxu0 %v1736
        %1809 = vmatprep.subr.mxu0 0.0
        %1810 = vmatpush1.msra.mxu0 %v1735
        %1811 = vmatprep.subr.mxu0 0.0
        %1812 = vmatpush1.msra.mxu0 %v1734
        %1813 = vmatprep.subr.mxu0 0.0
        %1814 = vmatpush1.msra.mxu0 %v1733
        %1815 = vmatprep.subr.mxu0 0.0
        %1816 = vmatpush1.msra.mxu0 %v1732
        %1817 = vmatprep.subr.mxu0 0.0
        %1818 = vmatpush2.msra.mxu0 %v1763
        %1819 = vmatprep.subr.mxu0 0.0
        %1820 = vmatpush2.msra.mxu0 %v1762
        %1821 = vmatprep.subr.mxu0 0.0
        %1822 = vmatpush2.msra.mxu0 %v1761
        %1823 = vmatprep.subr.mxu0 0.0
        %1824 = vmatpush2.msra.mxu0 %v1760
        %1825 = vmatprep.subr.mxu0 0.0
        %1826 = vmatpush2.msra.mxu0 %v1759
        %1827 = vmatprep.subr.mxu0 0.0
        %1828 = vmatpush2.msra.mxu0 %v1758
        %1829 = vmatprep.subr.mxu0 0.0
        %1830 = vmatpush2.msra.mxu0 %v1757
        %1831 = vmatprep.subr.mxu0 0.0
        %1832 = vmatpush2.msra.mxu0 %v1756
        %1833 = vmatprep.subr.mxu0 0.0
        %1834 = vmatpush2.msra.mxu0 %v1755
        %1835 = vmatprep.subr.mxu0 0.0
        %1836 = vmatpush2.msra.mxu0 %v1754
        %1837 = vmatprep.subr.mxu0 0.0
        %1838 = vmatpush2.msra.mxu0 %v1753
        %1839 = vmatprep.subr.mxu0 0.0
        %1840 = vmatpush2.msra.mxu0 %v1752
        %1841 = vmatprep.subr.mxu0 0.0
        %1842 = vmatpush2.msra.mxu0 %v1751
        %1843 = vmatprep.subr.mxu0 0.0
        %1844 = vmatpush2.msra.mxu0 %v1750
        %1845 = vmatprep.subr.mxu0 0.0
        %1846 = vmatpush2.msra.mxu0 %v1749
        %1847 = vmatprep.subr.mxu0 0.0
        %1848 = vmatpush2.msra.mxu0 %v1748
        %1849 = vmatprep.mubr.f32.mxu0 %v1729
        %1850 = vmatmul.mubr.f32.gmra.mxu0 %v1728
        %v1851 = vpop.f32.mrf.mxu0
        %v1852 = vadd.f32 %v1783, %v1851
        %v1853 = vpop.f32.mrf.mxu0
        %1854 = vmatprep.mubr.f32.mxu0 %v1731
        %1855 = vmatmul.mubr.f32.gmra.mxu0 %v1730
        %v1856 = vpop.f32.mrf.mxu0
        %v1857 = vadd.f32 %v1784, %v1856
        %v1858 = vpop.f32.mrf.mxu0
        %1859 = vdwg.mxu0
        %v1860 = vadd.f32 %v1726, %v1852
        %v1861 = vadd.f32 %v1727, %v1857
        %1862 = vst [vmem:[#allocation2] sm:$0xff] %v1860
        %1863 = vst [vmem:[#allocation2 + $0x8] sm:$0xff] %v1861
        %p1864 = scmp.eq.s32.totalorder %s34, 1
        // Predicated region
        $region97: #{tpu_custom_call.1} parent=79 // pred_check
          %p1865 = pneg %p1864
        $region98: #{tpu_custom_call.1} parent=79 // pred_check_branch
          %1867 = sbr.rel (%p1865) target = $region100
        $region99: #{tpu_custom_call.1} parent=79 // pred_region
          %v1868 = vld [vmem:[#allocation2] sm:$0xff]
          %v1869 = vld [vmem:[#allocation2 + $0x8] sm:$0xff]
          %v1870 = vld [vmem:[%s11] sm:$0xff]
          %v1871 = vld [vmem:[%s11 + $0x8] sm:$0xff]
          %v1872 = vld [vmem:[%s11 + $0x10] sm:$0xff]
          %v1873 = vld [vmem:[%s11 + $0x18] sm:$0xff]
          %v1874 = vld [vmem:[%s11 + $0x20] sm:$0xff]
          %v1875 = vld [vmem:[%s11 + $0x28] sm:$0xff]
          %v1876 = vld [vmem:[%s11 + $0x30] sm:$0xff]
          %v1877 = vld [vmem:[%s11 + $0x38] sm:$0xff]
          %v1878 = vld [vmem:[%s11 + $0x40] sm:$0xff]
          %v1879 = vld [vmem:[%s11 + $0x48] sm:$0xff]
          %v1880 = vld [vmem:[%s11 + $0x50] sm:$0xff]
          %v1881 = vld [vmem:[%s11 + $0x58] sm:$0xff]
          %v1882 = vld [vmem:[%s11 + $0x60] sm:$0xff]
          %v1883 = vld [vmem:[%s11 + $0x68] sm:$0xff]
          %v1884 = vld [vmem:[%s11 + $0x70] sm:$0xff]
          %v1885 = vld [vmem:[%s11 + $0x78] sm:$0xff]
          %v1886 = vld [vmem:[%s12] sm:$0x1]
          %v1888 = vlaneseq
          %v1889 = vshrl.u32 %v1888, 7
          %v1890 = vsub.s32 0, %v1889
          %v1891 = vrot.slane %v1886, %v1890
          %1893 = vmatprep.subr.mxu0 0.0
          %1894 = vmatpush1.msra.mxu0 %v1885
          %1895 = vmatprep.subr.mxu0 0.0
          %1896 = vmatpush1.msra.mxu0 %v1884
          %1897 = vmatprep.subr.mxu0 0.0
          %1898 = vmatpush1.msra.mxu0 %v1883
          %1899 = vmatprep.subr.mxu0 0.0
          %1900 = vmatpush1.msra.mxu0 %v1882
          %1901 = vmatprep.subr.mxu0 0.0
          %1902 = vmatpush1.msra.mxu0 %v1881
          %1903 = vmatprep.subr.mxu0 0.0
          %1904 = vmatpush1.msra.mxu0 %v1880
          %1905 = vmatprep.subr.mxu0 0.0
          %1906 = vmatpush1.msra.mxu0 %v1879
          %1907 = vmatprep.subr.mxu0 0.0
          %1908 = vmatpush1.msra.mxu0 %v1878
          %1909 = vmatprep.subr.mxu0 0.0
          %1910 = vmatpush1.msra.mxu0 %v1877
          %1911 = vmatprep.subr.mxu0 0.0
          %1912 = vmatpush1.msra.mxu0 %v1876
          %1913 = vmatprep.subr.mxu0 0.0
          %1914 = vmatpush1.msra.mxu0 %v1875
          %1915 = vmatprep.subr.mxu0 0.0
          %1916 = vmatpush1.msra.mxu0 %v1874
          %1917 = vmatprep.subr.mxu0 0.0
          %1918 = vmatpush1.msra.mxu0 %v1873
          %1919 = vmatprep.subr.mxu0 0.0
          %1920 = vmatpush1.msra.mxu0 %v1872
          %1921 = vmatprep.subr.mxu0 0.0
          %1922 = vmatpush1.msra.mxu0 %v1871
          %1923 = vmatprep.subr.mxu0 0.0
          %1924 = vmatpush1.msra.mxu0 %v1870
          %1925 = vmatprep.subr.mxu0 0.0
          %1926 = vmatpush2.msra.mxu0 0.0
          %1927 = vmatprep.subr.mxu0 0.0
          %1928 = vmatpush2.msra.mxu0 0.0
          %1929 = vmatprep.subr.mxu0 0.0
          %1930 = vmatpush2.msra.mxu0 0.0
          %1931 = vmatprep.subr.mxu0 0.0
          %1932 = vmatpush2.msra.mxu0 0.0
          %1933 = vmatprep.subr.mxu0 0.0
          %1934 = vmatpush2.msra.mxu0 0.0
          %1935 = vmatprep.subr.mxu0 0.0
          %1936 = vmatpush2.msra.mxu0 0.0
          %1937 = vmatprep.subr.mxu0 0.0
          %1938 = vmatpush2.msra.mxu0 0.0
          %1939 = vmatprep.subr.mxu0 0.0
          %1940 = vmatpush2.msra.mxu0 0.0
          %1941 = vmatprep.subr.mxu0 0.0
          %1942 = vmatpush2.msra.mxu0 0.0
          %1943 = vmatprep.subr.mxu0 0.0
          %1944 = vmatpush2.msra.mxu0 0.0
          %1945 = vmatprep.subr.mxu0 0.0
          %1946 = vmatpush2.msra.mxu0 0.0
          %1947 = vmatprep.subr.mxu0 0.0
          %1948 = vmatpush2.msra.mxu0 0.0
          %1949 = vmatprep.subr.mxu0 0.0
          %1950 = vmatpush2.msra.mxu0 0.0
          %1951 = vmatprep.subr.mxu0 0.0
          %1952 = vmatpush2.msra.mxu0 0.0
          %1953 = vmatprep.subr.mxu0 0.0
          %1954 = vmatpush2.msra.mxu0 0.0
          %1955 = vmatprep.subr.mxu0 0.0
          %1956 = vmatpush2.msra.mxu0 0.0
          %1957 = vmatprep.mubr.f32.mxu0 0.0
          %1958 = vmatmul.mubr.f32.gmra.mxu0 %v1868
          %v1959 = vpop.f32.mrf.mxu0
          %v1960 = vadd.f32 %v1891, %v1959
          %v1961 = vpop.f32.mrf.mxu0
          %1962 = vmatprep.mubr.f32.mxu0 0.0
          %1963 = vmatmul.mubr.f32.gmra.mxu0 %v1869
          %v1964 = vpop.f32.mrf.mxu0
          %v1965 = vadd.f32 %v1891, %v1964
          %v1966 = vpop.f32.mrf.mxu0
          %1967 = vdwg.mxu0
          %v1968 = vmax.f32 %v1960, 0.0
          %v1969 = vmax.f32 %v1965, 0.0
          %v1970 = vld [vmem:[%s13] sm:$0xff]
          %v1971 = vld [vmem:[%s13 + $0x8] sm:$0xff]
          %v1972 = vld [vmem:[%s13 + $0x10] sm:$0xff]
          %v1973 = vld [vmem:[%s13 + $0x18] sm:$0xff]
          %v1974 = vld [vmem:[%s14] sm:$0x1]
          %v1976 = vlaneseq
          %v1977 = vshrl.u32 %v1976, 7
          %v1978 = vsub.s32 0, %v1977
          %v1979 = vrot.slane %v1974, %v1978
          %v1982 = vsel %vm1141, %v1968, 0
          %v1985 = vsel %vm1141, %v1969, 0
          %1987 = vmatprep.subr.mxu0 0.0
          %1988 = vmatpush1.msra.mxu0 0.0
          %1989 = vmatprep.subr.mxu0 0.0
          %1990 = vmatpush1.msra.mxu0 0.0
          %1991 = vmatprep.subr.mxu0 0.0
          %1992 = vmatpush1.msra.mxu0 0.0
          %1993 = vmatprep.subr.mxu0 0.0
          %1994 = vmatpush1.msra.mxu0 0.0
          %1995 = vmatprep.subr.mxu0 0.0
          %1996 = vmatpush1.msra.mxu0 0.0
          %1997 = vmatprep.subr.mxu0 0.0
          %1998 = vmatpush1.msra.mxu0 0.0
          %1999 = vmatprep.subr.mxu0 0.0
          %2000 = vmatpush1.msra.mxu0 0.0
          %2001 = vmatprep.subr.mxu0 0.0
          %2002 = vmatpush1.msra.mxu0 0.0
          %2003 = vmatprep.subr.mxu0 0.0
          %2004 = vmatpush1.msra.mxu0 0.0
          %2005 = vmatprep.subr.mxu0 0.0
          %2006 = vmatpush1.msra.mxu0 0.0
          %2007 = vmatprep.subr.mxu0 0.0
          %2008 = vmatpush1.msra.mxu0 0.0
          %2009 = vmatprep.subr.mxu0 0.0
          %2010 = vmatpush1.msra.mxu0 0.0
          %2011 = vmatprep.subr.mxu0 0.0
          %2012 = vmatpush1.msra.mxu0 %v1973
          %2013 = vmatprep.subr.mxu0 0.0
          %2014 = vmatpush1.msra.mxu0 %v1972
          %2015 = vmatprep.subr.mxu0 0.0
          %2016 = vmatpush1.msra.mxu0 %v1971
          %2017 = vmatprep.subr.mxu0 0.0
          %2018 = vmatpush1.msra.mxu0 %v1970
          %2019 = vmatprep.subr.mxu0 0.0
          %2020 = vmatpush2.msra.mxu0 0.0
          %2021 = vmatprep.subr.mxu0 0.0
          %2022 = vmatpush2.msra.mxu0 0.0
          %2023 = vmatprep.subr.mxu0 0.0
          %2024 = vmatpush2.msra.mxu0 0.0
          %2025 = vmatprep.subr.mxu0 0.0
          %2026 = vmatpush2.msra.mxu0 0.0
          %2027 = vmatprep.subr.mxu0 0.0
          %2028 = vmatpush2.msra.mxu0 0.0
          %2029 = vmatprep.subr.mxu0 0.0
          %2030 = vmatpush2.msra.mxu0 0.0
          %2031 = vmatprep.subr.mxu0 0.0
          %2032 = vmatpush2.msra.mxu0 0.0
          %2033 = vmatprep.subr.mxu0 0.0
          %2034 = vmatpush2.msra.mxu0 0.0
          %2035 = vmatprep.subr.mxu0 0.0
          %2036 = vmatpush2.msra.mxu0 0.0
          %2037 = vmatprep.subr.mxu0 0.0
          %2038 = vmatpush2.msra.mxu0 0.0
          %2039 = vmatprep.subr.mxu0 0.0
          %2040 = vmatpush2.msra.mxu0 0.0
          %2041 = vmatprep.subr.mxu0 0.0
          %2042 = vmatpush2.msra.mxu0 0.0
          %2043 = vmatprep.subr.mxu0 0.0
          %2044 = vmatpush2.msra.mxu0 0.0
          %2045 = vmatprep.subr.mxu0 0.0
          %2046 = vmatpush2.msra.mxu0 0.0
          %2047 = vmatprep.subr.mxu0 0.0
          %2048 = vmatpush2.msra.mxu0 0.0
          %2049 = vmatprep.subr.mxu0 0.0
          %2050 = vmatpush2.msra.mxu0 0.0
          %2051 = vmatprep.mubr.f32.mxu0 0.0
          %2052 = vmatmul.mubr.f32.gmra.mxu0 %v1982
          %v2053 = vpop.f32.mrf.mxu0
          %v2054 = vadd.f32 %v1979, %v2053
          %v2055 = vpop.f32.mrf.mxu0
          %2056 = vmatprep.mubr.f32.mxu0 0.0
          %2057 = vmatmul.mubr.f32.gmra.mxu0 %v1985
          %v2058 = vpop.f32.mrf.mxu0
          %v2059 = vadd.f32 %v1979, %v2058
          %v2060 = vpop.f32.mrf.mxu0
          %2061 = vdwg.mxu0
          %2062 = vst [vmem:[#allocation10] sm:$0xff] %v2054
          %2063 = vst [vmem:[#allocation10 + $0x8] sm:$0xff] %v2059
        $region100: #{tpu_custom_call.1} parent=79 // pred_fallthru
          _
        // Predicated region
        $region101: #{tpu_custom_call.1} parent=79 // pred_check
          %p2064 = pneg %p383
        $region102: #{tpu_custom_call.1} parent=79 // pred_check_branch
          %2066 = sbr.rel (%p2064) target = $region104
        $region103: #{tpu_custom_call.1} parent=79 // pred_region
          %s2068 = ssub.s32 256, 256
          %2069 = vsyncadd [#allocation6], %s2068
          %s2070 = smul.addr %s33, 2
          %s2071 = smul.addr %s2070, 128
          %s2072 = scalar_lea.hbm %s15, %s2071
          %s2073 = sshll.u32 [#allocation10], 4
          %s2074 = int_to_ptr.vmem [resolvable:$true] %s2073
          %2079 = dma.vmem_to_hbm [thread:$0]  %s2074, 256, %s2072, [#allocation6], 128, 128, 8
        $region104: #{tpu_custom_call.1} parent=79 // pred_fallthru
          _
        // Predicated region
        $region105: #{tpu_custom_call.1} parent=79 // pred_check
          %p2080 = pneg %p383
        $region106: #{tpu_custom_call.1} parent=79 // pred_check_branch
          %2082 = sbr.rel (%p2080) target = $region108
        $region107: #{tpu_custom_call.1} parent=79 // pred_region
          %2083 = dma.done [#allocation6], 256
        $region108: #{tpu_custom_call.1} parent=79 // pred_fallthru
          _
      $region80: #{tpu_custom_call.1} parent=5 // pred_fallthru
        _
      %p2084 = scmp.le.s32.totalorder 2, %s24
      // Predicated region
      $region109: #{tpu_custom_call.1} parent=5 // pred_check
        %p2085 = pneg %p2084
      $region110: #{tpu_custom_call.1} parent=5 // pred_check_branch
        %2087 = sbr.rel (%p2085) target = $region112
      $region111: #{tpu_custom_call.1} parent=5 // pred_region
        %s2088 = ssub.s32 %s24, 2
      $region112: #{tpu_custom_call.1} parent=5 // pred_fallthru
        _
    $region6: #{tpu_custom_call.1} parent=1 // loop_footer
      %s28 = sadd.s32 1, %s24
    $region7: #{tpu_custom_call.1} parent=1 // loop_footer_branch
      %23 = sbr.rel target = $region3
    $region8: #{tpu_custom_call.1} parent=1 // loop_exit
      _
    %2089 = vsyncpa [#allocation5], 1
    %s2090 = scalar_lea.sflag [#allocation5], 1
    %2091 = vsyncpa %s2090, 1
    %2092 = vsyncpa [#allocation8], 1
    %2093 = vsyncpa [#allocation6], 1
    %s2094 = scalar_lea.sflag [#allocation6], 1
    %2095 = vsyncpa %s2094, 1

// kernel: tpu_custom_call.1
$region0: #{tpu_custom_call.1}
  #allocation0 [shape = 'u32[]', space=smem, size = 0x4, offset = 0x4, fixed_abs, tag = 'smem constant byte address 0x4 - core index']
  #allocation1 [shape = 'u32[144,128]{1,0:T(1,128)}', space=vmem, size = 0x12000, scoped, tag = 'internal scratch']
  #allocation2 [shape = 'f32[16,128]{1,0:T(8,128)}', space=vmem, size = 0x2000, scoped, tag = 'scratch operand']
  #allocation3 [shape = 'f32[16,256]{1,0:T(8,128)}', space=vmem, size = 0x4000, scoped, tag = 'scratch operand']
  %s0 = inlined_call_operand.vmem [shape: s32[16,1], index: 0, kind: input, shape index: {}]
  %s1 = inlined_call_operand.vmem [shape: f32[2,16,32], index: 1, kind: input, shape index: {}]
  %s2 = inlined_call_operand.vmem [shape: bf16[16,16], index: 2, kind: input, shape index: {}]
  %s3 = inlined_call_operand.vmem [shape: f32[32,256], index: 3, kind: input, shape index: {}]
  %s4 = inlined_call_operand.vmem [shape: f32[1,256], index: 4, kind: input, shape index: {}]
  %s5 = inlined_call_operand.hbm [shape: f32[256,256], index: 5, kind: input, shape index: {}]
  %s6 = inlined_call_operand.vmem [shape: f32[1,256], index: 6, kind: input, shape index: {}]
  %s7 = inlined_call_operand.hbm [shape: f32[256,256], index: 7, kind: input, shape index: {}]
  %s8 = inlined_call_operand.vmem [shape: f32[1,256], index: 8, kind: input, shape index: {}]
  %s9 = inlined_call_operand.hbm [shape: f32[256,128], index: 9, kind: input, shape index: {}]
  %s10 = inlined_call_operand.vmem [shape: f32[1,128], index: 10, kind: input, shape index: {}]
  %s11 = inlined_call_operand.vmem [shape: f32[128,32], index: 11, kind: input, shape index: {}]
  %s12 = inlined_call_operand.vmem [shape: f32[1,32], index: 12, kind: input, shape index: {}]
  %s13 = inlined_call_operand.vmem [shape: f32[32,128], index: 13, kind: input, shape index: {}]
  %s14 = inlined_call_operand.vmem [shape: f32[1,128], index: 14, kind: input, shape index: {}]
  %s15 = inlined_call_operand.hbm [shape: f32[1,16,128], index: 15, kind: output, shape index: {}]
  %s16 = sld [smem:[#allocation0]]
  $region113: #{tpu_custom_call.1} parent=0
    _
  %s18 = ssub.s32 1, %s16
  %s19 = scalar_select 0, %s18, %s16
  $region1: #{tpu_custom_call.1} parent=0
    #allocation4 [shape = 'u8[262144]{0}', space=vmem, size = 0x40000, scoped, tag = 'input window, operand 5, single buffered']
    #allocation5 [shape = 's32[2]{0}', space=sflag, size = 0x8, scoped, tag = 'scoped memory for tpu_custom_call.1']
    #allocation6 [shape = 's32[2]{0}', space=sflag, size = 0x8, scoped, tag = 'scoped memory for tpu_custom_call.1']
    #allocation7 [shape = 'u8[262144]{0}', space=vmem, size = 0x40000, scoped, tag = 'input window, operand 7, single buffered']
    #allocation8 [shape = 's32[1]{0}', space=sflag, size = 0x4, scoped, tag = 'scoped memory for tpu_custom_call.1']
    #allocation9 [shape = 'u8[131072]{0}', space=vmem, size = 0x20000, scoped, tag = 'input window, operand 9, single buffered']
    #allocation10 [shape = 'u8[8192]{0}', space=vmem, size = 0x2000, scoped, tag = 'output window, operand 0, single buffered']
    %20 = vsyncpa [#allocation5], 0
    %21 = vsyncpa [#allocation8], 0
    %22 = vsyncpa [#allocation6], 0
    loop: start=0, step=1, limit=4
    $region2: #{tpu_custom_call.1} parent=1 // loop_pre_header
      _
    $region3: #{tpu_custom_call.1} parent=1 // loop_header
      %s24 = sphi 0, %s28
      %p25 = scmp.ge.s32.totalorder %s24, 4
      %s31 = sphi 0, %s43
      %s32 = sphi 0, %s39
      %s33 = sphi 0, %s31
      %s34 = sphi 0, %s32
      %s35 = sphi 0, %s33
      %s36 = sphi 0, %s34
      %s44 = sphi 0, %s44
      %s46 = sphi 0, %s44
      %s47 = sphi 0, %s46
      %s61 = sphi 0, %s47
      %s71 = sphi 0, %s73
      %s74 = sphi 0, %s71
      %s75 = sphi 0, %s74
      %s91 = sphi 0, %s75
      %s95 = sphi 0, %s95
      %s97 = sphi 0, %s95
      %s98 = sphi 0, %s97
      %s112 = sphi 0, %s98
      %s116 = sphi 0, %s116
      %s118 = sphi 0, %s116
      %s119 = sphi 0, %s118
      %s133 = sphi 0, %s119
      %s137 = sphi 0, %s137
      %s139 = sphi 0, %s137
      %s140 = sphi 0, %s139
      %s154 = sphi 0, %s140
      %s158 = sphi 0, %s158
      %s160 = sphi 0, %s158
      %s161 = sphi 0, %s160
      %s175 = sphi 0, %s161
      %s179 = sphi 0, %s179
      %s181 = sphi 0, %s179
      %s182 = sphi 0, %s181
      %s196 = sphi 0, %s182
      %s200 = sphi 0, %s200
      %s202 = sphi 0, %s200
      %s203 = sphi 0, %s202
      %s217 = sphi 0, %s203
      %s221 = sphi 0, %s221
      %s223 = sphi 0, %s221
      %s224 = sphi 0, %s223
      %s238 = sphi 0, %s224
      %s242 = sphi 0, %s242
      %s244 = sphi 0, %s242
      %s245 = sphi 0, %s244
      %s259 = sphi 0, %s245
      %s263 = sphi 0, %s263
      %s265 = sphi 0, %s263
      %s266 = sphi 0, %s265
      %s280 = sphi 0, %s266
      %s284 = sphi 0, %s284
      %s286 = sphi 0, %s284
      %s287 = sphi 0, %s286
      %s301 = sphi 0, %s287
      %s305 = sphi 0, %s305
      %s307 = sphi 0, %s305
      %s308 = sphi 0, %s307
      %s322 = sphi 0, %s308
      %s326 = sphi 0, %s326
      %s328 = sphi 0, %s326
      %s329 = sphi 0, %s328
      %s343 = sphi 0, %s329
      %s347 = sphi 0, %s347
      %s349 = sphi 0, %s347
      %s350 = sphi 0, %s349
      %s364 = sphi 0, %s350
      %s370 = sphi 0, %s372
      %s373 = sphi 0, %s370
      %s374 = sphi 0, %s373
      %s390 = sphi 0, %s374
    $region4: #{tpu_custom_call.1} parent=1 // loop_header_branch
      %27 = sbr.rel (%p25) target = $region8
    $region5: #{tpu_custom_call.1} parent=1 // loop_body
      %s29 = ssub.s32 %s24, 1
      %s30 = ssub.s32 %s24, 2
      %s37 = sadd.s32 1, %s32
      %p38 = scmp.ge.s32.totalorder %s37, 2
      %s39 = scalar_select %p38, 0, %s37
      %s40 = sadd.s32 1, %s31
      %s41 = scalar_select %p38, %s40, %s31
      %p42 = scmp.ge.s32.totalorder %s41, 1
      %s43 = scalar_select %p42, 0, %s41
      %s45 = sadd.s32 %s44, 1
      %p48 = scmp.eq.s32.totalorder %s24, 1
      %p49 = scmp.ne.s32.totalorder %s44, %s46
      %p50 = scmp.eq.s32.totalorder %s24, 0
      %p51 = por %p49, %p50
      %p52 = scmp.ne.s32.totalorder %s44, %s46
      %p53 = scmp.eq.s32.totalorder %s29, 1
      %p54 = por %p52, %p53
      %p55 = scmp.ne.s32.totalorder %s46, %s47
      %p56 = scmp.eq.s32.totalorder %s29, 0
      %p57 = por %p55, %p56
      %p58 = scmp.ne.s32.totalorder %s46, %s47
      %p59 = scmp.eq.s32.totalorder %s30, 1
      %p60 = por %p58, %p59
      %p62 = scmp.ne.s32.totalorder %s47, %s61
      %p63 = scmp.eq.s32.totalorder %s30, 0
      %p64 = por %p62, %p63
      %s65 = smul.u32 %s31, 2
      %s66 = sadd.s32 %s65, %s32
      %s67 = smul.u32 %s43, 2
      %s68 = sadd.s32 %s67, %s39
      %s69 = ssub.s32 %s66, %s68
      %p70 = scmp.eq.s32.totalorder %s69, 0
      %s72 = sadd.s32 %s71, 1
      %s73 = scalar_select %p70, %s71, %s72
      %p76 = pneg %p70
      %p77 = scmp.eq.s32.totalorder %s24, 1
      %p78 = por %p76, %p77
      %p79 = scmp.ne.s32.totalorder %s71, %s74
      %p80 = scmp.eq.s32.totalorder %s24, 0
      %p81 = por %p79, %p80
      %p82 = scmp.ne.s32.totalorder %s71, %s74
      %p83 = scmp.eq.s32.totalorder %s29, 1
      %p84 = por %p82, %p83
      %p85 = scmp.ne.s32.totalorder %s74, %s75
      %p86 = scmp.eq.s32.totalorder %s29, 0
      %p87 = por %p85, %p86
      %p88 = scmp.ne.s32.totalorder %s74, %s75
      %p89 = scmp.eq.s32.totalorder %s30, 1
      %p90 = por %p88, %p89
      %p92 = scmp.ne.s32.totalorder %s75, %s91
      %p93 = scmp.eq.s32.totalorder %s30, 0
      %p94 = por %p92, %p93
      %s96 = sadd.s32 %s95, 1
      %p99 = scmp.eq.s32.totalorder %s24, 1
      %p100 = scmp.ne.s32.totalorder %s95, %s97
      %p101 = scmp.eq.s32.totalorder %s24, 0
      %p102 = por %p100, %p101
      %p103 = scmp.ne.s32.totalorder %s95, %s97
      %p104 = scmp.eq.s32.totalorder %s29, 1
      %p105 = por %p103, %p104
      %p106 = scmp.ne.s32.totalorder %s97, %s98
      %p107 = scmp.eq.s32.totalorder %s29, 0
      %p108 = por %p106, %p107
      %p109 = scmp.ne.s32.totalorder %s97, %s98
      %p110 = scmp.eq.s32.totalorder %s30, 1
      %p111 = por %p109, %p110
      %p113 = scmp.ne.s32.totalorder %s98, %s112
      %p114 = scmp.eq.s32.totalorder %s30, 0
      %p115 = por %p113, %p114
      %s117 = sadd.s32 %s116, 1
      %p120 = scmp.eq.s32.totalorder %s24, 1
      %p121 = scmp.ne.s32.totalorder %s116, %s118
      %p122 = scmp.eq.s32.totalorder %s24, 0
      %p123 = por %p121, %p122
      %p124 = scmp.ne.s32.totalorder %s116, %s118
      %p125 = scmp.eq.s32.totalorder %s29, 1
      %p126 = por %p124, %p125
      %p127 = scmp.ne.s32.totalorder %s118, %s119
      %p128 = scmp.eq.s32.totalorder %s29, 0
      %p129 = por %p127, %p128
      %p130 = scmp.ne.s32.totalorder %s118, %s119
      %p131 = scmp.eq.s32.totalorder %s30, 1
      %p132 = por %p130, %p131
      %p134 = scmp.ne.s32.totalorder %s119, %s133
      %p135 = scmp.eq.s32.totalorder %s30, 0
      %p136 = por %p134, %p135
      %s138 = sadd.s32 %s137, 1
      %p141 = scmp.eq.s32.totalorder %s24, 1
      %p142 = scmp.ne.s32.totalorder %s137, %s139
      %p143 = scmp.eq.s32.totalorder %s24, 0
      %p144 = por %p142, %p143
      %p145 = scmp.ne.s32.totalorder %s137, %s139
      %p146 = scmp.eq.s32.totalorder %s29, 1
      %p147 = por %p145, %p146
      %p148 = scmp.ne.s32.totalorder %s139, %s140
      %p149 = scmp.eq.s32.totalorder %s29, 0
      %p150 = por %p148, %p149
      %p151 = scmp.ne.s32.totalorder %s139, %s140
      %p152 = scmp.eq.s32.totalorder %s30, 1
      %p153 = por %p151, %p152
      %p155 = scmp.ne.s32.totalorder %s140, %s154
      %p156 = scmp.eq.s32.totalorder %s30, 0
      %p157 = por %p155, %p156
      %s159 = sadd.s32 %s158, 1
      %p162 = scmp.eq.s32.totalorder %s24, 1
      %p163 = scmp.ne.s32.totalorder %s158, %s160
      %p164 = scmp.eq.s32.totalorder %s24, 0
      %p165 = por %p163, %p164
      %p166 = scmp.ne.s32.totalorder %s158, %s160
      %p167 = scmp.eq.s32.totalorder %s29, 1
      %p168 = por %p166, %p167
      %p169 = scmp.ne.s32.totalorder %s160, %s161
      %p170 = scmp.eq.s32.totalorder %s29, 0
      %p171 = por %p169, %p170
      %p172 = scmp.ne.s32.totalorder %s160, %s161
      %p173 = scmp.eq.s32.totalorder %s30, 1
      %p174 = por %p172, %p173
      %p176 = scmp.ne.s32.totalorder %s161, %s175
      %p177 = scmp.eq.s32.totalorder %s30, 0
      %p178 = por %p176, %p177
      %s180 = sadd.s32 %s179, 1
      %p183 = scmp.eq.s32.totalorder %s24, 1
      %p184 = scmp.ne.s32.totalorder %s179, %s181
      %p185 = scmp.eq.s32.totalorder %s24, 0
      %p186 = por %p184, %p185
      %p187 = scmp.ne.s32.totalorder %s179, %s181
      %p188 = scmp.eq.s32.totalorder %s29, 1
      %p189 = por %p187, %p188
      %p190 = scmp.ne.s32.totalorder %s181, %s182
      %p191 = scmp.eq.s32.totalorder %s29, 0
      %p192 = por %p190, %p191
      %p193 = scmp.ne.s32.totalorder %s181, %s182
      %p194 = scmp.eq.s32.totalorder %s30, 1
      %p195 = por %p193, %p194
      %p197 = scmp.ne.s32.totalorder %s182, %s196
      %p198 = scmp.eq.s32.totalorder %s30, 0
      %p199 = por %p197, %p198
      %s201 = sadd.s32 %s200, 1
      %p204 = scmp.eq.s32.totalorder %s24, 1
      %p205 = scmp.ne.s32.totalorder %s200, %s202
      %p206 = scmp.eq.s32.totalorder %s24, 0
      %p207 = por %p205, %p206
      %p208 = scmp.ne.s32.totalorder %s200, %s202
      %p209 = scmp.eq.s32.totalorder %s29, 1
      %p210 = por %p208, %p209
      %p211 = scmp.ne.s32.totalorder %s202, %s203
      %p212 = scmp.eq.s32.totalorder %s29, 0
      %p213 = por %p211, %p212
      %p214 = scmp.ne.s32.totalorder %s202, %s203
      %p215 = scmp.eq.s32.totalorder %s30, 1
      %p216 = por %p214, %p215
      %p218 = scmp.ne.s32.totalorder %s203, %s217
      %p219 = scmp.eq.s32.totalorder %s30, 0
      %p220 = por %p218, %p219
      %s222 = sadd.s32 %s221, 1
      %p225 = scmp.eq.s32.totalorder %s24, 1
      %p226 = scmp.ne.s32.totalorder %s221, %s223
      %p227 = scmp.eq.s32.totalorder %s24, 0
      %p228 = por %p226, %p227
      %p229 = scmp.ne.s32.totalorder %s221, %s223
      %p230 = scmp.eq.s32.totalorder %s29, 1
      %p231 = por %p229, %p230
      %p232 = scmp.ne.s32.totalorder %s223, %s224
      %p233 = scmp.eq.s32.totalorder %s29, 0
      %p234 = por %p232, %p233
      %p235 = scmp.ne.s32.totalorder %s223, %s224
      %p236 = scmp.eq.s32.totalorder %s30, 1
      %p237 = por %p235, %p236
      %p239 = scmp.ne.s32.totalorder %s224, %s238
      %p240 = scmp.eq.s32.totalorder %s30, 0
      %p241 = por %p239, %p240
      %s243 = sadd.s32 %s242, 1
      %p246 = scmp.eq.s32.totalorder %s24, 1
      %p247 = scmp.ne.s32.totalorder %s242, %s244
      %p248 = scmp.eq.s32.totalorder %s24, 0
      %p249 = por %p247, %p248
      %p250 = scmp.ne.s32.totalorder %s242, %s244
      %p251 = scmp.eq.s32.totalorder %s29, 1
      %p252 = por %p250, %p251
      %p253 = scmp.ne.s32.totalorder %s244, %s245
      %p254 = scmp.eq.s32.totalorder %s29, 0
      %p255 = por %p253, %p254
      %p256 = scmp.ne.s32.totalorder %s244, %s245
      %p257 = scmp.eq.s32.totalorder %s30, 1
      %p258 = por %p256, %p257
      %p260 = scmp.ne.s32.totalorder %s245, %s259
      %p261 = scmp.eq.s32.totalorder %s30, 0
      %p262 = por %p260, %p261
      %s264 = sadd.s32 %s263, 1
      %p267 = scmp.eq.s32.totalorder %s24, 1
      %p268 = scmp.ne.s32.totalorder %s263, %s265
      %p269 = scmp.eq.s32.totalorder %s24, 0
      %p270 = por %p268, %p269
      %p271 = scmp.ne.s32.totalorder %s263, %s265
      %p272 = scmp.eq.s32.totalorder %s29, 1
      %p273 = por %p271, %p272
      %p274 = scmp.ne.s32.totalorder %s265, %s266
      %p275 = scmp.eq.s32.totalorder %s29, 0
      %p276 = por %p274, %p275
      %p277 = scmp.ne.s32.totalorder %s265, %s266
      %p278 = scmp.eq.s32.totalorder %s30, 1
      %p279 = por %p277, %p278
      %p281 = scmp.ne.s32.totalorder %s266, %s280
      %p282 = scmp.eq.s32.totalorder %s30, 0
      %p283 = por %p281, %p282
      %s285 = sadd.s32 %s284, 1
      %p288 = scmp.eq.s32.totalorder %s24, 1
      %p289 = scmp.ne.s32.totalorder %s284, %s286
      %p290 = scmp.eq.s32.totalorder %s24, 0
      %p291 = por %p289, %p290
      %p292 = scmp.ne.s32.totalorder %s284, %s286
      %p293 = scmp.eq.s32.totalorder %s29, 1
      %p294 = por %p292, %p293
      %p295 = scmp.ne.s32.totalorder %s286, %s287
      %p296 = scmp.eq.s32.totalorder %s29, 0
      %p297 = por %p295, %p296
      %p298 = scmp.ne.s32.totalorder %s286, %s287
      %p299 = scmp.eq.s32.totalorder %s30, 1
      %p300 = por %p298, %p299
      %p302 = scmp.ne.s32.totalorder %s287, %s301
      %p303 = scmp.eq.s32.totalorder %s30, 0
      %p304 = por %p302, %p303
      %s306 = sadd.s32 %s305, 1
      %p309 = scmp.eq.s32.totalorder %s24, 1
      %p310 = scmp.ne.s32.totalorder %s305, %s307
      %p311 = scmp.eq.s32.totalorder %s24, 0
      %p312 = por %p310, %p311
      %p313 = scmp.ne.s32.totalorder %s305, %s307
      %p314 = scmp.eq.s32.totalorder %s29, 1
      %p315 = por %p313, %p314
      %p316 = scmp.ne.s32.totalorder %s307, %s308
      %p317 = scmp.eq.s32.totalorder %s29, 0
      %p318 = por %p316, %p317
      %p319 = scmp.ne.s32.totalorder %s307, %s308
      %p320 = scmp.eq.s32.totalorder %s30, 1
      %p321 = por %p319, %p320
      %p323 = scmp.ne.s32.totalorder %s308, %s322
      %p324 = scmp.eq.s32.totalorder %s30, 0
      %p325 = por %p323, %p324
      %s327 = sadd.s32 %s326, 1
      %p330 = scmp.eq.s32.totalorder %s24, 1
      %p331 = scmp.ne.s32.totalorder %s326, %s328
      %p332 = scmp.eq.s32.totalorder %s24, 0
      %p333 = por %p331, %p332
      %p334 = scmp.ne.s32.totalorder %s326, %s328
      %p335 = scmp.eq.s32.totalorder %s29, 1
      %p336 = por %p334, %p335
      %p337 = scmp.ne.s32.totalorder %s328, %s329
      %p338 = scmp.eq.s32.totalorder %s29, 0
      %p339 = por %p337, %p338
      %p340 = scmp.ne.s32.totalorder %s328, %s329
      %p341 = scmp.eq.s32.totalorder %s30, 1
      %p342 = por %p340, %p341
      %p344 = scmp.ne.s32.totalorder %s329, %s343
      %p345 = scmp.eq.s32.totalorder %s30, 0
      %p346 = por %p344, %p345
      %s348 = sadd.s32 %s347, 1
      %p351 = scmp.eq.s32.totalorder %s24, 1
      %p352 = scmp.ne.s32.totalorder %s347, %s349
      %p353 = scmp.eq.s32.totalorder %s24, 0
      %p354 = por %p352, %p353
      %p355 = scmp.ne.s32.totalorder %s347, %s349
      %p356 = scmp.eq.s32.totalorder %s29, 1
      %p357 = por %p355, %p356
      %p358 = scmp.ne.s32.totalorder %s349, %s350
      %p359 = scmp.eq.s32.totalorder %s29, 0
      %p360 = por %p358, %p359
      %p361 = scmp.ne.s32.totalorder %s349, %s350
      %p362 = scmp.eq.s32.totalorder %s30, 1
      %p363 = por %p361, %p362
      %p365 = scmp.ne.s32.totalorder %s350, %s364
      %p366 = scmp.eq.s32.totalorder %s30, 0
      %p367 = por %p365, %p366
      %s368 = ssub.s32 %s31, %s43
      %p369 = scmp.eq.s32.totalorder %s368, 0
      %s371 = sadd.s32 %s370, 1
      %s372 = scalar_select %p369, %s370, %s371
      %p375 = pneg %p369
      %p376 = scmp.eq.s32.totalorder %s24, 1
      %p377 = por %p375, %p376
      %p378 = scmp.ne.s32.totalorder %s370, %s373
      %p379 = scmp.eq.s32.totalorder %s24, 0
      %p380 = por %p378, %p379
      %p381 = scmp.ne.s32.totalorder %s370, %s373
      %p382 = scmp.eq.s32.totalorder %s29, 1
      %p383 = por %p381, %p382
      %p384 = scmp.ne.s32.totalorder %s373, %s374
      %p385 = scmp.eq.s32.totalorder %s29, 0
      %p386 = por %p384, %p385
      %p387 = scmp.ne.s32.totalorder %s373, %s374
      %p388 = scmp.eq.s32.totalorder %s30, 1
      %p389 = por %p387, %p388
      %p391 = scmp.ne.s32.totalorder %s374, %s390
      %p392 = scmp.eq.s32.totalorder %s30, 0
      %p393 = por %p391, %p392
      %p394 = scmp.le.s32.totalorder 1, %s24
      %p395 = scmp.lt.s32.totalorder %s24, 3
      %p396 = pnand %p394, %p395
      %p397 = pneg %p396
      // Predicated region
      $region9: #{tpu_custom_call.1} parent=5 // pred_check
        _
      $region10: #{tpu_custom_call.1} parent=5 // pred_check_branch
        %399 = sbr.rel (%p396) target = $region12
      $region11: #{tpu_custom_call.1} parent=5 // pred_region
        %s400 = ssub.s32 %s24, 1
        // Predicated region
        $region13: #{tpu_custom_call.1} parent=11 // pred_check
          %p401 = pneg %p57
        $region14: #{tpu_custom_call.1} parent=11 // pred_check_branch
          %403 = sbr.rel (%p401) target = $region16
        $region15: #{tpu_custom_call.1} parent=11 // pred_region
          _
        $region16: #{tpu_custom_call.1} parent=11 // pred_fallthru
          _
        // Predicated region
        $region17: #{tpu_custom_call.1} parent=11 // pred_check
          %p404 = pneg %p108
        $region18: #{tpu_custom_call.1} parent=11 // pred_check_branch
          %406 = sbr.rel (%p404) target = $region20
        $region19: #{tpu_custom_call.1} parent=11 // pred_region
          _
        $region20: #{tpu_custom_call.1} parent=11 // pred_fallthru
          _
        // Predicated region
        $region21: #{tpu_custom_call.1} parent=11 // pred_check
          %p407 = pneg %p129
        $region22: #{tpu_custom_call.1} parent=11 // pred_check_branch
          %409 = sbr.rel (%p407) target = $region24
        $region23: #{tpu_custom_call.1} parent=11 // pred_region
          _
        $region24: #{tpu_custom_call.1} parent=11 // pred_fallthru
          _
        // Predicated region
        $region25: #{tpu_custom_call.1} parent=11 // pred_check
          %p410 = pneg %p150
        $region26: #{tpu_custom_call.1} parent=11 // pred_check_branch
          %412 = sbr.rel (%p410) target = $region28
        $region27: #{tpu_custom_call.1} parent=11 // pred_region
          _
        $region28: #{tpu_custom_call.1} parent=11 // pred_fallthru
          _
        // Predicated region
        $region29: #{tpu_custom_call.1} parent=11 // pred_check
          %p413 = pneg %p171
        $region30: #{tpu_custom_call.1} parent=11 // pred_check_branch
          %415 = sbr.rel (%p413) target = $region32
        $region31: #{tpu_custom_call.1} parent=11 // pred_region
          %s417 = ssub.s32 8192, 8192
          %418 = vsyncadd [#allocation5], %s417
          %s419 = sshll.u32 [#allocation4], 4
          %s420 = int_to_ptr.vmem [resolvable:$true] %s419
          %425 = dma.hbm_to_vmem [thread:$0]  %s5, 8192, %s420, [#allocation5], 256, 256, 16
        $region32: #{tpu_custom_call.1} parent=11 // pred_fallthru
          _
        // Predicated region
        $region33: #{tpu_custom_call.1} parent=11 // pred_check
          %p426 = pneg %p192
        $region34: #{tpu_custom_call.1} parent=11 // pred_check_branch
          %428 = sbr.rel (%p426) target = $region36
        $region35: #{tpu_custom_call.1} parent=11 // pred_region
          _
        $region36: #{tpu_custom_call.1} parent=11 // pred_fallthru
          _
        // Predicated region
        $region37: #{tpu_custom_call.1} parent=11 // pred_check
          %p429 = pneg %p213
        $region38: #{tpu_custom_call.1} parent=11 // pred_check_branch
          %431 = sbr.rel (%p429) target = $region40
        $region39: #{tpu_custom_call.1} parent=11 // pred_region
          %s433 = ssub.s32 8192, 8192
          %434 = vsyncadd [#allocation8], %s433
          %s435 = sshll.u32 [#allocation7], 4
          %s436 = int_to_ptr.vmem [resolvable:$true] %s435
          %441 = dma.hbm_to_vmem [thread:$0]  %s7, 8192, %s436, [#allocation8], 256, 256, 16
        $region40: #{tpu_custom_call.1} parent=11 // pred_fallthru
          _
        // Predicated region
        $region41: #{tpu_custom_call.1} parent=11 // pred_check
          %p442 = pneg %p234
        $region42: #{tpu_custom_call.1} parent=11 // pred_check_branch
          %444 = sbr.rel (%p442) target = $region44
        $region43: #{tpu_custom_call.1} parent=11 // pred_region
          _
        $region44: #{tpu_custom_call.1} parent=11 // pred_fallthru
          _
        // Predicated region
        $region45: #{tpu_custom_call.1} parent=11 // pred_check
          %p445 = pneg %p255
        $region46: #{tpu_custom_call.1} parent=11 // pred_check_branch
          %447 = sbr.rel (%p445) target = $region48
        $region47: #{tpu_custom_call.1} parent=11 // pred_region
          %s449 = ssub.s32 4096, 4096
          %450 = vsyncadd [#allocation8], %s449
          %s451 = sshll.u32 [#allocation9], 4
          %s452 = int_to_ptr.vmem [resolvable:$true] %s451
          %457 = dma.hbm_to_vmem [thread:$0]  %s9, 4096, %s452, [#allocation8], 128, 128, 8
        $region48: #{tpu_custom_call.1} parent=11 // pred_fallthru
          _
        // Predicated region
        $region49: #{tpu_custom_call.1} parent=11 // pred_check
          %p458 = pneg %p276
        $region50: #{tpu_custom_call.1} parent=11 // pred_check_branch
          %460 = sbr.rel (%p458) target = $region52
        $region51: #{tpu_custom_call.1} parent=11 // pred_region
          _
        $region52: #{tpu_custom_call.1} parent=11 // pred_fallthru
          _
        // Predicated region
        $region53: #{tpu_custom_call.1} parent=11 // pred_check
          %p461 = pneg %p297
        $region54: #{tpu_custom_call.1} parent=11 // pred_check_branch
          %463 = sbr.rel (%p461) target = $region56
        $region55: #{tpu_custom_call.1} parent=11 // pred_region
          _
        $region56: #{tpu_custom_call.1} parent=11 // pred_fallthru
          _
        // Predicated region
        $region57: #{tpu_custom_call.1} parent=11 // pred_check
          %p464 = pneg %p318
        $region58: #{tpu_custom_call.1} parent=11 // pred_check_branch
          %466 = sbr.rel (%p464) target = $region60
        $region59: #{tpu_custom_call.1} parent=11 // pred_region
          _
        $region60: #{tpu_custom_call.1} parent=11 // pred_fallthru
          _
        // Predicated region
        $region61: #{tpu_custom_call.1} parent=11 // pred_check
          %p467 = pneg %p339
        $region62: #{tpu_custom_call.1} parent=11 // pred_check_branch
          %469 = sbr.rel (%p467) target = $region64
        $region63: #{tpu_custom_call.1} parent=11 // pred_region
          _
        $region64: #{tpu_custom_call.1} parent=11 // pred_fallthru
          _
        // Predicated region
        $region65: #{tpu_custom_call.1} parent=11 // pred_check
          %p470 = pneg %p360
        $region66: #{tpu_custom_call.1} parent=11 // pred_check_branch
          %472 = sbr.rel (%p470) target = $region68
        $region67: #{tpu_custom_call.1} parent=11 // pred_region
          _
        $region68: #{tpu_custom_call.1} parent=11 // pred_fallthru
          _
      $region12: #{tpu_custom_call.1} parent=5 // pred_fallthru
        _
      %p473 = scmp.lt.s32.totalorder %s24, 2
      // Predicated region
      $region69: #{tpu_custom_call.1} parent=5 // pred_check
        %p474 = pneg %p473
      $region70: #{tpu_custom_call.1} parent=5 // pred_check_branch
        %476 = sbr.rel (%p474) target = $region72
      $region71: #{tpu_custom_call.1} parent=5 // pred_region
        // Predicated region
        $region73: #{tpu_custom_call.1} parent=71 // pred_check
          %p477 = pneg %p81
        $region74: #{tpu_custom_call.1} parent=71 // pred_check_branch
          %479 = sbr.rel (%p477) target = $region76
        $region75: #{tpu_custom_call.1} parent=71 // pred_region
          %s480 = smul.u32 %s31, 2
          %s481 = sadd.s32 %s480, %s32
          %p482 = scmp.lt.s32.totalorder %s481, 1
          %s483 = scalar_select %p482, %s481, 1
          %s484 = smul.addr %s483, 2
          %s485 = smul.addr %s484, 8
          %s486 = scalar_lea.vmem %s1, %s485
          %s487 = smul.u32 %s31, 2
          %s488 = sadd.s32 %s487, %s32
        $region76: #{tpu_custom_call.1} parent=71 // pred_fallthru
          _
      $region72: #{tpu_custom_call.1} parent=5 // pred_fallthru
        _
      %p489 = scmp.le.s32.totalorder 1, %s24
      %p490 = scmp.lt.s32.totalorder %s24, 3
      %p491 = pnand %p489, %p490
      %p492 = pneg %p491
      // Predicated region
      $region77: #{tpu_custom_call.1} parent=5 // pred_check
        _
      $region78: #{tpu_custom_call.1} parent=5 // pred_check_branch
        %494 = sbr.rel (%p491) target = $region80
      $region79: #{tpu_custom_call.1} parent=5 // pred_region
        %s495 = ssub.s32 %s24, 1
        // Predicated region
        $region81: #{tpu_custom_call.1} parent=79 // pred_check
          %p496 = pneg %p171
        $region82: #{tpu_custom_call.1} parent=79 // pred_check_branch
          %498 = sbr.rel (%p496) target = $region84
        $region83: #{tpu_custom_call.1} parent=79 // pred_region
          %499 = dma.done [#allocation5], 8192
        $region84: #{tpu_custom_call.1} parent=79 // pred_fallthru
          _
        // Predicated region
        $region85: #{tpu_custom_call.1} parent=79 // pred_check
          %p500 = pneg %p213
        $region86: #{tpu_custom_call.1} parent=79 // pred_check_branch
          %502 = sbr.rel (%p500) target = $region88
        $region87: #{tpu_custom_call.1} parent=79 // pred_region
          %503 = dma.done [#allocation8], 8192
        $region88: #{tpu_custom_call.1} parent=79 // pred_fallthru
          _
        // Predicated region
        $region89: #{tpu_custom_call.1} parent=79 // pred_check
          %p504 = pneg %p255
        $region90: #{tpu_custom_call.1} parent=79 // pred_check_branch
          %506 = sbr.rel (%p504) target = $region92
        $region91: #{tpu_custom_call.1} parent=79 // pred_region
          %507 = dma.done [#allocation8], 4096
        $region92: #{tpu_custom_call.1} parent=79 // pred_fallthru
          _
        %p508 = pneg %p57
        %p509 = pneg %p54
        %s510 = smul.u32 %s33, 2
        %s511 = sadd.s32 %s510, %s34
        %p512 = scmp.lt.s32.totalorder %s511, 1
        %s513 = scalar_select %p512, %s511, 1
        %s514 = smul.addr %s513, 2
        %s515 = smul.addr %s514, 8
        %s516 = scalar_lea.vmem %s1, %s515
        %p517 = pneg %p87
        %p518 = pneg %p84
        %p519 = pneg %p108
        %p520 = pneg %p105
        %p521 = pneg %p129
        %p522 = pneg %p126
        %p523 = pneg %p150
        %p524 = pneg %p147
        %p525 = pneg %p171
        %p526 = pneg %p168
        %p527 = pneg %p192
        %p528 = pneg %p189
        %p529 = pneg %p213
        %p530 = pneg %p210
        %p531 = pneg %p234
        %p532 = pneg %p231
        %p533 = pneg %p255
        %p534 = pneg %p252
        %p535 = pneg %p276
        %p536 = pneg %p273
        %p537 = pneg %p297
        %p538 = pneg %p294
        %p539 = pneg %p318
        %p540 = pneg %p315
        %p541 = pneg %p339
        %p542 = pneg %p336
        %p543 = pneg %p360
        %p544 = pneg %p357
        %p545 = pneg %p386
        %p546 = pneg %p383
        %s547 = smul.u32 %s33, 2
        %s548 = sadd.s32 %s547, %s34
        %p549 = scmp.lt.s32.totalorder %s548, 1
        %s550 = scalar_select %p549, %s548, 1
        %s551 = smul.addr %s550, 2
        %s552 = smul.addr %s551, 8
        %s553 = scalar_lea.vmem %s1, %s552
        %s554 = smul.u32 %s33, 2
        %s555 = sadd.s32 %s554, %s34
        %v556 = vld [vmem:[%s2] sm:$0xf]
        %v557 = vld [vmem:[%s2 + $0x4] sm:$0xf]
        %v558 = vunpack.c.l.bf16 %v556
        %v559 = vunpack.c.l.bf16 %v557
        %p560 = scmp.eq.s32.totalorder %s34, 0
        // Predicated region
        $region93: #{tpu_custom_call.1} parent=79 // pred_check
          %p561 = pneg %p560
        $region94: #{tpu_custom_call.1} parent=79 // pred_check_branch
          %563 = sbr.rel (%p561) target = $region96
        $region95: #{tpu_custom_call.1} parent=79 // pred_region
          %564 = vst [vmem:[#allocation2] sm:$0xff] 0.0
          %565 = vst [vmem:[#allocation2 + $0x8] sm:$0xff] 0.0
          %v566 = vld [vmem:[%s4] sm:$0x3]
          %v568 = vlaneseq
          %v569 = vshrl.u32 %v568, 7
          %v570 = vsub.s32 0, %v569
          %v571 = vrot.slane %v566, %v570
          %v572 = vlaneseq
          %v573 = vshrl.u32 %v572, 7
          %v574 = vsub.s32 1, %v573
          %v575 = vrot.slane %v566, %v574
          %vm578 = vcmask 130048
          %v580 = vsel %vm578, %v558, 0
          %v583 = vsel %vm578, %v559, 0
          %585 = vmatprep.subr.mxu0 0.0
          %586 = vmatpush1.msra.mxu0 0.0
          %587 = vmatprep.subr.mxu0 0.0
          %588 = vmatpush1.msra.mxu0 0.0
          %589 = vmatprep.subr.mxu0 0.0
          %590 = vmatpush1.msra.mxu0 0.0
          %591 = vmatprep.subr.mxu0 0.0
          %592 = vmatpush1.msra.mxu0 0.0
          %593 = vmatprep.subr.mxu0 0.0
          %594 = vmatpush1.msra.mxu0 0.0
          %595 = vmatprep.subr.mxu0 0.0
          %596 = vmatpush1.msra.mxu0 0.0
          %597 = vmatprep.subr.mxu0 0.0
          %598 = vmatpush1.msra.mxu0 0.0
          %599 = vmatprep.subr.mxu0 0.0
          %600 = vmatpush1.msra.mxu0 0.0
          %601 = vmatprep.subr.mxu0 0.0
          %602 = vmatpush1.msra.mxu0 0.0
          %603 = vmatprep.subr.mxu0 0.0
          %604 = vmatpush1.msra.mxu0 0.0
          %605 = vmatprep.subr.mxu0 0.0
          %606 = vmatpush1.msra.mxu0 0.0
          %607 = vmatprep.subr.mxu0 0.0
          %608 = vmatpush1.msra.mxu0 0.0
          %609 = vmatprep.subr.mxu0 0.0
          %610 = vmatpush1.msra.mxu0 0.0
          %611 = vmatprep.subr.mxu0 0.0
          %612 = vmatpush1.msra.mxu0 0.0
          %613 = vmatprep.subr.mxu0 %v575
          %614 = vmatpush1.msra.mxu0 %v571
          %615 = vmatprep.subr.mxu0 %v575
          %616 = vmatpush1.msra.mxu0 %v571
          %617 = vmatprep.subr.mxu0 0.0
          %618 = vmatpush2.msra.mxu0 0.0
          %619 = vmatprep.subr.mxu0 0.0
          %620 = vmatpush2.msra.mxu0 0.0
          %621 = vmatprep.subr.mxu0 0.0
          %622 = vmatpush2.msra.mxu0 0.0
          %623 = vmatprep.subr.mxu0 0.0
          %624 = vmatpush2.msra.mxu0 0.0
          %625 = vmatprep.subr.mxu0 0.0
          %626 = vmatpush2.msra.mxu0 0.0
          %627 = vmatprep.subr.mxu0 0.0
          %628 = vmatpush2.msra.mxu0 0.0
          %629 = vmatprep.subr.mxu0 0.0
          %630 = vmatpush2.msra.mxu0 0.0
          %631 = vmatprep.subr.mxu0 0.0
          %632 = vmatpush2.msra.mxu0 0.0
          %633 = vmatprep.subr.mxu0 0.0
          %634 = vmatpush2.msra.mxu0 0.0
          %635 = vmatprep.subr.mxu0 0.0
          %636 = vmatpush2.msra.mxu0 0.0
          %637 = vmatprep.subr.mxu0 0.0
          %638 = vmatpush2.msra.mxu0 0.0
          %639 = vmatprep.subr.mxu0 0.0
          %640 = vmatpush2.msra.mxu0 0.0
          %641 = vmatprep.subr.mxu0 0.0
          %642 = vmatpush2.msra.mxu0 0.0
          %643 = vmatprep.subr.mxu0 0.0
          %644 = vmatpush2.msra.mxu0 0.0
          %645 = vmatprep.subr.mxu0 0.0
          %646 = vmatpush2.msra.mxu0 0.0
          %647 = vmatprep.subr.mxu0 0.0
          %648 = vmatpush2.msra.mxu0 0.0
          %649 = vmatprep.mubr.f32.mxu0 0.0
          %650 = vmatmul.mubr.f32.gmra.mxu0 %v580
          %v651 = vpop.f32.mrf.mxu0
          %v652 = vadd.f32 0.0, %v651
          %v653 = vpop.f32.mrf.mxu0
          %v654 = vadd.f32 0.0, %v653
          %655 = vmatprep.mubr.f32.mxu0 0.0
          %656 = vmatmul.mubr.f32.gmra.mxu0 %v583
          %v657 = vpop.f32.mrf.mxu0
          %v658 = vadd.f32 0.0, %v657
          %v659 = vpop.f32.mrf.mxu0
          %v660 = vadd.f32 0.0, %v659
          %661 = vdwg.mxu0
          %v662 = vld [vmem:[#allocation4] sm:$0xff]
          %v663 = vld [vmem:[#allocation4 + $0x8] sm:$0xff]
          %v664 = vld [vmem:[#allocation4 + $0x10] sm:$0xff]
          %v665 = vld [vmem:[#allocation4 + $0x18] sm:$0xff]
          %v666 = vld [vmem:[#allocation4 + $0x20] sm:$0xff]
          %v667 = vld [vmem:[#allocation4 + $0x28] sm:$0xff]
          %v668 = vld [vmem:[#allocation4 + $0x30] sm:$0xff]
          %v669 = vld [vmem:[#allocation4 + $0x38] sm:$0xff]
          %v670 = vld [vmem:[#allocation4 + $0x40] sm:$0xff]
          %v671 = vld [vmem:[#allocation4 + $0x48] sm:$0xff]
          %v672 = vld [vmem:[#allocation4 + $0x50] sm:$0xff]
          %v673 = vld [vmem:[#allocation4 + $0x58] sm:$0xff]
          %v674 = vld [vmem:[#allocation4 + $0x60] sm:$0xff]
          %v675 = vld [vmem:[#allocation4 + $0x68] sm:$0xff]
          %v676 = vld [vmem:[#allocation4 + $0x70] sm:$0xff]
          %v677 = vld [vmem:[#allocation4 + $0x78] sm:$0xff]
          %v678 = vld [vmem:[#allocation4 + $0x80] sm:$0xff]
          %v679 = vld [vmem:[#allocation4 + $0x88] sm:$0xff]
          %v680 = vld [vmem:[#allocation4 + $0x90] sm:$0xff]
          %v681 = vld [vmem:[#allocation4 + $0x98] sm:$0xff]
          %v682 = vld [vmem:[#allocation4 + $0xa0] sm:$0xff]
          %v683 = vld [vmem:[#allocation4 + $0xa8] sm:$0xff]
          %v684 = vld [vmem:[#allocation4 + $0xb0] sm:$0xff]
          %v685 = vld [vmem:[#allocation4 + $0xb8] sm:$0xff]
          %v686 = vld [vmem:[#allocation4 + $0xc0] sm:$0xff]
          %v687 = vld [vmem:[#allocation4 + $0xc8] sm:$0xff]
          %v688 = vld [vmem:[#allocation4 + $0xd0] sm:$0xff]
          %v689 = vld [vmem:[#allocation4 + $0xd8] sm:$0xff]
          %v690 = vld [vmem:[#allocation4 + $0xe0] sm:$0xff]
          %v691 = vld [vmem:[#allocation4 + $0xe8] sm:$0xff]
          %v692 = vld [vmem:[#allocation4 + $0xf0] sm:$0xff]
          %v693 = vld [vmem:[#allocation4 + $0xf8] sm:$0xff]
          %v694 = vld [vmem:[#allocation4 + $0x100] sm:$0xff]
          %v695 = vld [vmem:[#allocation4 + $0x108] sm:$0xff]
          %v696 = vld [vmem:[#allocation4 + $0x110] sm:$0xff]
          %v697 = vld [vmem:[#allocation4 + $0x118] sm:$0xff]
          %v698 = vld [vmem:[#allocation4 + $0x120] sm:$0xff]
          %v699 = vld [vmem:[#allocation4 + $0x128] sm:$0xff]
          %v700 = vld [vmem:[#allocation4 + $0x130] sm:$0xff]
          %v701 = vld [vmem:[#allocation4 + $0x138] sm:$0xff]
          %v702 = vld [vmem:[#allocation4 + $0x140] sm:$0xff]
          %v703 = vld [vmem:[#allocation4 + $0x148] sm:$0xff]
          %v704 = vld [vmem:[#allocation4 + $0x150] sm:$0xff]
          %v705 = vld [vmem:[#allocation4 + $0x158] sm:$0xff]
          %v706 = vld [vmem:[#allocation4 + $0x160] sm:$0xff]
          %v707 = vld [vmem:[#allocation4 + $0x168] sm:$0xff]
          %v708 = vld [vmem:[#allocation4 + $0x170] sm:$0xff]
          %v709 = vld [vmem:[#allocation4 + $0x178] sm:$0xff]
          %v710 = vld [vmem:[#allocation4 + $0x180] sm:$0xff]
          %v711 = vld [vmem:[#allocation4 + $0x188] sm:$0xff]
          %v712 = vld [vmem:[#allocation4 + $0x190] sm:$0xff]
          %v713 = vld [vmem:[#allocation4 + $0x198] sm:$0xff]
          %v714 = vld [vmem:[#allocation4 + $0x1a0] sm:$0xff]
          %v715 = vld [vmem:[#allocation4 + $0x1a8] sm:$0xff]
          %v716 = vld [vmem:[#allocation4 + $0x1b0] sm:$0xff]
          %v717 = vld [vmem:[#allocation4 + $0x1b8] sm:$0xff]
          %v718 = vld [vmem:[#allocation4 + $0x1c0] sm:$0xff]
          %v719 = vld [vmem:[#allocation4 + $0x1c8] sm:$0xff]
          %v720 = vld [vmem:[#allocation4 + $0x1d0] sm:$0xff]
          %v721 = vld [vmem:[#allocation4 + $0x1d8] sm:$0xff]
          %v722 = vld [vmem:[#allocation4 + $0x1e0] sm:$0xff]
          %v723 = vld [vmem:[#allocation4 + $0x1e8] sm:$0xff]
          %v724 = vld [vmem:[#allocation4 + $0x1f0] sm:$0xff]
          %v725 = vld [vmem:[#allocation4 + $0x1f8] sm:$0xff]
          %v726 = vld [vmem:[%s6] sm:$0x3]
          %v728 = vlaneseq
          %v729 = vshrl.u32 %v728, 7
          %v730 = vsub.s32 0, %v729
          %v731 = vrot.slane %v726, %v730
          %v732 = vlaneseq
          %v733 = vshrl.u32 %v732, 7
          %v734 = vsub.s32 1, %v733
          %v735 = vrot.slane %v726, %v734
          %738 = vmatprep.subr.mxu0 %v693
          %739 = vmatpush1.msra.mxu0 %v692
          %740 = vmatprep.subr.mxu0 %v691
          %741 = vmatpush1.msra.mxu0 %v690
          %742 = vmatprep.subr.mxu0 %v689
          %743 = vmatpush1.msra.mxu0 %v688
          %744 = vmatprep.subr.mxu0 %v687
          %745 = vmatpush1.msra.mxu0 %v686
          %746 = vmatprep.subr.mxu0 %v685
          %747 = vmatpush1.msra.mxu0 %v684
          %748 = vmatprep.subr.mxu0 %v683
          %749 = vmatpush1.msra.mxu0 %v682
          %750 = vmatprep.subr.mxu0 %v681
          %751 = vmatpush1.msra.mxu0 %v680
          %752 = vmatprep.subr.mxu0 %v679
          %753 = vmatpush1.msra.mxu0 %v678
          %754 = vmatprep.subr.mxu0 %v677
          %755 = vmatpush1.msra.mxu0 %v676
          %756 = vmatprep.subr.mxu0 %v675
          %757 = vmatpush1.msra.mxu0 %v674
          %758 = vmatprep.subr.mxu0 %v673
          %759 = vmatpush1.msra.mxu0 %v672
          %760 = vmatprep.subr.mxu0 %v671
          %761 = vmatpush1.msra.mxu0 %v670
          %762 = vmatprep.subr.mxu0 %v669
          %763 = vmatpush1.msra.mxu0 %v668
          %764 = vmatprep.subr.mxu0 %v667
          %765 = vmatpush1.msra.mxu0 %v666
          %766 = vmatprep.subr.mxu0 %v665
          %767 = vmatpush1.msra.mxu0 %v664
          %768 = vmatprep.subr.mxu0 %v663
          %769 = vmatpush1.msra.mxu0 %v662
          %770 = vmatprep.subr.mxu0 %v725
          %771 = vmatpush2.msra.mxu0 %v724
          %772 = vmatprep.subr.mxu0 %v723
          %773 = vmatpush2.msra.mxu0 %v722
          %774 = vmatprep.subr.mxu0 %v721
          %775 = vmatpush2.msra.mxu0 %v720
          %776 = vmatprep.subr.mxu0 %v719
          %777 = vmatpush2.msra.mxu0 %v718
          %778 = vmatprep.subr.mxu0 %v717
          %779 = vmatpush2.msra.mxu0 %v716
          %780 = vmatprep.subr.mxu0 %v715
          %781 = vmatpush2.msra.mxu0 %v714
          %782 = vmatprep.subr.mxu0 %v713
          %783 = vmatpush2.msra.mxu0 %v712
          %784 = vmatprep.subr.mxu0 %v711
          %785 = vmatpush2.msra.mxu0 %v710
          %786 = vmatprep.subr.mxu0 %v709
          %787 = vmatpush2.msra.mxu0 %v708
          %788 = vmatprep.subr.mxu0 %v707
          %789 = vmatpush2.msra.mxu0 %v706
          %790 = vmatprep.subr.mxu0 %v705
          %791 = vmatpush2.msra.mxu0 %v704
          %792 = vmatprep.subr.mxu0 %v703
          %793 = vmatpush2.msra.mxu0 %v702
          %794 = vmatprep.subr.mxu0 %v701
          %795 = vmatpush2.msra.mxu0 %v700
          %796 = vmatprep.subr.mxu0 %v699
          %797 = vmatpush2.msra.mxu0 %v698
          %798 = vmatprep.subr.mxu0 %v697
          %799 = vmatpush2.msra.mxu0 %v696
          %800 = vmatprep.subr.mxu0 %v695
          %801 = vmatpush2.msra.mxu0 %v694
          %802 = vmatprep.mubr.f32.mxu0 %v654
          %803 = vmatmul.mubr.f32.gmra.mxu0 %v652
          %v804 = vpop.f32.mrf.mxu0
          %v805 = vadd.f32 %v731, %v804
          %v806 = vpop.f32.mrf.mxu0
          %v807 = vadd.f32 %v735, %v806
          %808 = vmatprep.mubr.f32.mxu0 %v660
          %809 = vmatmul.mubr.f32.gmra.mxu0 %v658
          %v810 = vpop.f32.mrf.mxu0
          %v811 = vadd.f32 %v731, %v810
          %v812 = vpop.f32.mrf.mxu0
          %v813 = vadd.f32 %v735, %v812
          %814 = vdwg.mxu0
          %815 = vmatprep.subr.mxu0 0.0
          %816 = vmatpush1.msra.mxu0 0.0
          %817 = vmatprep.subr.mxu0 0.0
          %818 = vmatpush1.msra.mxu0 0.0
          %819 = vmatprep.subr.mxu0 0.0
          %820 = vmatpush1.msra.mxu0 0.0
          %821 = vmatprep.subr.mxu0 0.0
          %822 = vmatpush1.msra.mxu0 0.0
          %823 = vmatprep.subr.mxu0 0.0
          %824 = vmatpush1.msra.mxu0 0.0
          %825 = vmatprep.subr.mxu0 0.0
          %826 = vmatpush1.msra.mxu0 0.0
          %827 = vmatprep.subr.mxu0 0.0
          %828 = vmatpush1.msra.mxu0 0.0
          %829 = vmatprep.subr.mxu0 0.0
          %830 = vmatpush1.msra.mxu0 0.0
          %831 = vmatprep.subr.mxu0 0.0
          %832 = vmatpush1.msra.mxu0 0.0
          %833 = vmatprep.subr.mxu0 0.0
          %834 = vmatpush1.msra.mxu0 0.0
          %835 = vmatprep.subr.mxu0 0.0
          %836 = vmatpush1.msra.mxu0 0.0
          %837 = vmatprep.subr.mxu0 0.0
          %838 = vmatpush1.msra.mxu0 0.0
          %839 = vmatprep.subr.mxu0 0.0
          %840 = vmatpush1.msra.mxu0 0.0
          %841 = vmatprep.subr.mxu0 0.0
          %842 = vmatpush1.msra.mxu0 0.0
          %843 = vmatprep.subr.mxu0 %v813
          %844 = vmatpush1.msra.mxu0 %v811
          %845 = vmatprep.subr.mxu0 %v807
          %846 = vmatpush1.msra.mxu0 %v805
          %847 = vmatprep.subr.mxu0 0.0
          %848 = vmatpush2.msra.mxu0 0.0
          %849 = vmatprep.subr.mxu0 0.0
          %850 = vmatpush2.msra.mxu0 0.0
          %851 = vmatprep.subr.mxu0 0.0
          %852 = vmatpush2.msra.mxu0 0.0
          %853 = vmatprep.subr.mxu0 0.0
          %854 = vmatpush2.msra.mxu0 0.0
          %855 = vmatprep.subr.mxu0 0.0
          %856 = vmatpush2.msra.mxu0 0.0
          %857 = vmatprep.subr.mxu0 0.0
          %858 = vmatpush2.msra.mxu0 0.0
          %859 = vmatprep.subr.mxu0 0.0
          %860 = vmatpush2.msra.mxu0 0.0
          %861 = vmatprep.subr.mxu0 0.0
          %862 = vmatpush2.msra.mxu0 0.0
          %863 = vmatprep.subr.mxu0 0.0
          %864 = vmatpush2.msra.mxu0 0.0
          %865 = vmatprep.subr.mxu0 0.0
          %866 = vmatpush2.msra.mxu0 0.0
          %867 = vmatprep.subr.mxu0 0.0
          %868 = vmatpush2.msra.mxu0 0.0
          %869 = vmatprep.subr.mxu0 0.0
          %870 = vmatpush2.msra.mxu0 0.0
          %871 = vmatprep.subr.mxu0 0.0
          %872 = vmatpush2.msra.mxu0 0.0
          %873 = vmatprep.subr.mxu0 0.0
          %874 = vmatpush2.msra.mxu0 0.0
          %875 = vmatprep.subr.mxu0 0.0
          %876 = vmatpush2.msra.mxu0 0.0
          %877 = vmatprep.subr.mxu0 0.0
          %878 = vmatpush2.msra.mxu0 0.0
          %879 = vmatprep.mubr.f32.mxu0 0.0
          %880 = vmatmul.mubr.f32.gmra.mxu0 %v580
          %v881 = vpop.f32.mrf.mxu0
          %v882 = vadd.f32 0.0, %v881
          %v883 = vpop.f32.mrf.mxu0
          %v884 = vadd.f32 0.0, %v883
          %885 = vmatprep.mubr.f32.mxu0 0.0
          %886 = vmatmul.mubr.f32.gmra.mxu0 %v583
          %v887 = vpop.f32.mrf.mxu0
          %v888 = vadd.f32 0.0, %v887
          %v889 = vpop.f32.mrf.mxu0
          %v890 = vadd.f32 0.0, %v889
          %891 = vdwg.mxu0
          %v892 = vld [vmem:[#allocation7] sm:$0xff]
          %v893 = vld [vmem:[#allocation7 + $0x8] sm:$0xff]
          %v894 = vld [vmem:[#allocation7 + $0x10] sm:$0xff]
          %v895 = vld [vmem:[#allocation7 + $0x18] sm:$0xff]
          %v896 = vld [vmem:[#allocation7 + $0x20] sm:$0xff]
          %v897 = vld [vmem:[#allocation7 + $0x28] sm:$0xff]
          %v898 = vld [vmem:[#allocation7 + $0x30] sm:$0xff]
          %v899 = vld [vmem:[#allocation7 + $0x38] sm:$0xff]
          %v900 = vld [vmem:[#allocation7 + $0x40] sm:$0xff]
          %v901 = vld [vmem:[#allocation7 + $0x48] sm:$0xff]
          %v902 = vld [vmem:[#allocation7 + $0x50] sm:$0xff]
          %v903 = vld [vmem:[#allocation7 + $0x58] sm:$0xff]
          %v904 = vld [vmem:[#allocation7 + $0x60] sm:$0xff]
          %v905 = vld [vmem:[#allocation7 + $0x68] sm:$0xff]
          %v906 = vld [vmem:[#allocation7 + $0x70] sm:$0xff]
          %v907 = vld [vmem:[#allocation7 + $0x78] sm:$0xff]
          %v908 = vld [vmem:[#allocation7 + $0x80] sm:$0xff]
          %v909 = vld [vmem:[#allocation7 + $0x88] sm:$0xff]
          %v910 = vld [vmem:[#allocation7 + $0x90] sm:$0xff]
          %v911 = vld [vmem:[#allocation7 + $0x98] sm:$0xff]
          %v912 = vld [vmem:[#allocation7 + $0xa0] sm:$0xff]
          %v913 = vld [vmem:[#allocation7 + $0xa8] sm:$0xff]
          %v914 = vld [vmem:[#allocation7 + $0xb0] sm:$0xff]
          %v915 = vld [vmem:[#allocation7 + $0xb8] sm:$0xff]
          %v916 = vld [vmem:[#allocation7 + $0xc0] sm:$0xff]
          %v917 = vld [vmem:[#allocation7 + $0xc8] sm:$0xff]
          %v918 = vld [vmem:[#allocation7 + $0xd0] sm:$0xff]
          %v919 = vld [vmem:[#allocation7 + $0xd8] sm:$0xff]
          %v920 = vld [vmem:[#allocation7 + $0xe0] sm:$0xff]
          %v921 = vld [vmem:[#allocation7 + $0xe8] sm:$0xff]
          %v922 = vld [vmem:[#allocation7 + $0xf0] sm:$0xff]
          %v923 = vld [vmem:[#allocation7 + $0xf8] sm:$0xff]
          %v924 = vld [vmem:[#allocation7 + $0x100] sm:$0xff]
          %v925 = vld [vmem:[#allocation7 + $0x108] sm:$0xff]
          %v926 = vld [vmem:[#allocation7 + $0x110] sm:$0xff]
          %v927 = vld [vmem:[#allocation7 + $0x118] sm:$0xff]
          %v928 = vld [vmem:[#allocation7 + $0x120] sm:$0xff]
          %v929 = vld [vmem:[#allocation7 + $0x128] sm:$0xff]
          %v930 = vld [vmem:[#allocation7 + $0x130] sm:$0xff]
          %v931 = vld [vmem:[#allocation7 + $0x138] sm:$0xff]
          %v932 = vld [vmem:[#allocation7 + $0x140] sm:$0xff]
          %v933 = vld [vmem:[#allocation7 + $0x148] sm:$0xff]
          %v934 = vld [vmem:[#allocation7 + $0x150] sm:$0xff]
          %v935 = vld [vmem:[#allocation7 + $0x158] sm:$0xff]
          %v936 = vld [vmem:[#allocation7 + $0x160] sm:$0xff]
          %v937 = vld [vmem:[#allocation7 + $0x168] sm:$0xff]
          %v938 = vld [vmem:[#allocation7 + $0x170] sm:$0xff]
          %v939 = vld [vmem:[#allocation7 + $0x178] sm:$0xff]
          %v940 = vld [vmem:[#allocation7 + $0x180] sm:$0xff]
          %v941 = vld [vmem:[#allocation7 + $0x188] sm:$0xff]
          %v942 = vld [vmem:[#allocation7 + $0x190] sm:$0xff]
          %v943 = vld [vmem:[#allocation7 + $0x198] sm:$0xff]
          %v944 = vld [vmem:[#allocation7 + $0x1a0] sm:$0xff]
          %v945 = vld [vmem:[#allocation7 + $0x1a8] sm:$0xff]
          %v946 = vld [vmem:[#allocation7 + $0x1b0] sm:$0xff]
          %v947 = vld [vmem:[#allocation7 + $0x1b8] sm:$0xff]
          %v948 = vld [vmem:[#allocation7 + $0x1c0] sm:$0xff]
          %v949 = vld [vmem:[#allocation7 + $0x1c8] sm:$0xff]
          %v950 = vld [vmem:[#allocation7 + $0x1d0] sm:$0xff]
          %v951 = vld [vmem:[#allocation7 + $0x1d8] sm:$0xff]
          %v952 = vld [vmem:[#allocation7 + $0x1e0] sm:$0xff]
          %v953 = vld [vmem:[#allocation7 + $0x1e8] sm:$0xff]
          %v954 = vld [vmem:[#allocation7 + $0x1f0] sm:$0xff]
          %v955 = vld [vmem:[#allocation7 + $0x1f8] sm:$0xff]
          %v956 = vld [vmem:[%s8] sm:$0x3]
          %v958 = vlaneseq
          %v959 = vshrl.u32 %v958, 7
          %v960 = vsub.s32 0, %v959
          %v961 = vrot.slane %v956, %v960
          %v962 = vlaneseq
          %v963 = vshrl.u32 %v962, 7
          %v964 = vsub.s32 1, %v963
          %v965 = vrot.slane %v956, %v964
          %968 = vmatprep.subr.mxu0 %v923
          %969 = vmatpush1.msra.mxu0 %v922
          %970 = vmatprep.subr.mxu0 %v921
          %971 = vmatpush1.msra.mxu0 %v920
          %972 = vmatprep.subr.mxu0 %v919
          %973 = vmatpush1.msra.mxu0 %v918
          %974 = vmatprep.subr.mxu0 %v917
          %975 = vmatpush1.msra.mxu0 %v916
          %976 = vmatprep.subr.mxu0 %v915
          %977 = vmatpush1.msra.mxu0 %v914
          %978 = vmatprep.subr.mxu0 %v913
          %979 = vmatpush1.msra.mxu0 %v912
          %980 = vmatprep.subr.mxu0 %v911
          %981 = vmatpush1.msra.mxu0 %v910
          %982 = vmatprep.subr.mxu0 %v909
          %983 = vmatpush1.msra.mxu0 %v908
          %984 = vmatprep.subr.mxu0 %v907
          %985 = vmatpush1.msra.mxu0 %v906
          %986 = vmatprep.subr.mxu0 %v905
          %987 = vmatpush1.msra.mxu0 %v904
          %988 = vmatprep.subr.mxu0 %v903
          %989 = vmatpush1.msra.mxu0 %v902
          %990 = vmatprep.subr.mxu0 %v901
          %991 = vmatpush1.msra.mxu0 %v900
          %992 = vmatprep.subr.mxu0 %v899
          %993 = vmatpush1.msra.mxu0 %v898
          %994 = vmatprep.subr.mxu0 %v897
          %995 = vmatpush1.msra.mxu0 %v896
          %996 = vmatprep.subr.mxu0 %v895
          %997 = vmatpush1.msra.mxu0 %v894
          %998 = vmatprep.subr.mxu0 %v893
          %999 = vmatpush1.msra.mxu0 %v892
          %1000 = vmatprep.subr.mxu0 %v955
          %1001 = vmatpush2.msra.mxu0 %v954
          %1002 = vmatprep.subr.mxu0 %v953
          %1003 = vmatpush2.msra.mxu0 %v952
          %1004 = vmatprep.subr.mxu0 %v951
          %1005 = vmatpush2.msra.mxu0 %v950
          %1006 = vmatprep.subr.mxu0 %v949
          %1007 = vmatpush2.msra.mxu0 %v948
          %1008 = vmatprep.subr.mxu0 %v947
          %1009 = vmatpush2.msra.mxu0 %v946
          %1010 = vmatprep.subr.mxu0 %v945
          %1011 = vmatpush2.msra.mxu0 %v944
          %1012 = vmatprep.subr.mxu0 %v943
          %1013 = vmatpush2.msra.mxu0 %v942
          %1014 = vmatprep.subr.mxu0 %v941
          %1015 = vmatpush2.msra.mxu0 %v940
          %1016 = vmatprep.subr.mxu0 %v939
          %1017 = vmatpush2.msra.mxu0 %v938
          %1018 = vmatprep.subr.mxu0 %v937
          %1019 = vmatpush2.msra.mxu0 %v936
          %1020 = vmatprep.subr.mxu0 %v935
          %1021 = vmatpush2.msra.mxu0 %v934
          %1022 = vmatprep.subr.mxu0 %v933
          %1023 = vmatpush2.msra.mxu0 %v932
          %1024 = vmatprep.subr.mxu0 %v931
          %1025 = vmatpush2.msra.mxu0 %v930
          %1026 = vmatprep.subr.mxu0 %v929
          %1027 = vmatpush2.msra.mxu0 %v928
          %1028 = vmatprep.subr.mxu0 %v927
          %1029 = vmatpush2.msra.mxu0 %v926
          %1030 = vmatprep.subr.mxu0 %v925
          %1031 = vmatpush2.msra.mxu0 %v924
          %1032 = vmatprep.mubr.f32.mxu0 %v884
          %1033 = vmatmul.mubr.f32.gmra.mxu0 %v882
          %v1034 = vpop.f32.mrf.mxu0
          %v1035 = vadd.f32 %v961, %v1034
          %v1036 = vpop.f32.mrf.mxu0
          %v1037 = vadd.f32 %v965, %v1036
          %1038 = vmatprep.mubr.f32.mxu0 %v890
          %1039 = vmatmul.mubr.f32.gmra.mxu0 %v888
          %v1040 = vpop.f32.mrf.mxu0
          %v1041 = vadd.f32 %v961, %v1040
          %v1042 = vpop.f32.mrf.mxu0
          %v1043 = vadd.f32 %v965, %v1042
          %1044 = vdwg.mxu0
          %1045 = vst [vmem:[#allocation3] sm:$0xff] %v1035
          %1046 = vst [vmem:[#allocation3 + $0x8] sm:$0xff] %v1037
          %1047 = vst [vmem:[#allocation3 + $0x10] sm:$0xff] %v1041
          %1048 = vst [vmem:[#allocation3 + $0x18] sm:$0xff] %v1043
        $region96: #{tpu_custom_call.1} parent=79 // pred_fallthru
          _
        %v1049 = vld [vmem:[%s553] sm:$0xff]
        %v1050 = vld [vmem:[%s553 + $0x8] sm:$0xff]
        %vm1051 = vcmask 130048
        %v1053 = vsel %vm1051, %v558, 0
        %v1056 = vsel %vm1051, %v559, 0
        %1058 = vmatprep.subr.mxu0 0.0
        %1059 = vmatpush1.msra.mxu0 0.0
        %1060 = vmatprep.subr.mxu0 0.0
        %1061 = vmatpush1.msra.mxu0 0.0
        %1062 = vmatprep.subr.mxu0 0.0
        %1063 = vmatpush1.msra.mxu0 0.0
        %1064 = vmatprep.subr.mxu0 0.0
        %1065 = vmatpush1.msra.mxu0 0.0
        %1066 = vmatprep.subr.mxu0 0.0
        %1067 = vmatpush1.msra.mxu0 0.0
        %1068 = vmatprep.subr.mxu0 0.0
        %1069 = vmatpush1.msra.mxu0 0.0
        %1070 = vmatprep.subr.mxu0 0.0
        %1071 = vmatpush1.msra.mxu0 0.0
        %1072 = vmatprep.subr.mxu0 0.0
        %1073 = vmatpush1.msra.mxu0 0.0
        %1074 = vmatprep.subr.mxu0 0.0
        %1075 = vmatpush1.msra.mxu0 0.0
        %1076 = vmatprep.subr.mxu0 0.0
        %1077 = vmatpush1.msra.mxu0 0.0
        %1078 = vmatprep.subr.mxu0 0.0
        %1079 = vmatpush1.msra.mxu0 0.0
        %1080 = vmatprep.subr.mxu0 0.0
        %1081 = vmatpush1.msra.mxu0 0.0
        %1082 = vmatprep.subr.mxu0 0.0
        %1083 = vmatpush1.msra.mxu0 0.0
        %1084 = vmatprep.subr.mxu0 0.0
        %1085 = vmatpush1.msra.mxu0 0.0
        %1086 = vmatprep.subr.mxu0 0.0
        %1087 = vmatpush1.msra.mxu0 %v1050
        %1088 = vmatprep.subr.mxu0 0.0
        %1089 = vmatpush1.msra.mxu0 %v1049
        %1090 = vmatprep.subr.mxu0 0.0
        %1091 = vmatpush2.msra.mxu0 0.0
        %1092 = vmatprep.subr.mxu0 0.0
        %1093 = vmatpush2.msra.mxu0 0.0
        %1094 = vmatprep.subr.mxu0 0.0
        %1095 = vmatpush2.msra.mxu0 0.0
        %1096 = vmatprep.subr.mxu0 0.0
        %1097 = vmatpush2.msra.mxu0 0.0
        %1098 = vmatprep.subr.mxu0 0.0
        %1099 = vmatpush2.msra.mxu0 0.0
        %1100 = vmatprep.subr.mxu0 0.0
        %1101 = vmatpush2.msra.mxu0 0.0
        %1102 = vmatprep.subr.mxu0 0.0
        %1103 = vmatpush2.msra.mxu0 0.0
        %1104 = vmatprep.subr.mxu0 0.0
        %1105 = vmatpush2.msra.mxu0 0.0
        %1106 = vmatprep.subr.mxu0 0.0
        %1107 = vmatpush2.msra.mxu0 0.0
        %1108 = vmatprep.subr.mxu0 0.0
        %1109 = vmatpush2.msra.mxu0 0.0
        %1110 = vmatprep.subr.mxu0 0.0
        %1111 = vmatpush2.msra.mxu0 0.0
        %1112 = vmatprep.subr.mxu0 0.0
        %1113 = vmatpush2.msra.mxu0 0.0
        %1114 = vmatprep.subr.mxu0 0.0
        %1115 = vmatpush2.msra.mxu0 0.0
        %1116 = vmatprep.subr.mxu0 0.0
        %1117 = vmatpush2.msra.mxu0 0.0
        %1118 = vmatprep.subr.mxu0 0.0
        %1119 = vmatpush2.msra.mxu0 0.0
        %1120 = vmatprep.subr.mxu0 0.0
        %1121 = vmatpush2.msra.mxu0 0.0
        %1122 = vmatprep.mubr.f32.mxu0 0.0
        %1123 = vmatmul.mubr.f32.gmra.mxu0 %v1053
        %v1124 = vpop.f32.mrf.mxu0
        %v1125 = vadd.f32 0.0, %v1124
        %v1126 = vpop.f32.mrf.mxu0
        %1127 = vmatprep.mubr.f32.mxu0 0.0
        %1128 = vmatmul.mubr.f32.gmra.mxu0 %v1056
        %v1129 = vpop.f32.mrf.mxu0
        %v1130 = vadd.f32 0.0, %v1129
        %v1131 = vpop.f32.mrf.mxu0
        %1132 = vdwg.mxu0
        %v1133 = vld [vmem:[%s3] sm:$0xff]
        %v1134 = vld [vmem:[%s3 + $0x8] sm:$0xff]
        %v1135 = vld [vmem:[%s3 + $0x10] sm:$0xff]
        %v1136 = vld [vmem:[%s3 + $0x18] sm:$0xff]
        %v1137 = vld [vmem:[%s3 + $0x20] sm:$0xff]
        %v1138 = vld [vmem:[%s3 + $0x28] sm:$0xff]
        %v1139 = vld [vmem:[%s3 + $0x30] sm:$0xff]
        %v1140 = vld [vmem:[%s3 + $0x38] sm:$0xff]
        %vm1141 = vcmask 261120
        %v1143 = vsel %vm1141, %v1125, 0
        %v1146 = vsel %vm1141, %v1130, 0
        %1148 = vmatprep.subr.mxu0 0.0
        %1149 = vmatpush1.msra.mxu0 0.0
        %1150 = vmatprep.subr.mxu0 0.0
        %1151 = vmatpush1.msra.mxu0 0.0
        %1152 = vmatprep.subr.mxu0 0.0
        %1153 = vmatpush1.msra.mxu0 0.0
        %1154 = vmatprep.subr.mxu0 0.0
        %1155 = vmatpush1.msra.mxu0 0.0
        %1156 = vmatprep.subr.mxu0 0.0
        %1157 = vmatpush1.msra.mxu0 0.0
        %1158 = vmatprep.subr.mxu0 0.0
        %1159 = vmatpush1.msra.mxu0 0.0
        %1160 = vmatprep.subr.mxu0 0.0
        %1161 = vmatpush1.msra.mxu0 0.0
        %1162 = vmatprep.subr.mxu0 0.0
        %1163 = vmatpush1.msra.mxu0 0.0
        %1164 = vmatprep.subr.mxu0 0.0
        %1165 = vmatpush1.msra.mxu0 0.0
        %1166 = vmatprep.subr.mxu0 0.0
        %1167 = vmatpush1.msra.mxu0 0.0
        %1168 = vmatprep.subr.mxu0 0.0
        %1169 = vmatpush1.msra.mxu0 0.0
        %1170 = vmatprep.subr.mxu0 0.0
        %1171 = vmatpush1.msra.mxu0 0.0
        %1172 = vmatprep.subr.mxu0 %v1140
        %1173 = vmatpush1.msra.mxu0 %v1139
        %1174 = vmatprep.subr.mxu0 %v1138
        %1175 = vmatpush1.msra.mxu0 %v1137
        %1176 = vmatprep.subr.mxu0 %v1136
        %1177 = vmatpush1.msra.mxu0 %v1135
        %1178 = vmatprep.subr.mxu0 %v1134
        %1179 = vmatpush1.msra.mxu0 %v1133
        %1180 = vmatprep.subr.mxu0 0.0
        %1181 = vmatpush2.msra.mxu0 0.0
        %1182 = vmatprep.subr.mxu0 0.0
        %1183 = vmatpush2.msra.mxu0 0.0
        %1184 = vmatprep.subr.mxu0 0.0
        %1185 = vmatpush2.msra.mxu0 0.0
        %1186 = vmatprep.subr.mxu0 0.0
        %1187 = vmatpush2.msra.mxu0 0.0
        %1188 = vmatprep.subr.mxu0 0.0
        %1189 = vmatpush2.msra.mxu0 0.0
        %1190 = vmatprep.subr.mxu0 0.0
        %1191 = vmatpush2.msra.mxu0 0.0
        %1192 = vmatprep.subr.mxu0 0.0
        %1193 = vmatpush2.msra.mxu0 0.0
        %1194 = vmatprep.subr.mxu0 0.0
        %1195 = vmatpush2.msra.mxu0 0.0
        %1196 = vmatprep.subr.mxu0 0.0
        %1197 = vmatpush2.msra.mxu0 0.0
        %1198 = vmatprep.subr.mxu0 0.0
        %1199 = vmatpush2.msra.mxu0 0.0
        %1200 = vmatprep.subr.mxu0 0.0
        %1201 = vmatpush2.msra.mxu0 0.0
        %1202 = vmatprep.subr.mxu0 0.0
        %1203 = vmatpush2.msra.mxu0 0.0
        %1204 = vmatprep.subr.mxu0 0.0
        %1205 = vmatpush2.msra.mxu0 0.0
        %1206 = vmatprep.subr.mxu0 0.0
        %1207 = vmatpush2.msra.mxu0 0.0
        %1208 = vmatprep.subr.mxu0 0.0
        %1209 = vmatpush2.msra.mxu0 0.0
        %1210 = vmatprep.subr.mxu0 0.0
        %1211 = vmatpush2.msra.mxu0 0.0
        %1212 = vmatprep.mubr.f32.mxu0 0.0
        %1213 = vmatmul.mubr.f32.gmra.mxu0 %v1143
        %v1214 = vpop.f32.mrf.mxu0
        %v1215 = vadd.f32 0.0, %v1214
        %v1216 = vpop.f32.mrf.mxu0
        %v1217 = vadd.f32 0.0, %v1216
        %1218 = vmatprep.mubr.f32.mxu0 0.0
        %1219 = vmatmul.mubr.f32.gmra.mxu0 %v1146
        %v1220 = vpop.f32.mrf.mxu0
        %v1221 = vadd.f32 0.0, %v1220
        %v1222 = vpop.f32.mrf.mxu0
        %v1223 = vadd.f32 0.0, %v1222
        %1224 = vdwg.mxu0
        %1225 = vmatprep.subr.mxu0 0.0
        %1226 = vmatpush1.msra.mxu0 0.0
        %1227 = vmatprep.subr.mxu0 0.0
        %1228 = vmatpush1.msra.mxu0 0.0
        %1229 = vmatprep.subr.mxu0 0.0
        %1230 = vmatpush1.msra.mxu0 0.0
        %1231 = vmatprep.subr.mxu0 0.0
        %1232 = vmatpush1.msra.mxu0 0.0
        %1233 = vmatprep.subr.mxu0 0.0
        %1234 = vmatpush1.msra.mxu0 0.0
        %1235 = vmatprep.subr.mxu0 0.0
        %1236 = vmatpush1.msra.mxu0 0.0
        %1237 = vmatprep.subr.mxu0 0.0
        %1238 = vmatpush1.msra.mxu0 0.0
        %1239 = vmatprep.subr.mxu0 0.0
        %1240 = vmatpush1.msra.mxu0 0.0
        %1241 = vmatprep.subr.mxu0 0.0
        %1242 = vmatpush1.msra.mxu0 0.0
        %1243 = vmatprep.subr.mxu0 0.0
        %1244 = vmatpush1.msra.mxu0 0.0
        %1245 = vmatprep.subr.mxu0 0.0
        %1246 = vmatpush1.msra.mxu0 0.0
        %1247 = vmatprep.subr.mxu0 0.0
        %1248 = vmatpush1.msra.mxu0 0.0
        %1249 = vmatprep.subr.mxu0 0.0
        %1250 = vmatpush1.msra.mxu0 0.0
        %1251 = vmatprep.subr.mxu0 0.0
        %1252 = vmatpush1.msra.mxu0 0.0
        %1253 = vmatprep.subr.mxu0 %v1223
        %1254 = vmatpush1.msra.mxu0 %v1221
        %1255 = vmatprep.subr.mxu0 %v1217
        %1256 = vmatpush1.msra.mxu0 %v1215
        %1257 = vmatprep.subr.mxu0 0.0
        %1258 = vmatpush2.msra.mxu0 0.0
        %1259 = vmatprep.subr.mxu0 0.0
        %1260 = vmatpush2.msra.mxu0 0.0
        %1261 = vmatprep.subr.mxu0 0.0
        %1262 = vmatpush2.msra.mxu0 0.0
        %1263 = vmatprep.subr.mxu0 0.0
        %1264 = vmatpush2.msra.mxu0 0.0
        %1265 = vmatprep.subr.mxu0 0.0
        %1266 = vmatpush2.msra.mxu0 0.0
        %1267 = vmatprep.subr.mxu0 0.0
        %1268 = vmatpush2.msra.mxu0 0.0
        %1269 = vmatprep.subr.mxu0 0.0
        %1270 = vmatpush2.msra.mxu0 0.0
        %1271 = vmatprep.subr.mxu0 0.0
        %1272 = vmatpush2.msra.mxu0 0.0
        %1273 = vmatprep.subr.mxu0 0.0
        %1274 = vmatpush2.msra.mxu0 0.0
        %1275 = vmatprep.subr.mxu0 0.0
        %1276 = vmatpush2.msra.mxu0 0.0
        %1277 = vmatprep.subr.mxu0 0.0
        %1278 = vmatpush2.msra.mxu0 0.0
        %1279 = vmatprep.subr.mxu0 0.0
        %1280 = vmatpush2.msra.mxu0 0.0
        %1281 = vmatprep.subr.mxu0 0.0
        %1282 = vmatpush2.msra.mxu0 0.0
        %1283 = vmatprep.subr.mxu0 0.0
        %1284 = vmatpush2.msra.mxu0 0.0
        %1285 = vmatprep.subr.mxu0 0.0
        %1286 = vmatpush2.msra.mxu0 0.0
        %1287 = vmatprep.subr.mxu0 0.0
        %1288 = vmatpush2.msra.mxu0 0.0
        %1289 = vmatprep.mubr.f32.mxu0 0.0
        %1290 = vmatmul.mubr.f32.gmra.mxu0 %v1053
        %v1291 = vpop.f32.mrf.mxu0
        %v1292 = vadd.f32 0.0, %v1291
        %v1293 = vpop.f32.mrf.mxu0
        %v1294 = vadd.f32 0.0, %v1293
        %1295 = vmatprep.mubr.f32.mxu0 0.0
        %1296 = vmatmul.mubr.f32.gmra.mxu0 %v1056
        %v1297 = vpop.f32.mrf.mxu0
        %v1298 = vadd.f32 0.0, %v1297
        %v1299 = vpop.f32.mrf.mxu0
        %v1300 = vadd.f32 0.0, %v1299
        %1301 = vdwg.mxu0
        %v1302 = vld [vmem:[#allocation4] sm:$0xff]
        %v1303 = vld [vmem:[#allocation4 + $0x8] sm:$0xff]
        %v1304 = vld [vmem:[#allocation4 + $0x10] sm:$0xff]
        %v1305 = vld [vmem:[#allocation4 + $0x18] sm:$0xff]
        %v1306 = vld [vmem:[#allocation4 + $0x20] sm:$0xff]
        %v1307 = vld [vmem:[#allocation4 + $0x28] sm:$0xff]
        %v1308 = vld [vmem:[#allocation4 + $0x30] sm:$0xff]
        %v1309 = vld [vmem:[#allocation4 + $0x38] sm:$0xff]
        %v1310 = vld [vmem:[#allocation4 + $0x40] sm:$0xff]
        %v1311 = vld [vmem:[#allocation4 + $0x48] sm:$0xff]
        %v1312 = vld [vmem:[#allocation4 + $0x50] sm:$0xff]
        %v1313 = vld [vmem:[#allocation4 + $0x58] sm:$0xff]
        %v1314 = vld [vmem:[#allocation4 + $0x60] sm:$0xff]
        %v1315 = vld [vmem:[#allocation4 + $0x68] sm:$0xff]
        %v1316 = vld [vmem:[#allocation4 + $0x70] sm:$0xff]
        %v1317 = vld [vmem:[#allocation4 + $0x78] sm:$0xff]
        %v1318 = vld [vmem:[#allocation4 + $0x80] sm:$0xff]
        %v1319 = vld [vmem:[#allocation4 + $0x88] sm:$0xff]
        %v1320 = vld [vmem:[#allocation4 + $0x90] sm:$0xff]
        %v1321 = vld [vmem:[#allocation4 + $0x98] sm:$0xff]
        %v1322 = vld [vmem:[#allocation4 + $0xa0] sm:$0xff]
        %v1323 = vld [vmem:[#allocation4 + $0xa8] sm:$0xff]
        %v1324 = vld [vmem:[#allocation4 + $0xb0] sm:$0xff]
        %v1325 = vld [vmem:[#allocation4 + $0xb8] sm:$0xff]
        %v1326 = vld [vmem:[#allocation4 + $0xc0] sm:$0xff]
        %v1327 = vld [vmem:[#allocation4 + $0xc8] sm:$0xff]
        %v1328 = vld [vmem:[#allocation4 + $0xd0] sm:$0xff]
        %v1329 = vld [vmem:[#allocation4 + $0xd8] sm:$0xff]
        %v1330 = vld [vmem:[#allocation4 + $0xe0] sm:$0xff]
        %v1331 = vld [vmem:[#allocation4 + $0xe8] sm:$0xff]
        %v1332 = vld [vmem:[#allocation4 + $0xf0] sm:$0xff]
        %v1333 = vld [vmem:[#allocation4 + $0xf8] sm:$0xff]
        %v1334 = vld [vmem:[#allocation4 + $0x100] sm:$0xff]
        %v1335 = vld [vmem:[#allocation4 + $0x108] sm:$0xff]
        %v1336 = vld [vmem:[#allocation4 + $0x110] sm:$0xff]
        %v1337 = vld [vmem:[#allocation4 + $0x118] sm:$0xff]
        %v1338 = vld [vmem:[#allocation4 + $0x120] sm:$0xff]
        %v1339 = vld [vmem:[#allocation4 + $0x128] sm:$0xff]
        %v1340 = vld [vmem:[#allocation4 + $0x130] sm:$0xff]
        %v1341 = vld [vmem:[#allocation4 + $0x138] sm:$0xff]
        %v1342 = vld [vmem:[#allocation4 + $0x140] sm:$0xff]
        %v1343 = vld [vmem:[#allocation4 + $0x148] sm:$0xff]
        %v1344 = vld [vmem:[#allocation4 + $0x150] sm:$0xff]
        %v1345 = vld [vmem:[#allocation4 + $0x158] sm:$0xff]
        %v1346 = vld [vmem:[#allocation4 + $0x160] sm:$0xff]
        %v1347 = vld [vmem:[#allocation4 + $0x168] sm:$0xff]
        %v1348 = vld [vmem:[#allocation4 + $0x170] sm:$0xff]
        %v1349 = vld [vmem:[#allocation4 + $0x178] sm:$0xff]
        %v1350 = vld [vmem:[#allocation4 + $0x180] sm:$0xff]
        %v1351 = vld [vmem:[#allocation4 + $0x188] sm:$0xff]
        %v1352 = vld [vmem:[#allocation4 + $0x190] sm:$0xff]
        %v1353 = vld [vmem:[#allocation4 + $0x198] sm:$0xff]
        %v1354 = vld [vmem:[#allocation4 + $0x1a0] sm:$0xff]
        %v1355 = vld [vmem:[#allocation4 + $0x1a8] sm:$0xff]
        %v1356 = vld [vmem:[#allocation4 + $0x1b0] sm:$0xff]
        %v1357 = vld [vmem:[#allocation4 + $0x1b8] sm:$0xff]
        %v1358 = vld [vmem:[#allocation4 + $0x1c0] sm:$0xff]
        %v1359 = vld [vmem:[#allocation4 + $0x1c8] sm:$0xff]
        %v1360 = vld [vmem:[#allocation4 + $0x1d0] sm:$0xff]
        %v1361 = vld [vmem:[#allocation4 + $0x1d8] sm:$0xff]
        %v1362 = vld [vmem:[#allocation4 + $0x1e0] sm:$0xff]
        %v1363 = vld [vmem:[#allocation4 + $0x1e8] sm:$0xff]
        %v1364 = vld [vmem:[#allocation4 + $0x1f0] sm:$0xff]
        %v1365 = vld [vmem:[#allocation4 + $0x1f8] sm:$0xff]
        %1366 = vmatprep.subr.mxu0 %v1333
        %1367 = vmatpush1.msra.mxu0 %v1332
        %1368 = vmatprep.subr.mxu0 %v1331
        %1369 = vmatpush1.msra.mxu0 %v1330
        %1370 = vmatprep.subr.mxu0 %v1329
        %1371 = vmatpush1.msra.mxu0 %v1328
        %1372 = vmatprep.subr.mxu0 %v1327
        %1373 = vmatpush1.msra.mxu0 %v1326
        %1374 = vmatprep.subr.mxu0 %v1325
        %1375 = vmatpush1.msra.mxu0 %v1324
        %1376 = vmatprep.subr.mxu0 %v1323
        %1377 = vmatpush1.msra.mxu0 %v1322
        %1378 = vmatprep.subr.mxu0 %v1321
        %1379 = vmatpush1.msra.mxu0 %v1320
        %1380 = vmatprep.subr.mxu0 %v1319
        %1381 = vmatpush1.msra.mxu0 %v1318
        %1382 = vmatprep.subr.mxu0 %v1317
        %1383 = vmatpush1.msra.mxu0 %v1316
        %1384 = vmatprep.subr.mxu0 %v1315
        %1385 = vmatpush1.msra.mxu0 %v1314
        %1386 = vmatprep.subr.mxu0 %v1313
        %1387 = vmatpush1.msra.mxu0 %v1312
        %1388 = vmatprep.subr.mxu0 %v1311
        %1389 = vmatpush1.msra.mxu0 %v1310
        %1390 = vmatprep.subr.mxu0 %v1309
        %1391 = vmatpush1.msra.mxu0 %v1308
        %1392 = vmatprep.subr.mxu0 %v1307
        %1393 = vmatpush1.msra.mxu0 %v1306
        %1394 = vmatprep.subr.mxu0 %v1305
        %1395 = vmatpush1.msra.mxu0 %v1304
        %1396 = vmatprep.subr.mxu0 %v1303
        %1397 = vmatpush1.msra.mxu0 %v1302
        %1398 = vmatprep.subr.mxu0 %v1365
        %1399 = vmatpush2.msra.mxu0 %v1364
        %1400 = vmatprep.subr.mxu0 %v1363
        %1401 = vmatpush2.msra.mxu0 %v1362
        %1402 = vmatprep.subr.mxu0 %v1361
        %1403 = vmatpush2.msra.mxu0 %v1360
        %1404 = vmatprep.subr.mxu0 %v1359
        %1405 = vmatpush2.msra.mxu0 %v1358
        %1406 = vmatprep.subr.mxu0 %v1357
        %1407 = vmatpush2.msra.mxu0 %v1356
        %1408 = vmatprep.subr.mxu0 %v1355
        %1409 = vmatpush2.msra.mxu0 %v1354
        %1410 = vmatprep.subr.mxu0 %v1353
        %1411 = vmatpush2.msra.mxu0 %v1352
        %1412 = vmatprep.subr.mxu0 %v1351
        %1413 = vmatpush2.msra.mxu0 %v1350
        %1414 = vmatprep.subr.mxu0 %v1349
        %1415 = vmatpush2.msra.mxu0 %v1348
        %1416 = vmatprep.subr.mxu0 %v1347
        %1417 = vmatpush2.msra.mxu0 %v1346
        %1418 = vmatprep.subr.mxu0 %v1345
        %1419 = vmatpush2.msra.mxu0 %v1344
        %1420 = vmatprep.subr.mxu0 %v1343
        %1421 = vmatpush2.msra.mxu0 %v1342
        %1422 = vmatprep.subr.mxu0 %v1341
        %1423 = vmatpush2.msra.mxu0 %v1340
        %1424 = vmatprep.subr.mxu0 %v1339
        %1425 = vmatpush2.msra.mxu0 %v1338
        %1426 = vmatprep.subr.mxu0 %v1337
        %1427 = vmatpush2.msra.mxu0 %v1336
        %1428 = vmatprep.subr.mxu0 %v1335
        %1429 = vmatpush2.msra.mxu0 %v1334
        %1430 = vmatprep.mubr.f32.mxu0 %v1294
        %1431 = vmatmul.mubr.f32.gmra.mxu0 %v1292
        %v1432 = vpop.f32.mrf.mxu0
        %v1433 = vadd.f32 0.0, %v1432
        %v1434 = vpop.f32.mrf.mxu0
        %v1435 = vadd.f32 0.0, %v1434
        %1436 = vmatprep.mubr.f32.mxu0 %v1300
        %1437 = vmatmul.mubr.f32.gmra.mxu0 %v1298
        %v1438 = vpop.f32.mrf.mxu0
        %v1439 = vadd.f32 0.0, %v1438
        %v1440 = vpop.f32.mrf.mxu0
        %v1441 = vadd.f32 0.0, %v1440
        %1442 = vdwg.mxu0
        %1443 = vmatprep.subr.mxu0 0.0
        %1444 = vmatpush1.msra.mxu0 0.0
        %1445 = vmatprep.subr.mxu0 0.0
        %1446 = vmatpush1.msra.mxu0 0.0
        %1447 = vmatprep.subr.mxu0 0.0
        %1448 = vmatpush1.msra.mxu0 0.0
        %1449 = vmatprep.subr.mxu0 0.0
        %1450 = vmatpush1.msra.mxu0 0.0
        %1451 = vmatprep.subr.mxu0 0.0
        %1452 = vmatpush1.msra.mxu0 0.0
        %1453 = vmatprep.subr.mxu0 0.0
        %1454 = vmatpush1.msra.mxu0 0.0
        %1455 = vmatprep.subr.mxu0 0.0
        %1456 = vmatpush1.msra.mxu0 0.0
        %1457 = vmatprep.subr.mxu0 0.0
        %1458 = vmatpush1.msra.mxu0 0.0
        %1459 = vmatprep.subr.mxu0 0.0
        %1460 = vmatpush1.msra.mxu0 0.0
        %1461 = vmatprep.subr.mxu0 0.0
        %1462 = vmatpush1.msra.mxu0 0.0
        %1463 = vmatprep.subr.mxu0 0.0
        %1464 = vmatpush1.msra.mxu0 0.0
        %1465 = vmatprep.subr.mxu0 0.0
        %1466 = vmatpush1.msra.mxu0 0.0
        %1467 = vmatprep.subr.mxu0 0.0
        %1468 = vmatpush1.msra.mxu0 0.0
        %1469 = vmatprep.subr.mxu0 0.0
        %1470 = vmatpush1.msra.mxu0 0.0
        %1471 = vmatprep.subr.mxu0 %v1441
        %1472 = vmatpush1.msra.mxu0 %v1439
        %1473 = vmatprep.subr.mxu0 %v1435
        %1474 = vmatpush1.msra.mxu0 %v1433
        %1475 = vmatprep.subr.mxu0 0.0
        %1476 = vmatpush2.msra.mxu0 0.0
        %1477 = vmatprep.subr.mxu0 0.0
        %1478 = vmatpush2.msra.mxu0 0.0
        %1479 = vmatprep.subr.mxu0 0.0
        %1480 = vmatpush2.msra.mxu0 0.0
        %1481 = vmatprep.subr.mxu0 0.0
        %1482 = vmatpush2.msra.mxu0 0.0
        %1483 = vmatprep.subr.mxu0 0.0
        %1484 = vmatpush2.msra.mxu0 0.0
        %1485 = vmatprep.subr.mxu0 0.0
        %1486 = vmatpush2.msra.mxu0 0.0
        %1487 = vmatprep.subr.mxu0 0.0
        %1488 = vmatpush2.msra.mxu0 0.0
        %1489 = vmatprep.subr.mxu0 0.0
        %1490 = vmatpush2.msra.mxu0 0.0
        %1491 = vmatprep.subr.mxu0 0.0
        %1492 = vmatpush2.msra.mxu0 0.0
        %1493 = vmatprep.subr.mxu0 0.0
        %1494 = vmatpush2.msra.mxu0 0.0
        %1495 = vmatprep.subr.mxu0 0.0
        %1496 = vmatpush2.msra.mxu0 0.0
        %1497 = vmatprep.subr.mxu0 0.0
        %1498 = vmatpush2.msra.mxu0 0.0
        %1499 = vmatprep.subr.mxu0 0.0
        %1500 = vmatpush2.msra.mxu0 0.0
        %1501 = vmatprep.subr.mxu0 0.0
        %1502 = vmatpush2.msra.mxu0 0.0
        %1503 = vmatprep.subr.mxu0 0.0
        %1504 = vmatpush2.msra.mxu0 0.0
        %1505 = vmatprep.subr.mxu0 0.0
        %1506 = vmatpush2.msra.mxu0 0.0
        %1507 = vmatprep.mubr.f32.mxu0 0.0
        %1508 = vmatmul.mubr.f32.gmra.mxu0 %v1053
        %v1509 = vpop.f32.mrf.mxu0
        %v1510 = vadd.f32 0.0, %v1509
        %v1511 = vpop.f32.mrf.mxu0
        %v1512 = vadd.f32 0.0, %v1511
        %1513 = vmatprep.mubr.f32.mxu0 0.0
        %1514 = vmatmul.mubr.f32.gmra.mxu0 %v1056
        %v1515 = vpop.f32.mrf.mxu0
        %v1516 = vadd.f32 0.0, %v1515
        %v1517 = vpop.f32.mrf.mxu0
        %v1518 = vadd.f32 0.0, %v1517
        %1519 = vdwg.mxu0
        %v1520 = vld [vmem:[#allocation7] sm:$0xff]
        %v1521 = vld [vmem:[#allocation7 + $0x8] sm:$0xff]
        %v1522 = vld [vmem:[#allocation7 + $0x10] sm:$0xff]
        %v1523 = vld [vmem:[#allocation7 + $0x18] sm:$0xff]
        %v1524 = vld [vmem:[#allocation7 + $0x20] sm:$0xff]
        %v1525 = vld [vmem:[#allocation7 + $0x28] sm:$0xff]
        %v1526 = vld [vmem:[#allocation7 + $0x30] sm:$0xff]
        %v1527 = vld [vmem:[#allocation7 + $0x38] sm:$0xff]
        %v1528 = vld [vmem:[#allocation7 + $0x40] sm:$0xff]
        %v1529 = vld [vmem:[#allocation7 + $0x48] sm:$0xff]
        %v1530 = vld [vmem:[#allocation7 + $0x50] sm:$0xff]
        %v1531 = vld [vmem:[#allocation7 + $0x58] sm:$0xff]
        %v1532 = vld [vmem:[#allocation7 + $0x60] sm:$0xff]
        %v1533 = vld [vmem:[#allocation7 + $0x68] sm:$0xff]
        %v1534 = vld [vmem:[#allocation7 + $0x70] sm:$0xff]
        %v1535 = vld [vmem:[#allocation7 + $0x78] sm:$0xff]
        %v1536 = vld [vmem:[#allocation7 + $0x80] sm:$0xff]
        %v1537 = vld [vmem:[#allocation7 + $0x88] sm:$0xff]
        %v1538 = vld [vmem:[#allocation7 + $0x90] sm:$0xff]
        %v1539 = vld [vmem:[#allocation7 + $0x98] sm:$0xff]
        %v1540 = vld [vmem:[#allocation7 + $0xa0] sm:$0xff]
        %v1541 = vld [vmem:[#allocation7 + $0xa8] sm:$0xff]
        %v1542 = vld [vmem:[#allocation7 + $0xb0] sm:$0xff]
        %v1543 = vld [vmem:[#allocation7 + $0xb8] sm:$0xff]
        %v1544 = vld [vmem:[#allocation7 + $0xc0] sm:$0xff]
        %v1545 = vld [vmem:[#allocation7 + $0xc8] sm:$0xff]
        %v1546 = vld [vmem:[#allocation7 + $0xd0] sm:$0xff]
        %v1547 = vld [vmem:[#allocation7 + $0xd8] sm:$0xff]
        %v1548 = vld [vmem:[#allocation7 + $0xe0] sm:$0xff]
        %v1549 = vld [vmem:[#allocation7 + $0xe8] sm:$0xff]
        %v1550 = vld [vmem:[#allocation7 + $0xf0] sm:$0xff]
        %v1551 = vld [vmem:[#allocation7 + $0xf8] sm:$0xff]
        %v1552 = vld [vmem:[#allocation7 + $0x100] sm:$0xff]
        %v1553 = vld [vmem:[#allocation7 + $0x108] sm:$0xff]
        %v1554 = vld [vmem:[#allocation7 + $0x110] sm:$0xff]
        %v1555 = vld [vmem:[#allocation7 + $0x118] sm:$0xff]
        %v1556 = vld [vmem:[#allocation7 + $0x120] sm:$0xff]
        %v1557 = vld [vmem:[#allocation7 + $0x128] sm:$0xff]
        %v1558 = vld [vmem:[#allocation7 + $0x130] sm:$0xff]
        %v1559 = vld [vmem:[#allocation7 + $0x138] sm:$0xff]
        %v1560 = vld [vmem:[#allocation7 + $0x140] sm:$0xff]
        %v1561 = vld [vmem:[#allocation7 + $0x148] sm:$0xff]
        %v1562 = vld [vmem:[#allocation7 + $0x150] sm:$0xff]
        %v1563 = vld [vmem:[#allocation7 + $0x158] sm:$0xff]
        %v1564 = vld [vmem:[#allocation7 + $0x160] sm:$0xff]
        %v1565 = vld [vmem:[#allocation7 + $0x168] sm:$0xff]
        %v1566 = vld [vmem:[#allocation7 + $0x170] sm:$0xff]
        %v1567 = vld [vmem:[#allocation7 + $0x178] sm:$0xff]
        %v1568 = vld [vmem:[#allocation7 + $0x180] sm:$0xff]
        %v1569 = vld [vmem:[#allocation7 + $0x188] sm:$0xff]
        %v1570 = vld [vmem:[#allocation7 + $0x190] sm:$0xff]
        %v1571 = vld [vmem:[#allocation7 + $0x198] sm:$0xff]
        %v1572 = vld [vmem:[#allocation7 + $0x1a0] sm:$0xff]
        %v1573 = vld [vmem:[#allocation7 + $0x1a8] sm:$0xff]
        %v1574 = vld [vmem:[#allocation7 + $0x1b0] sm:$0xff]
        %v1575 = vld [vmem:[#allocation7 + $0x1b8] sm:$0xff]
        %v1576 = vld [vmem:[#allocation7 + $0x1c0] sm:$0xff]
        %v1577 = vld [vmem:[#allocation7 + $0x1c8] sm:$0xff]
        %v1578 = vld [vmem:[#allocation7 + $0x1d0] sm:$0xff]
        %v1579 = vld [vmem:[#allocation7 + $0x1d8] sm:$0xff]
        %v1580 = vld [vmem:[#allocation7 + $0x1e0] sm:$0xff]
        %v1581 = vld [vmem:[#allocation7 + $0x1e8] sm:$0xff]
        %v1582 = vld [vmem:[#allocation7 + $0x1f0] sm:$0xff]
        %v1583 = vld [vmem:[#allocation7 + $0x1f8] sm:$0xff]
        %1584 = vmatprep.subr.mxu0 %v1551
        %1585 = vmatpush1.msra.mxu0 %v1550
        %1586 = vmatprep.subr.mxu0 %v1549
        %1587 = vmatpush1.msra.mxu0 %v1548
        %1588 = vmatprep.subr.mxu0 %v1547
        %1589 = vmatpush1.msra.mxu0 %v1546
        %1590 = vmatprep.subr.mxu0 %v1545
        %1591 = vmatpush1.msra.mxu0 %v1544
        %1592 = vmatprep.subr.mxu0 %v1543
        %1593 = vmatpush1.msra.mxu0 %v1542
        %1594 = vmatprep.subr.mxu0 %v1541
        %1595 = vmatpush1.msra.mxu0 %v1540
        %1596 = vmatprep.subr.mxu0 %v1539
        %1597 = vmatpush1.msra.mxu0 %v1538
        %1598 = vmatprep.subr.mxu0 %v1537
        %1599 = vmatpush1.msra.mxu0 %v1536
        %1600 = vmatprep.subr.mxu0 %v1535
        %1601 = vmatpush1.msra.mxu0 %v1534
        %1602 = vmatprep.subr.mxu0 %v1533
        %1603 = vmatpush1.msra.mxu0 %v1532
        %1604 = vmatprep.subr.mxu0 %v1531
        %1605 = vmatpush1.msra.mxu0 %v1530
        %1606 = vmatprep.subr.mxu0 %v1529
        %1607 = vmatpush1.msra.mxu0 %v1528
        %1608 = vmatprep.subr.mxu0 %v1527
        %1609 = vmatpush1.msra.mxu0 %v1526
        %1610 = vmatprep.subr.mxu0 %v1525
        %1611 = vmatpush1.msra.mxu0 %v1524
        %1612 = vmatprep.subr.mxu0 %v1523
        %1613 = vmatpush1.msra.mxu0 %v1522
        %1614 = vmatprep.subr.mxu0 %v1521
        %1615 = vmatpush1.msra.mxu0 %v1520
        %1616 = vmatprep.subr.mxu0 %v1583
        %1617 = vmatpush2.msra.mxu0 %v1582
        %1618 = vmatprep.subr.mxu0 %v1581
        %1619 = vmatpush2.msra.mxu0 %v1580
        %1620 = vmatprep.subr.mxu0 %v1579
        %1621 = vmatpush2.msra.mxu0 %v1578
        %1622 = vmatprep.subr.mxu0 %v1577
        %1623 = vmatpush2.msra.mxu0 %v1576
        %1624 = vmatprep.subr.mxu0 %v1575
        %1625 = vmatpush2.msra.mxu0 %v1574
        %1626 = vmatprep.subr.mxu0 %v1573
        %1627 = vmatpush2.msra.mxu0 %v1572
        %1628 = vmatprep.subr.mxu0 %v1571
        %1629 = vmatpush2.msra.mxu0 %v1570
        %1630 = vmatprep.subr.mxu0 %v1569
        %1631 = vmatpush2.msra.mxu0 %v1568
        %1632 = vmatprep.subr.mxu0 %v1567
        %1633 = vmatpush2.msra.mxu0 %v1566
        %1634 = vmatprep.subr.mxu0 %v1565
        %1635 = vmatpush2.msra.mxu0 %v1564
        %1636 = vmatprep.subr.mxu0 %v1563
        %1637 = vmatpush2.msra.mxu0 %v1562
        %1638 = vmatprep.subr.mxu0 %v1561
        %1639 = vmatpush2.msra.mxu0 %v1560
        %1640 = vmatprep.subr.mxu0 %v1559
        %1641 = vmatpush2.msra.mxu0 %v1558
        %1642 = vmatprep.subr.mxu0 %v1557
        %1643 = vmatpush2.msra.mxu0 %v1556
        %1644 = vmatprep.subr.mxu0 %v1555
        %1645 = vmatpush2.msra.mxu0 %v1554
        %1646 = vmatprep.subr.mxu0 %v1553
        %1647 = vmatpush2.msra.mxu0 %v1552
        %1648 = vmatprep.mubr.f32.mxu0 %v1512
        %1649 = vmatmul.mubr.f32.gmra.mxu0 %v1510
        %v1650 = vpop.f32.mrf.mxu0
        %v1651 = vadd.f32 0.0, %v1650
        %v1652 = vpop.f32.mrf.mxu0
        %v1653 = vadd.f32 0.0, %v1652
        %1654 = vmatprep.mubr.f32.mxu0 %v1518
        %1655 = vmatmul.mubr.f32.gmra.mxu0 %v1516
        %v1656 = vpop.f32.mrf.mxu0
        %v1657 = vadd.f32 0.0, %v1656
        %v1658 = vpop.f32.mrf.mxu0
        %v1659 = vadd.f32 0.0, %v1658
        %1660 = vdwg.mxu0
        %v1661 = vld [vmem:[#allocation3] sm:$0xff]
        %v1662 = vld [vmem:[#allocation3 + $0x8] sm:$0xff]
        %v1663 = vld [vmem:[#allocation3 + $0x10] sm:$0xff]
        %v1664 = vld [vmem:[#allocation3 + $0x18] sm:$0xff]
        %v1665 = vadd.f32 %v1661, %v1651
        %v1666 = vadd.f32 %v1662, %v1653
        %v1667 = vadd.f32 %v1663, %v1657
        %v1668 = vadd.f32 %v1664, %v1659
        %v1669 = vmax.f32 %v1665, 0.0
        %v1670 = vmax.f32 %v1666, 0.0
        %v1671 = vmax.f32 %v1667, 0.0
        %v1672 = vmax.f32 %v1668, 0.0
        %v1673 = vsub.f32 %v1661, %v1651
        %v1674 = vsub.f32 %v1662, %v1653
        %v1675 = vsub.f32 %v1663, %v1657
        %v1676 = vsub.f32 %v1664, %v1659
        %v1677 = vmax.f32 %v1673, 0.0
        %v1678 = vmax.f32 %v1674, 0.0
        %v1679 = vmax.f32 %v1675, 0.0
        %v1680 = vmax.f32 %v1676, 0.0
        %v1681 = vadd.f32 %v1669, %v1677
        %v1682 = vadd.f32 %v1670, %v1678
        %v1683 = vadd.f32 %v1671, %v1679
        %v1684 = vadd.f32 %v1672, %v1680
        %s1685 = smul.u32 %s33, 16
        %s1686 = smul.u32 %s34, 8
        %s1687 = sadd.s32 %s1685, %s1686
        %v1688 = vlaneseq
        %v1689 = vand.u32 %v1688, 127
        %v1690 = vadd.s32 %v1689, 128
        %v1691 = vld [vmem:[%s0] sm:$0xff]
        %v1692 = vld [vmem:[%s0 + $0x8] sm:$0xff]
        %v1693 = vstv %s1687
        %v1694 = vsub.s32 %v1691, %v1693
        %v1695 = vsub.s32 %v1692, %v1693
        %v1696 = vmul.u32 %v1694, 32
        %v1697 = vmul.u32 %v1695, 32
        %1698 = vset.pattern.permute.xlu0 0
        %1699 = vperm.xlu0 %1698, %v1696
        %v1700 = vpop.permute.xlu0 %1699
        %1701 = vset.pattern.permute.xlu0 0
        %1702 = vperm.xlu0 %1701, %v1697
        %v1703 = vpop.permute.xlu0 %1702
        %vm1704 = vcmp.lt.s32.totalorder %v1689, %v1700
        %vm1705 = vcmp.lt.s32.totalorder %v1690, %v1700
        %vm1706 = vcmp.lt.s32.totalorder %v1689, %v1703
        %vm1707 = vcmp.lt.s32.totalorder %v1690, %v1703
        %v1708 = vsel %vm1704, 1, 0
        %v1709 = vsel %vm1705, 1, 0
        %v1710 = vsel %vm1706, 1, 0
        %v1711 = vsel %vm1707, 1, 0
        %v1712 = vcvt.s32.f32 %v1708
        %v1713 = vcvt.s32.f32 %v1709
        %v1714 = vcvt.s32.f32 %v1710
        %v1715 = vcvt.s32.f32 %v1711
        %vm1716 = vcmp.gt.s32.totalorder %v1694, 0
        %v1717 = vsel %vm1716, %v1694, 0
        %vm1718 = vcmp.gt.s32.totalorder %v1695, 0
        %v1719 = vsel %vm1718, %v1695, 0
        %vm1720 = vcmp.lt.s32.totalorder %v1717, 8
        %v1721 = vsel %vm1720, %v1717, 8
        %vm1722 = vcmp.lt.s32.totalorder %v1719, 8
        %v1723 = vsel %vm1722, %v1719, 8
        %v1724 = vcvt.s32.f32 %v1721
        %v1725 = vcvt.s32.f32 %v1723
        %v1726 = vld [vmem:[#allocation2] sm:$0xff]
        %v1727 = vld [vmem:[#allocation2 + $0x8] sm:$0xff]
        %v1728 = vmul.f32 %v1681, %v1712
        %v1729 = vmul.f32 %v1682, %v1713
        %v1730 = vmul.f32 %v1683, %v1714
        %v1731 = vmul.f32 %v1684, %v1715
        %v1732 = vld [vmem:[#allocation9] sm:$0xff]
        %v1733 = vld [vmem:[#allocation9 + $0x8] sm:$0xff]
        %v1734 = vld [vmem:[#allocation9 + $0x10] sm:$0xff]
        %v1735 = vld [vmem:[#allocation9 + $0x18] sm:$0xff]
        %v1736 = vld [vmem:[#allocation9 + $0x20] sm:$0xff]
        %v1737 = vld [vmem:[#allocation9 + $0x28] sm:$0xff]
        %v1738 = vld [vmem:[#allocation9 + $0x30] sm:$0xff]
        %v1739 = vld [vmem:[#allocation9 + $0x38] sm:$0xff]
        %v1740 = vld [vmem:[#allocation9 + $0x40] sm:$0xff]
        %v1741 = vld [vmem:[#allocation9 + $0x48] sm:$0xff]
        %v1742 = vld [vmem:[#allocation9 + $0x50] sm:$0xff]
        %v1743 = vld [vmem:[#allocation9 + $0x58] sm:$0xff]
        %v1744 = vld [vmem:[#allocation9 + $0x60] sm:$0xff]
        %v1745 = vld [vmem:[#allocation9 + $0x68] sm:$0xff]
        %v1746 = vld [vmem:[#allocation9 + $0x70] sm:$0xff]
        %v1747 = vld [vmem:[#allocation9 + $0x78] sm:$0xff]
        %v1748 = vld [vmem:[#allocation9 + $0x80] sm:$0xff]
        %v1749 = vld [vmem:[#allocation9 + $0x88] sm:$0xff]
        %v1750 = vld [vmem:[#allocation9 + $0x90] sm:$0xff]
        %v1751 = vld [vmem:[#allocation9 + $0x98] sm:$0xff]
        %v1752 = vld [vmem:[#allocation9 + $0xa0] sm:$0xff]
        %v1753 = vld [vmem:[#allocation9 + $0xa8] sm:$0xff]
        %v1754 = vld [vmem:[#allocation9 + $0xb0] sm:$0xff]
        %v1755 = vld [vmem:[#allocation9 + $0xb8] sm:$0xff]
        %v1756 = vld [vmem:[#allocation9 + $0xc0] sm:$0xff]
        %v1757 = vld [vmem:[#allocation9 + $0xc8] sm:$0xff]
        %v1758 = vld [vmem:[#allocation9 + $0xd0] sm:$0xff]
        %v1759 = vld [vmem:[#allocation9 + $0xd8] sm:$0xff]
        %v1760 = vld [vmem:[#allocation9 + $0xe0] sm:$0xff]
        %v1761 = vld [vmem:[#allocation9 + $0xe8] sm:$0xff]
        %v1762 = vld [vmem:[#allocation9 + $0xf0] sm:$0xff]
        %v1763 = vld [vmem:[#allocation9 + $0xf8] sm:$0xff]
        %v1764 = vmul.f32 %v1724, 2.0
        %v1765 = vmul.f32 %v1725, 2.0
        %v1766 = vld [vmem:[%s10] sm:$0x1]
        %1768 = vset.pattern.permute.xlu0 0
        %1769 = vperm.xlu0 %1768, %v1764
        %v1770 = vpop.permute.xlu0 %1769
        %1773 = vset.pattern.permute.xlu0 0
        %1774 = vperm.xlu0 %1773, %v1765
        %v1775 = vpop.permute.xlu0 %1774
        %v1778 = vlaneseq
        %v1779 = vshrl.u32 %v1778, 7
        %v1780 = vsub.s32 0, %v1779
        %v1781 = vrot.slane %v1766, %v1780
        %v1783 = vmul.f32 %v1770, %v1781
        %v1784 = vmul.f32 %v1775, %v1781
        %1785 = vmatprep.subr.mxu0 0.0
        %1786 = vmatpush1.msra.mxu0 %v1747
        %1787 = vmatprep.subr.mxu0 0.0
        %1788 = vmatpush1.msra.mxu0 %v1746
        %1789 = vmatprep.subr.mxu0 0.0
        %1790 = vmatpush1.msra.mxu0 %v1745
        %1791 = vmatprep.subr.mxu0 0.0
        %1792 = vmatpush1.msra.mxu0 %v1744
        %1793 = vmatprep.subr.mxu0 0.0
        %1794 = vmatpush1.msra.mxu0 %v1743
        %1795 = vmatprep.subr.mxu0 0.0
        %1796 = vmatpush1.msra.mxu0 %v1742
        %1797 = vmatprep.subr.mxu0 0.0
        %1798 = vmatpush1.msra.mxu0 %v1741
        %1799 = vmatprep.subr.mxu0 0.0
        %1800 = vmatpush1.msra.mxu0 %v1740
        %1801 = vmatprep.subr.mxu0 0.0
        %1802 = vmatpush1.msra.mxu0 %v1739
        %1803 = vmatprep.subr.mxu0 0.0
        %1804 = vmatpush1.msra.mxu0 %v1738
        %1805 = vmatprep.subr.mxu0 0.0
        %1806 = vmatpush1.msra.mxu0 %v1737
        %1807 = vmatprep.subr.mxu0 0.0
        %1808 = vmatpush1.msra.mxu0 %v1736
        %1809 = vmatprep.subr.mxu0 0.0
        %1810 = vmatpush1.msra.mxu0 %v1735
        %1811 = vmatprep.subr.mxu0 0.0
        %1812 = vmatpush1.msra.mxu0 %v1734
        %1813 = vmatprep.subr.mxu0 0.0
        %1814 = vmatpush1.msra.mxu0 %v1733
        %1815 = vmatprep.subr.mxu0 0.0
        %1816 = vmatpush1.msra.mxu0 %v1732
        %1817 = vmatprep.subr.mxu0 0.0
        %1818 = vmatpush2.msra.mxu0 %v1763
        %1819 = vmatprep.subr.mxu0 0.0
        %1820 = vmatpush2.msra.mxu0 %v1762
        %1821 = vmatprep.subr.mxu0 0.0
        %1822 = vmatpush2.msra.mxu0 %v1761
        %1823 = vmatprep.subr.mxu0 0.0
        %1824 = vmatpush2.msra.mxu0 %v1760
        %1825 = vmatprep.subr.mxu0 0.0
        %1826 = vmatpush2.msra.mxu0 %v1759
        %1827 = vmatprep.subr.mxu0 0.0
        %1828 = vmatpush2.msra.mxu0 %v1758
        %1829 = vmatprep.subr.mxu0 0.0
        %1830 = vmatpush2.msra.mxu0 %v1757
        %1831 = vmatprep.subr.mxu0 0.0
        %1832 = vmatpush2.msra.mxu0 %v1756
        %1833 = vmatprep.subr.mxu0 0.0
        %1834 = vmatpush2.msra.mxu0 %v1755
        %1835 = vmatprep.subr.mxu0 0.0
        %1836 = vmatpush2.msra.mxu0 %v1754
        %1837 = vmatprep.subr.mxu0 0.0
        %1838 = vmatpush2.msra.mxu0 %v1753
        %1839 = vmatprep.subr.mxu0 0.0
        %1840 = vmatpush2.msra.mxu0 %v1752
        %1841 = vmatprep.subr.mxu0 0.0
        %1842 = vmatpush2.msra.mxu0 %v1751
        %1843 = vmatprep.subr.mxu0 0.0
        %1844 = vmatpush2.msra.mxu0 %v1750
        %1845 = vmatprep.subr.mxu0 0.0
        %1846 = vmatpush2.msra.mxu0 %v1749
        %1847 = vmatprep.subr.mxu0 0.0
        %1848 = vmatpush2.msra.mxu0 %v1748
        %1849 = vmatprep.mubr.f32.mxu0 %v1729
        %1850 = vmatmul.mubr.f32.gmra.mxu0 %v1728
        %v1851 = vpop.f32.mrf.mxu0
        %v1852 = vadd.f32 %v1783, %v1851
        %v1853 = vpop.f32.mrf.mxu0
        %1854 = vmatprep.mubr.f32.mxu0 %v1731
        %1855 = vmatmul.mubr.f32.gmra.mxu0 %v1730
        %v1856 = vpop.f32.mrf.mxu0
        %v1857 = vadd.f32 %v1784, %v1856
        %v1858 = vpop.f32.mrf.mxu0
        %1859 = vdwg.mxu0
        %v1860 = vadd.f32 %v1726, %v1852
        %v1861 = vadd.f32 %v1727, %v1857
        %1862 = vst [vmem:[#allocation2] sm:$0xff] %v1860
        %1863 = vst [vmem:[#allocation2 + $0x8] sm:$0xff] %v1861
        %p1864 = scmp.eq.s32.totalorder %s34, 1
        // Predicated region
        $region97: #{tpu_custom_call.1} parent=79 // pred_check
          %p1865 = pneg %p1864
        $region98: #{tpu_custom_call.1} parent=79 // pred_check_branch
          %1867 = sbr.rel (%p1865) target = $region100
        $region99: #{tpu_custom_call.1} parent=79 // pred_region
          %v1868 = vld [vmem:[#allocation2] sm:$0xff]
          %v1869 = vld [vmem:[#allocation2 + $0x8] sm:$0xff]
          %v1870 = vld [vmem:[%s11] sm:$0xff]
          %v1871 = vld [vmem:[%s11 + $0x8] sm:$0xff]
          %v1872 = vld [vmem:[%s11 + $0x10] sm:$0xff]
          %v1873 = vld [vmem:[%s11 + $0x18] sm:$0xff]
          %v1874 = vld [vmem:[%s11 + $0x20] sm:$0xff]
          %v1875 = vld [vmem:[%s11 + $0x28] sm:$0xff]
          %v1876 = vld [vmem:[%s11 + $0x30] sm:$0xff]
          %v1877 = vld [vmem:[%s11 + $0x38] sm:$0xff]
          %v1878 = vld [vmem:[%s11 + $0x40] sm:$0xff]
          %v1879 = vld [vmem:[%s11 + $0x48] sm:$0xff]
          %v1880 = vld [vmem:[%s11 + $0x50] sm:$0xff]
          %v1881 = vld [vmem:[%s11 + $0x58] sm:$0xff]
          %v1882 = vld [vmem:[%s11 + $0x60] sm:$0xff]
          %v1883 = vld [vmem:[%s11 + $0x68] sm:$0xff]
          %v1884 = vld [vmem:[%s11 + $0x70] sm:$0xff]
          %v1885 = vld [vmem:[%s11 + $0x78] sm:$0xff]
          %v1886 = vld [vmem:[%s12] sm:$0x1]
          %v1888 = vlaneseq
          %v1889 = vshrl.u32 %v1888, 7
          %v1890 = vsub.s32 0, %v1889
          %v1891 = vrot.slane %v1886, %v1890
          %1893 = vmatprep.subr.mxu0 0.0
          %1894 = vmatpush1.msra.mxu0 %v1885
          %1895 = vmatprep.subr.mxu0 0.0
          %1896 = vmatpush1.msra.mxu0 %v1884
          %1897 = vmatprep.subr.mxu0 0.0
          %1898 = vmatpush1.msra.mxu0 %v1883
          %1899 = vmatprep.subr.mxu0 0.0
          %1900 = vmatpush1.msra.mxu0 %v1882
          %1901 = vmatprep.subr.mxu0 0.0
          %1902 = vmatpush1.msra.mxu0 %v1881
          %1903 = vmatprep.subr.mxu0 0.0
          %1904 = vmatpush1.msra.mxu0 %v1880
          %1905 = vmatprep.subr.mxu0 0.0
          %1906 = vmatpush1.msra.mxu0 %v1879
          %1907 = vmatprep.subr.mxu0 0.0
          %1908 = vmatpush1.msra.mxu0 %v1878
          %1909 = vmatprep.subr.mxu0 0.0
          %1910 = vmatpush1.msra.mxu0 %v1877
          %1911 = vmatprep.subr.mxu0 0.0
          %1912 = vmatpush1.msra.mxu0 %v1876
          %1913 = vmatprep.subr.mxu0 0.0
          %1914 = vmatpush1.msra.mxu0 %v1875
          %1915 = vmatprep.subr.mxu0 0.0
          %1916 = vmatpush1.msra.mxu0 %v1874
          %1917 = vmatprep.subr.mxu0 0.0
          %1918 = vmatpush1.msra.mxu0 %v1873
          %1919 = vmatprep.subr.mxu0 0.0
          %1920 = vmatpush1.msra.mxu0 %v1872
          %1921 = vmatprep.subr.mxu0 0.0
          %1922 = vmatpush1.msra.mxu0 %v1871
          %1923 = vmatprep.subr.mxu0 0.0
          %1924 = vmatpush1.msra.mxu0 %v1870
          %1925 = vmatprep.subr.mxu0 0.0
          %1926 = vmatpush2.msra.mxu0 0.0
          %1927 = vmatprep.subr.mxu0 0.0
          %1928 = vmatpush2.msra.mxu0 0.0
          %1929 = vmatprep.subr.mxu0 0.0
          %1930 = vmatpush2.msra.mxu0 0.0
          %1931 = vmatprep.subr.mxu0 0.0
          %1932 = vmatpush2.msra.mxu0 0.0
          %1933 = vmatprep.subr.mxu0 0.0
          %1934 = vmatpush2.msra.mxu0 0.0
          %1935 = vmatprep.subr.mxu0 0.0
          %1936 = vmatpush2.msra.mxu0 0.0
          %1937 = vmatprep.subr.mxu0 0.0
          %1938 = vmatpush2.msra.mxu0 0.0
          %1939 = vmatprep.subr.mxu0 0.0
          %1940 = vmatpush2.msra.mxu0 0.0
          %1941 = vmatprep.subr.mxu0 0.0
          %1942 = vmatpush2.msra.mxu0 0.0
          %1943 = vmatprep.subr.mxu0 0.0
          %1944 = vmatpush2.msra.mxu0 0.0
          %1945 = vmatprep.subr.mxu0 0.0
          %1946 = vmatpush2.msra.mxu0 0.0
          %1947 = vmatprep.subr.mxu0 0.0
          %1948 = vmatpush2.msra.mxu0 0.0
          %1949 = vmatprep.subr.mxu0 0.0
          %1950 = vmatpush2.msra.mxu0 0.0
          %1951 = vmatprep.subr.mxu0 0.0
          %1952 = vmatpush2.msra.mxu0 0.0
          %1953 = vmatprep.subr.mxu0 0.0
          %1954 = vmatpush2.msra.mxu0 0.0
          %1955 = vmatprep.subr.mxu0 0.0
          %1956 = vmatpush2.msra.mxu0 0.0
          %1957 = vmatprep.mubr.f32.mxu0 0.0
          %1958 = vmatmul.mubr.f32.gmra.mxu0 %v1868
          %v1959 = vpop.f32.mrf.mxu0
          %v1960 = vadd.f32 %v1891, %v1959
          %v1961 = vpop.f32.mrf.mxu0
          %1962 = vmatprep.mubr.f32.mxu0 0.0
          %1963 = vmatmul.mubr.f32.gmra.mxu0 %v1869
          %v1964 = vpop.f32.mrf.mxu0
          %v1965 = vadd.f32 %v1891, %v1964
          %v1966 = vpop.f32.mrf.mxu0
          %1967 = vdwg.mxu0
          %v1968 = vmax.f32 %v1960, 0.0
          %v1969 = vmax.f32 %v1965, 0.0
          %v1970 = vld [vmem:[%s13] sm:$0xff]
          %v1971 = vld [vmem:[%s13 + $0x8] sm:$0xff]
          %v1972 = vld [vmem:[%s13 + $0x10] sm:$0xff]
          %v1973 = vld [vmem:[%s13 + $0x18] sm:$0xff]
          %v1974 = vld [vmem:[%s14] sm:$0x1]
          %v1976 = vlaneseq
          %v1977 = vshrl.u32 %v1976, 7
          %v1978 = vsub.s32 0, %v1977
          %v1979 = vrot.slane %v1974, %v1978
          %v1982 = vsel %vm1141, %v1968, 0
          %v1985 = vsel %vm1141, %v1969, 0
          %1987 = vmatprep.subr.mxu0 0.0
          %1988 = vmatpush1.msra.mxu0 0.0
          %1989 = vmatprep.subr.mxu0 0.0
          %1990 = vmatpush1.msra.mxu0 0.0
          %1991 = vmatprep.subr.mxu0 0.0
          %1992 = vmatpush1.msra.mxu0 0.0
          %1993 = vmatprep.subr.mxu0 0.0
          %1994 = vmatpush1.msra.mxu0 0.0
          %1995 = vmatprep.subr.mxu0 0.0
          %1996 = vmatpush1.msra.mxu0 0.0
          %1997 = vmatprep.subr.mxu0 0.0
          %1998 = vmatpush1.msra.mxu0 0.0
          %1999 = vmatprep.subr.mxu0 0.0
          %2000 = vmatpush1.msra.mxu0 0.0
          %2001 = vmatprep.subr.mxu0 0.0
          %2002 = vmatpush1.msra.mxu0 0.0
          %2003 = vmatprep.subr.mxu0 0.0
          %2004 = vmatpush1.msra.mxu0 0.0
          %2005 = vmatprep.subr.mxu0 0.0
          %2006 = vmatpush1.msra.mxu0 0.0
          %2007 = vmatprep.subr.mxu0 0.0
          %2008 = vmatpush1.msra.mxu0 0.0
          %2009 = vmatprep.subr.mxu0 0.0
          %2010 = vmatpush1.msra.mxu0 0.0
          %2011 = vmatprep.subr.mxu0 0.0
          %2012 = vmatpush1.msra.mxu0 %v1973
          %2013 = vmatprep.subr.mxu0 0.0
          %2014 = vmatpush1.msra.mxu0 %v1972
          %2015 = vmatprep.subr.mxu0 0.0
          %2016 = vmatpush1.msra.mxu0 %v1971
          %2017 = vmatprep.subr.mxu0 0.0
          %2018 = vmatpush1.msra.mxu0 %v1970
          %2019 = vmatprep.subr.mxu0 0.0
          %2020 = vmatpush2.msra.mxu0 0.0
          %2021 = vmatprep.subr.mxu0 0.0
          %2022 = vmatpush2.msra.mxu0 0.0
          %2023 = vmatprep.subr.mxu0 0.0
          %2024 = vmatpush2.msra.mxu0 0.0
          %2025 = vmatprep.subr.mxu0 0.0
          %2026 = vmatpush2.msra.mxu0 0.0
          %2027 = vmatprep.subr.mxu0 0.0
          %2028 = vmatpush2.msra.mxu0 0.0
          %2029 = vmatprep.subr.mxu0 0.0
          %2030 = vmatpush2.msra.mxu0 0.0
          %2031 = vmatprep.subr.mxu0 0.0
          %2032 = vmatpush2.msra.mxu0 0.0
          %2033 = vmatprep.subr.mxu0 0.0
          %2034 = vmatpush2.msra.mxu0 0.0
          %2035 = vmatprep.subr.mxu0 0.0
          %2036 = vmatpush2.msra.mxu0 0.0
          %2037 = vmatprep.subr.mxu0 0.0
          %2038 = vmatpush2.msra.mxu0 0.0
          %2039 = vmatprep.subr.mxu0 0.0
          %2040 = vmatpush2.msra.mxu0 0.0
          %2041 = vmatprep.subr.mxu0 0.0
          %2042 = vmatpush2.msra.mxu0 0.0
          %2043 = vmatprep.subr.mxu0 0.0
          %2044 = vmatpush2.msra.mxu0 0.0
          %2045 = vmatprep.subr.mxu0 0.0
          %2046 = vmatpush2.msra.mxu0 0.0
          %2047 = vmatprep.subr.mxu0 0.0
          %2048 = vmatpush2.msra.mxu0 0.0
          %2049 = vmatprep.subr.mxu0 0.0
          %2050 = vmatpush2.msra.mxu0 0.0
          %2051 = vmatprep.mubr.f32.mxu0 0.0
          %2052 = vmatmul.mubr.f32.gmra.mxu0 %v1982
          %v2053 = vpop.f32.mrf.mxu0
          %v2054 = vadd.f32 %v1979, %v2053
          %v2055 = vpop.f32.mrf.mxu0
          %2056 = vmatprep.mubr.f32.mxu0 0.0
          %2057 = vmatmul.mubr.f32.gmra.mxu0 %v1985
          %v2058 = vpop.f32.mrf.mxu0
          %v2059 = vadd.f32 %v1979, %v2058
          %v2060 = vpop.f32.mrf.mxu0
          %2061 = vdwg.mxu0
          %2062 = vst [vmem:[#allocation10] sm:$0xff] %v2054
          %2063 = vst [vmem:[#allocation10 + $0x8] sm:$0xff] %v2059
        $region100: #{tpu_custom_call.1} parent=79 // pred_fallthru
          _
        // Predicated region
        $region101: #{tpu_custom_call.1} parent=79 // pred_check
          %p2064 = pneg %p383
        $region102: #{tpu_custom_call.1} parent=79 // pred_check_branch
          %2066 = sbr.rel (%p2064) target = $region104
        $region103: #{tpu_custom_call.1} parent=79 // pred_region
          %s2068 = ssub.s32 256, 256
          %2069 = vsyncadd [#allocation6], %s2068
          %s2070 = smul.addr %s33, 2
          %s2071 = smul.addr %s2070, 128
          %s2072 = scalar_lea.hbm %s15, %s2071
          %s2073 = sshll.u32 [#allocation10], 4
          %s2074 = int_to_ptr.vmem [resolvable:$true] %s2073
          %2079 = dma.vmem_to_hbm [thread:$0]  %s2074, 256, %s2072, [#allocation6], 128, 128, 8
        $region104: #{tpu_custom_call.1} parent=79 // pred_fallthru
          _
        // Predicated region
        $region105: #{tpu_custom_call.1} parent=79 // pred_check
          %p2080 = pneg %p383
        $region106: #{tpu_custom_call.1} parent=79 // pred_check_branch
          %2082 = sbr.rel (%p2080) target = $region108
        $region107: #{tpu_custom_call.1} parent=79 // pred_region
          %2083 = dma.done [#allocation6], 256
        $region108: #{tpu_custom_call.1} parent=79 // pred_fallthru
          _
      $region80: #{tpu_custom_call.1} parent=5 // pred_fallthru
        _
      %p2084 = scmp.le.s32.totalorder 2, %s24
      // Predicated region
      $region109: #{tpu_custom_call.1} parent=5 // pred_check
        %p2085 = pneg %p2084
      $region110: #{tpu_custom_call.1} parent=5 // pred_check_branch
        %2087 = sbr.rel (%p2085) target = $region112
      $region111: #{tpu_custom_call.1} parent=5 // pred_region
        %s2088 = ssub.s32 %s24, 2
      $region112: #{tpu_custom_call.1} parent=5 // pred_fallthru
        _
    $region6: #{tpu_custom_call.1} parent=1 // loop_footer
      %s28 = sadd.s32 1, %s24
    $region7: #{tpu_custom_call.1} parent=1 // loop_footer_branch
      %23 = sbr.rel target = $region3
    $region8: #{tpu_custom_call.1} parent=1 // loop_exit
      _
    %2089 = vsyncpa [#allocation5], 1
    %s2090 = scalar_lea.sflag [#allocation5], 1
    %2091 = vsyncpa %s2090, 1
    %2092 = vsyncpa [#allocation8], 1
    %2093 = vsyncpa [#allocation6], 1
    %s2094 = scalar_lea.sflag [#allocation6], 1
    %2095 = vsyncpa %s2094, 1

</llo_original>
